<compile_context>
chip_gen: v5e
topology: v5e:2x2
jax: 0.10.0
libtpu: 0.0.40
codegen_flags: <defaults>
</compile_context>

<pallas_src>
import functools

import jax
import jax.numpy as jnp
from jax.experimental import pallas as pl
from jax.experimental.pallas import tpu as pltpu

EPS = 1e-10


def _leaky(x):
    return jnp.where(x > 0, x, 0.2 * x)


def _round_up(x, m):
    return ((x + m - 1) // m) * m


# Per-step double-buffered row-tensor VMEM budget (conservative: same tile fits
# v5e's 16 MiB scoped default and v7x's 64 MiB physical VMEM).
_VMEM_ROW_BUDGET = 4 * 1024 * 1024


def _row_tile(n_rows, floats_per_row, max_rows=512):
    """Rows per grid step (multiple of 8) and the padded total row count."""
    bytes_per_row = max(floats_per_row, 1) * 4 * 2          # f32, double-buffered
    cap = max(8, (_VMEM_ROW_BUDGET // bytes_per_row) // 8 * 8)
    r = min(max_rows, cap, _round_up(n_rows, 8))
    return r, _round_up(n_rows, r)


def _const_spec(shape):
    return pl.BlockSpec(shape, lambda n: (0,) * len(shape))


# ----------------------------------------------------------------------------
# Pallas kernels.  All dense matmuls are [rows, d] @ [d, d] on the MXU; the
# per-row softmax / weighted sum runs on [R, L, d] tiles (L on the sublane axis).
# ----------------------------------------------------------------------------
def _attn_finish(h_pre, wx3, mask3, a2, ab2, gW, gb):
    """Attention epilogue shared by all aggregation kernels.

    h_pre : [R, L, d] pre-activation hidden layer of the attention MLP
    wx3   : [R, L, d] w(x)
    mask3 : [R, L, 1]
    """
    R, L, d = wx3.shape
    h = _leaky(h_pre)
    logit = jnp.dot(h.reshape(R * L, d), a2,
                    preferred_element_type=jnp.float32) + ab2         # [R*L, 1]
    # NOTE: exp without running-max subtraction == PyTorch reference semantics.
    alpha = jnp.exp(logit).reshape(R, L, 1) * mask3
    alpha = alpha / (jnp.sum(alpha, axis=1, keepdims=True) + EPS)
    s = jnp.sum(alpha * wx3, axis=1)                                  # [R, d]
    out = jnp.dot(s, gW, preferred_element_type=jnp.float32) + gb
    return jnp.maximum(out, 0.0)


def _attn_bcast_tail(wx, wpb, mask3, a1x, a1p, a1b, wb, a2, ab2, gW, gb, shape):
    """Attention with p = mask * broadcast(p_base); w(p) is never materialized:
       w(p) @ a1p == mask * (pb @ wW @ a1p) + (wb @ a1p)."""
    R, L, d = shape
    wxa = jnp.dot(wx, a1x, preferred_element_type=jnp.float32)        # [R*L, d]
    tpa = jnp.dot(wpb, a1p, preferred_element_type=jnp.float32)       # [R, d]
    cb = jnp.dot(wb, a1p, preferred_element_type=jnp.float32) + a1b   # [1, d]
    h_pre = (wxa.reshape(R, L, d)
             + mask3 * tpa.reshape(R, 1, d)
             + cb.reshape(1, 1, d))
    return _attn_finish(h_pre, wx.reshape(R, L, d), mask3, a2, ab2, gW, gb)


def _item_agg_kernel(q_ref, e_ref, pb_ref, m_ref,
                     gw1q_ref, gw1e_ref, gb1_ref, gw2_ref, gb2_ref,
                     wW_ref, wb_ref,
                     a1x_ref, a1p_ref, a1b_ref, a2_ref, ab2_ref,
                     gW_ref, gb_ref, o_ref):
    """Fused g_v MLP + attention + _Aggregation for an R-row tile."""
    R, L, d = q_ref.shape
    q = q_ref[...].reshape(R * L, d)
    e = e_ref[...].reshape(R * L, d)
    # g_v: Linear(2d->d) ; LeakyReLU(0.2) ; Linear(d->d)   (split-weight concat)
    h1 = (jnp.dot(q, gw1q_ref[...], preferred_element_type=jnp.float32)
          + jnp.dot(e, gw1e_ref[...], preferred_element_type=jnp.float32)
          + gb1_ref[...])
    x = jnp.dot(_leaky(h1), gw2_ref[...],
                preferred_element_type=jnp.float32) + gb2_ref[...]
    wx = jnp.dot(x, wW_ref[...], preferred_element_type=jnp.float32) + wb_ref[...]
    wpb = jnp.dot(pb_ref[...], wW_ref[...], preferred_element_type=jnp.float32)
    o_ref[...] = _attn_bcast_tail(wx, wpb, m_ref[...],
                                  a1x_ref[...], a1p_ref[...], a1b_ref[...],
                                  wb_ref[...], a2_ref[...], ab2_ref[...],
                                  gW_ref[...], gb_ref[...], (R, L, d))


def _attn_bcast_kernel(x_ref, pb_ref, m_ref,
                       wW_ref, wb_ref,
                       a1x_ref, a1p_ref, a1b_ref, a2_ref, ab2_ref,
                       gW_ref, gb_ref, o_ref):
    R, L, d = x_ref.shape
    x = x_ref[...].reshape(R * L, d)
    wx = jnp.dot(x, wW_ref[...], preferred_element_type=jnp.float32) + wb_ref[...]
    wpb = jnp.dot(pb_ref[...], wW_ref[...], preferred_element_type=jnp.float32)
    o_ref[...] = _attn_bcast_tail(wx, wpb, m_ref[...],
                                  a1x_ref[...], a1p_ref[...], a1b_ref[...],
                                  wb_ref[...], a2_ref[...], ab2_ref[...],
                                  gW_ref[...], gb_ref[...], (R, L, d))


def _attn_full_kernel(x_ref, p_ref, m_ref,
                      wW_ref, wb_ref,
                      a1x_ref, a1p_ref, a1b_ref, a2_ref, ab2_ref,
                      gW_ref, gb_ref, o_ref):
    R, L, d = x_ref.shape
    x = x_ref[...].reshape(R * L, d)
    p = p_ref[...].reshape(R * L, d)
    wx = jnp.dot(x, wW_ref[...], preferred_element_type=jnp.float32) + wb_ref[...]
    wp = jnp.dot(p, wW_ref[...], preferred_element_type=jnp.float32) + wb_ref[...]
    h_pre = (jnp.dot(wx, a1x_ref[...], preferred_element_type=jnp.float32)
             + jnp.dot(wp, a1p_ref[...], preferred_element_type=jnp.float32)
             + a1b_ref[...])
    o_ref[...] = _attn_finish(h_pre.reshape(R, L, d), wx.reshape(R, L, d),
                              m_ref[...], a2_ref[...], ab2_ref[...],
                              gW_ref[...], gb_ref[...])


def _combine_kernel(h_ref, w1_ref, b1_ref, w2_ref, b2_ref, o_ref):
    # combine_mlp (eval mode): Linear(5d->3d) ReLU ; Linear(3d->d) ReLU
    z = jnp.maximum(jnp.dot(h_ref[...], w1_ref[...],
                            preferred_element_type=jnp.float32) + b1_ref[...], 0.0)
    o = jnp.dot(z, w2_ref[...], preferred_element_type=jnp.float32) + b2_ref[...]
    o_ref[...] = jnp.maximum(o, 0.0)


# ----------------------------------------------------------------------------
# Pallas backend: pre-transposed parameters + row-batched pallas_call wrappers.
# ----------------------------------------------------------------------------
class PallasBackend:
    _ATT_NAMES = ('user_items_att', 'user_items_att_s1', 'user_users_att_s2',
                  'u_user_users_att', 'sf_user_users_att', 'user_items_att_sf1',
                  'sf_users_att')
    _AGG_NAMES = ('aggre_items', 'aggre_items_s1', 'aggre_neigbors_s2',
                  'u_aggre_neigbors', 'sf_aggre_neigbors', 'aggre_items_sf1',
                  'aggre_sf_neigbors')

    def __init__(self, params, d):
        self.d = d
        gW1, gb1, gW2, gb2 = params['g_v']
        self.gv = (gW1[:, :d].T, gW1[:, d:].T, gb1[None, :], gW2.T, gb2[None, :])
        self.w = {k: (params[k][0].T, params[k][1][None, :])
                  for k in ('w1', 'w2', 'w3', 'w4', 'w5', 'w6', 'w7')}
        self.att = {}
        for k in self._ATT_NAMES:
            aW1, ab1, aW2, ab2 = params[k]
            self.att[k] = (aW1[:, :d].T, aW1[:, d:].T, ab1[None, :],
                           aW2.T, ab2.reshape(1, 1))
        self.agg = {k: (params[k][0].T, params[k][1][None, :])
                    for k in self._AGG_NAMES}
        cW1, cb1, cW2, cb2 = params['combine']
        self.comb = (cW1.T, cb1[None, :], cW2.T, cb2[None, :])

    # -- spec / operand plumbing ---------------------------------------------
    def _attn_weight_specs(self):
        d = self.d
        # TODO(synk): ab2 (1,1) could live in SMEM; kept in VMEM for portability.
        return [_const_spec((d, d)), _const_spec((1, d)),      # wW, wb
                _const_spec((d, d)), _const_spec((d, d)),      # a1x, a1p
                _const_spec((1, d)), _const_spec((d, 1)),      # a1b, a2
                _const_spec((1, 1)),                           # ab2
                _const_spec((d, d)), _const_spec((1, d))]      # gW, gb

    def _attn_weights(self, w_name, att_name, agg_name):
        return (*self.w[w_name], *self.att[att_name], *self.agg[agg_name])

    @staticmethod
    def _pad_rows(arrs, pad):
        if pad == 0:
            return arrs
        return [jnp.pad(a, ((0, pad),) + ((0, 0),) * (a.ndim - 1)) for a in arrs]

    def _call(self, kernel, row_arrs, row_specs, weights, weight_specs,
              n_rows, R, Npad):
        d = self.d
        out = pl.pallas_call(
            kernel,
            out_shape=jax.ShapeDtypeStruct((Npad, d), jnp.float32),
            grid=(Npad // R,),
            in_specs=list(row_specs) + list(weight_specs),
            out_specs=pl.BlockSpec((R, d), lambda n: (n, 0)),
            compiler_params=pltpu.CompilerParams(
                dimension_semantics=("parallel",)),
        )(*row_arrs, *weights)
        return out[:n_rows]

    # -- fused g_v + attention + aggregation (p = mask * broadcast(p_base)) ---
    def item_agg(self, q, e, p_base, mask, w_name, att_name, agg_name):
        d = self.d
        N, L, _ = q.shape
        R, Npad = _row_tile(N, 2 * L * d + L + 2 * d)
        q, e, p_base, mask = self._pad_rows([q, e, p_base, mask], Npad - N)
        row3 = pl.BlockSpec((R, L, d), lambda n: (n, 0, 0))
        row2 = pl.BlockSpec((R, d), lambda n: (n, 0))
        rowm = pl.BlockSpec((R, L, 1), lambda n: (n, 0, 0))
        gv_specs = [_const_spec((d, d)), _const_spec((d, d)), _const_spec((1, d)),
                    _const_spec((d, d)), _const_spec((1, d))]
        return self._call(
            _item_agg_kernel,
            (q, e, p_base, mask[..., None]),
            (row3, row3, row2, rowm),
            (*self.gv, *self._attn_weights(w_name, att_name, agg_name)),
            gv_specs + self._attn_weight_specs(),
            N, R, Npad)

    # -- attention/aggregation, p = mask * broadcast(p_base) ------------------
    def attn_bcast(self, x, p_base, mask, w_name, att_name, agg_name):
        d = self.d
        N, L, _ = x.shape
        R, Npad = _row_tile(N, L * d + L + 2 * d)
        x, p_base, mask = self._pad_rows([x, p_base, mask], Npad - N)
        row3 = pl.BlockSpec((R, L, d), lambda n: (n, 0, 0))
        row2 = pl.BlockSpec((R, d), lambda n: (n, 0))
        rowm = pl.BlockSpec((R, L, 1), lambda n: (n, 0, 0))
        return self._call(
            _attn_bcast_kernel,
            (x, p_base, mask[..., None]),
            (row3, row2, rowm),
            self._attn_weights(w_name, att_name, agg_name),
            self._attn_weight_specs(),
            N, R, Npad)

    # -- attention/aggregation, full per-neighbour p ---------------------------
    def attn_full(self, x, p, mask, w_name, att_name, agg_name):
        d = self.d
        N, L, _ = x.shape
        R, Npad = _row_tile(N, 2 * L * d + L + d)
        x, p, mask = self._pad_rows([x, p, mask], Npad - N)
        row3 = pl.BlockSpec((R, L, d), lambda n: (n, 0, 0))
        rowm = pl.BlockSpec((R, L, 1), lambda n: (n, 0, 0))
        return self._call(
            _attn_full_kernel,
            (x, p, mask[..., None]),
            (row3, row3, rowm),
            self._attn_weights(w_name, att_name, agg_name),
            self._attn_weight_specs(),
            N, R, Npad)

    # -- combine MLP -----------------------------------------------------------
    def combine(self, hcat):
        d = self.d
        B, D5 = hcat.shape
        D3 = 3 * d
        R, Bpad = _row_tile(B, D5 + d, max_rows=1024)
        (hcat,) = self._pad_rows([hcat], Bpad - B)
        cW1, cb1, cW2, cb2 = self.comb
        out = pl.pallas_call(
            _combine_kernel,
            out_shape=jax.ShapeDtypeStruct((Bpad, d), jnp.float32),
            grid=(Bpad // R,),
            in_specs=[pl.BlockSpec((R, D5), lambda n: (n, 0)),
                      _const_spec((D5, D3)), _const_spec((1, D3)),
                      _const_spec((D3, d)), _const_spec((1, d))],
            out_specs=pl.BlockSpec((R, d), lambda n: (n, 0)),
            compiler_params=pltpu.CompilerParams(
                dimension_semantics=("parallel",)),
        )(hcat, cW1, cb1, cW2, cb2)
        return out[:B]


# ----------------------------------------------------------------------------
# Pure-JAX reference backend (non-fused), for correctness checking.
# ----------------------------------------------------------------------------
def _gv_ref(q, e, gv_params):
    W1, b1, W2, b2 = gv_params
    h = _leaky(jnp.concatenate([q, e], axis=-1) @ W1.T + b1)
    return h @ W2.T + b2


def _attn_agg_ref(x, p, mask, w_params, att_params, agg_params):
    wW, wb = w_params
    aW1, ab1, aW2, ab2 = att_params
    gW, gb = agg_params
    wx = x @ wW.T + wb
    wp = p @ wW.T + wb
    h = _leaky(jnp.concatenate([wx, wp], axis=-1) @ aW1.T + ab1)
    a = (h @ aW2.T + ab2)[..., 0]
    a = jnp.exp(a) * mask
    a = a / (jnp.sum(a, axis=1, keepdims=True) + EPS)
    s = jnp.sum(a[..., None] * wx, axis=1)
    return jnp.maximum(s @ gW.T + gb, 0.0)


class RefBackend:
    def __init__(self, params, d):
        self.params = params
        self.d = d

    def item_agg(self, q, e, p_base, mask, w_name, att_name, agg_name):
        d = self.d
        x = _gv_ref(q.reshape(-1, d), e.reshape(-1, d),
                    self.params['g_v']).reshape(q.shape)
        p = mask[..., None] * p_base[:, None, :]
        return _attn_agg_ref(x, p, mask, self.params[w_name],
                             self.params[att_name], self.params[agg_name])

    def attn_bcast(self, x, p_base, mask, w_name, att_name, agg_name):
        p = mask[..., None] * p_base[:, None, :]
        return _attn_agg_ref(x, p, mask, self.params[w_name],
                             self.params[att_name], self.params[agg_name])

    def attn_full(self, x, p, mask, w_name, att_name, agg_name):
        return _attn_agg_ref(x, p, mask, self.params[w_name],
                             self.params[att_name], self.params[agg_name])

    def combine(self, hcat):
        W1, b1, W2, b2 = self.params['combine']
        z = jnp.maximum(hcat @ W1.T + b1, 0.0)
        return jnp.maximum(z @ W2.T + b2, 0.0)


# ----------------------------------------------------------------------------
# _UserModel forward (embedding gathers / reshapes in JAX; hot path in kernels)
# ----------------------------------------------------------------------------
def user_model_forward(backend, tables, uids, u_item_pad, u_user_pad,
                       u_user_item_pad, sf_user_pad, sf_user_item_pad):
    # TODO(synk): cl == 1 contrastive-noise branch (sign(emb)*normalize(rand)*0.1)
    # not implemented; this is the cl == 0, eval-mode forward (dropout = identity).
    user_t, item_t, rate_t = tables
    d = user_t.shape[-1]
    B = uids.shape[0]
    u_self = user_t[uids]                                        # [B, d]

    # ----- item aggregation -> h_iI
    iid = u_item_pad[:, :, 0]                                    # [B, I]
    mask_u = (iid > 0).astype(jnp.float32)
    h_iI = backend.item_agg(item_t[iid], rate_t[u_item_pad[:, :, 1]],
                            u_self, mask_u,
                            'w1', 'user_items_att', 'aggre_items')

    # ----- second-order-friend item aggregation -> h_sfI -> h_i_sf
    sf_iid = sf_user_item_pad[..., 0]                            # [B, SF, I3]
    _, SF, I3 = sf_iid.shape
    mask_sf = (sf_iid > 0).astype(jnp.float32)
    sf_uid = sf_user_pad[:, :, 0]                                # [B, SF]
    h_sfI = backend.item_agg(
        item_t[sf_iid].reshape(B * SF, I3, d),
        rate_t[sf_user_item_pad[..., 1]].reshape(B * SF, I3, d),
        user_t[sf_uid].reshape(B * SF, d),
        mask_sf.reshape(B * SF, I3),
        'w2', 'user_items_att_sf1', 'aggre_items_sf1').reshape(B, SF, d)
    mask_u_f = (sf_uid > 0).astype(jnp.float32)
    h_i_sf = backend.attn_bcast(h_sfI, u_self, mask_u_f,
                                'w3', 'sf_users_att', 'aggre_sf_neigbors')

    # ----- social-neighbour item aggregation -> h_oI -> h_iS
    s_iid = u_user_item_pad[..., 0]                              # [B, U, I2]
    _, U, I2 = s_iid.shape
    mask_s = (s_iid > 0).astype(jnp.float32)
    nbr_emb = user_t[u_user_pad]                                 # [B, U, d]
    h_oI = backend.item_agg(
        item_t[s_iid].reshape(B * U, I2, d),
        rate_t[u_user_item_pad[..., 1]].reshape(B * U, I2, d),
        nbr_emb.reshape(B * U, d),
        mask_s.reshape(B * U, I2),
        'w4', 'user_items_att_s1', 'aggre_items_s1').reshape(B, U, d)
    mask_su = (u_user_pad > 0).astype(jnp.float32)
    h_iS = backend.attn_full(h_oI, nbr_emb, mask_su,
                             'w5', 'user_users_att_s2', 'aggre_neigbors_s2')

    # ----- direct social aggregation -> h_su
    h_su = backend.attn_bcast(nbr_emb, u_self, mask_su,
                              'w6', 'u_user_users_att', 'u_aggre_neigbors')

    # ----- second-order friend aggregation -> h_sf
    h_sf = backend.attn_bcast(user_t[sf_uid], u_self, mask_u_f,
                              'w7', 'sf_user_users_att', 'sf_aggre_neigbors')

    hcat = jnp.concatenate([h_iI, h_iS, h_i_sf, h_su, h_sf], axis=1)  # [B, 5d]
    return backend.combine(hcat)


# ----------------------------------------------------------------------------
# Deterministic parameter init (shapes follow the PyTorch __init__)
# ----------------------------------------------------------------------------
def init_params(key, d):
    keys = iter(jax.random.split(key, 128))

    def linear(out_dim, in_dim):
        k1, k2 = next(keys), next(keys)
        bound = 1.0 / (in_dim ** 0.5)
        W = jax.random.uniform(k1, (out_dim, in_dim), jnp.float32, -bound, bound)
        b = jax.random.uniform(k2, (out_dim,), jnp.float32, -bound, bound)
        return W, b

    def mlp2(out_dim, in_dim):  # _MultiLayerPercep
        W1, b1 = linear(in_dim // 2, in_dim)
        W2, b2 = linear(out_dim, in_dim // 2)
        return (W1, b1, W2, b2)

    params = {}
    for name in ['w1', 'w2', 'w3', 'w4', 'w5', 'w6', 'w7']:
        params[name] = linear(d, d)
    params['g_v'] = mlp2(d, 2 * d)
    for name in ['user_items_att', 'user_items_att_s1', 'user_users_att_s2',
                 'u_user_users_att', 'sf_user_users_att', 'user_items_att_sf1',
                 'sf_users_att']:
        params[name] = mlp2(1, 2 * d)
    for name in ['aggre_items', 'aggre_items_s1', 'aggre_neigbors_s2',
                 'u_aggre_neigbors', 'sf_aggre_neigbors', 'aggre_items_sf1',
                 'aggre_sf_neigbors']:
        params[name] = linear(d, d)
    W1, b1 = linear(3 * d, 5 * d)
    W2, b2 = linear(d, 3 * d)
    params['combine'] = (W1, b1, W2, b2)
    return params


# ----------------------------------------------------------------------------
if __name__ == "__main__":
    d = 16
    B, I, U, I2, SF, I3 = 2, 8, 8, 8, 8, 8
    n_users, n_items, n_rates = 12, 20, 6

    key = jax.random.PRNGKey(0)
    (kp, ku, ki, kr, k1, k2, k3, k4, k5, k6, k7, k8) = jax.random.split(key, 12)

    params = init_params(kp, d)
    user_t = jax.random.normal(ku, (n_users, d), jnp.float32) * 0.1
    item_t = jax.random.normal(ki, (n_items, d), jnp.float32) * 0.1
    rate_t = jax.random.normal(kr, (n_rates, d), jnp.float32) * 0.1
    tables = (user_t, item_t, rate_t)

    uids = jax.random.randint(k1, (B,), 0, n_users)
    u_item_pad = jnp.stack(
        [jax.random.randint(k2, (B, I), 0, n_items),
         jax.random.randint(k3, (B, I), 0, n_rates)], axis=-1)
    u_user_pad = jax.random.randint(k4, (B, U), 0, n_users)
    u_user_item_pad = jnp.stack(
        [jax.random.randint(k5, (B, U, I2), 0, n_items),
         jax.random.randint(k6, (B, U, I2), 0, n_rates)], axis=-1)
    sf_user_ids = jax.random.randint(k7, (B, SF), 0, n_users)
    sf_user_pad = jnp.stack([sf_user_ids, sf_user_ids], axis=-1)
    sf_user_item_pad = jnp.stack(
        [jax.random.randint(k8, (B, SF, I3), 0, n_items),
         jax.random.randint(k8, (B, SF, I3), 0, n_rates)], axis=-1)

    run_pallas = jax.jit(functools.partial(
        user_model_forward, PallasBackend(params, d), tables))
    run_ref = functools.partial(
        user_model_forward, RefBackend(params, d), tables)

    h = jax.block_until_ready(run_pallas(
        uids, u_item_pad, u_user_pad, u_user_item_pad,
        sf_user_pad, sf_user_item_pad))
    h_ref = run_ref(uids, u_item_pad, u_user_pad, u_user_item_pad,
                    sf_user_pad, sf_user_item_pad)

    assert h.shape == (B, d), h.shape
    assert jnp.allclose(h, h_ref, atol=1e-4, rtol=1e-4), (h, h_ref)
    print("KERNEL_OK")
</pallas_src>

<mosaic_0001>
module attributes {stable_mosaic.version = 11 : i64} {
  func.func @_item_agg_kernel(%arg0: i32, %arg1: memref<16x8x16xf32, #tpu.memory_space<vmem>>, %arg2: memref<16x8x16xf32, #tpu.memory_space<vmem>>, %arg3: memref<16x16xf32, #tpu.memory_space<vmem>>, %arg4: memref<16x8x1xf32, #tpu.memory_space<vmem>>, %arg5: memref<16x16xf32, #tpu.memory_space<vmem>>, %arg6: memref<16x16xf32, #tpu.memory_space<vmem>>, %arg7: memref<1x16xf32, #tpu.memory_space<vmem>>, %arg8: memref<16x16xf32, #tpu.memory_space<vmem>>, %arg9: memref<1x16xf32, #tpu.memory_space<vmem>>, %arg10: memref<16x16xf32, #tpu.memory_space<vmem>>, %arg11: memref<1x16xf32, #tpu.memory_space<vmem>>, %arg12: memref<16x16xf32, #tpu.memory_space<vmem>>, %arg13: memref<16x16xf32, #tpu.memory_space<vmem>>, %arg14: memref<1x16xf32, #tpu.memory_space<vmem>>, %arg15: memref<16x1xf32, #tpu.memory_space<vmem>>, %arg16: memref<1x1xf32, #tpu.memory_space<vmem>>, %arg17: memref<16x16xf32, #tpu.memory_space<vmem>>, %arg18: memref<1x16xf32, #tpu.memory_space<vmem>>, %arg19: memref<16x16xf32, #tpu.memory_space<vmem>>) attributes {dimension_semantics = [#tpu.dimension_semantics<parallel>], iteration_bounds = array<i64: 1>, scalar_prefetch = 0 : i64, scratch_operands = 0 : i64, tpu.core_type = #tpu.core_type<tc>, window_params = [{transform_indices = @transform_0, window_bounds = array<i64: 16, 8, 16>}, {transform_indices = @transform_1, window_bounds = array<i64: 16, 8, 16>}, {transform_indices = @transform_2, window_bounds = array<i64: 16, 16>}, {transform_indices = @transform_3, window_bounds = array<i64: 16, 8, 1>}, {pipeline_mode = #tpu.pipeline_mode<synchronous>, transform_indices = @transform_4, window_bounds = array<i64: 16, 16>}, {pipeline_mode = #tpu.pipeline_mode<synchronous>, transform_indices = @transform_5, window_bounds = array<i64: 16, 16>}, {pipeline_mode = #tpu.pipeline_mode<synchronous>, transform_indices = @transform_6, window_bounds = array<i64: 1, 16>}, {pipeline_mode = #tpu.pipeline_mode<synchronous>, transform_indices = @transform_7, window_bounds = array<i64: 16, 16>}, {pipeline_mode = #tpu.pipeline_mode<synchronous>, transform_indices = @transform_8, window_bounds = array<i64: 1, 16>}, {pipeline_mode = #tpu.pipeline_mode<synchronous>, transform_indices = @transform_9, window_bounds = array<i64: 16, 16>}, {pipeline_mode = #tpu.pipeline_mode<synchronous>, transform_indices = @transform_10, window_bounds = array<i64: 1, 16>}, {pipeline_mode = #tpu.pipeline_mode<synchronous>, transform_indices = @transform_11, window_bounds = array<i64: 16, 16>}, {pipeline_mode = #tpu.pipeline_mode<synchronous>, transform_indices = @transform_12, window_bounds = array<i64: 16, 16>}, {pipeline_mode = #tpu.pipeline_mode<synchronous>, transform_indices = @transform_13, window_bounds = array<i64: 1, 16>}, {pipeline_mode = #tpu.pipeline_mode<synchronous>, transform_indices = @transform_14, window_bounds = array<i64: 16, 1>}, {pipeline_mode = #tpu.pipeline_mode<synchronous>, transform_indices = @transform_15, window_bounds = array<i64: 1, 1>}, {pipeline_mode = #tpu.pipeline_mode<synchronous>, transform_indices = @transform_16, window_bounds = array<i64: 16, 16>}, {pipeline_mode = #tpu.pipeline_mode<synchronous>, transform_indices = @transform_17, window_bounds = array<i64: 1, 16>}, {transform_indices = @transform_18, window_bounds = array<i64: 16, 16>}]} {
    %c0 = arith.constant 0 : index
    %c0_0 = arith.constant 0 : index
    %c0_1 = arith.constant 0 : index
    %0 = vector.load %arg1[%c0, %c0_0, %c0_1] : memref<16x8x16xf32, #tpu.memory_space<vmem>>, vector<16x8x16xf32>
    %1 = vector.shape_cast %0 : vector<16x8x16xf32> to vector<128x16xf32>
    %c0_2 = arith.constant 0 : index
    %c0_3 = arith.constant 0 : index
    %c0_4 = arith.constant 0 : index
    %2 = vector.load %arg2[%c0_2, %c0_3, %c0_4] : memref<16x8x16xf32, #tpu.memory_space<vmem>>, vector<16x8x16xf32>
    %3 = vector.shape_cast %2 : vector<16x8x16xf32> to vector<128x16xf32>
    %c0_5 = arith.constant 0 : index
    %c0_6 = arith.constant 0 : index
    %4 = vector.load %arg5[%c0_5, %c0_6] : memref<16x16xf32, #tpu.memory_space<vmem>>, vector<16x16xf32>
    %cst = arith.constant dense<0.000000e+00> : vector<128x16xf32>
    %5 = tpu.matmul %1, %4, %cst {dimension_numbers = #tpu.dot_dimension_numbers<[1], [0], [0], [1], [0, 0, 1, 1], [], []>} : vector<128x16xf32>, vector<16x16xf32>, vector<128x16xf32> -> vector<128x16xf32>
    %c0_7 = arith.constant 0 : index
    %c0_8 = arith.constant 0 : index
    %6 = vector.load %arg6[%c0_7, %c0_8] : memref<16x16xf32, #tpu.memory_space<vmem>>, vector<16x16xf32>
    %cst_9 = arith.constant dense<0.000000e+00> : vector<128x16xf32>
    %7 = tpu.matmul %3, %6, %cst_9 {dimension_numbers = #tpu.dot_dimension_numbers<[1], [0], [0], [1], [0, 0, 1, 1], [], []>} : vector<128x16xf32>, vector<16x16xf32>, vector<128x16xf32> -> vector<128x16xf32>
    %8 = arith.addf %5, %7 : vector<128x16xf32>
    %c0_10 = arith.constant 0 : index
    %c0_11 = arith.constant 0 : index
    %9 = vector.load %arg7[%c0_10, %c0_11] : memref<1x16xf32, #tpu.memory_space<vmem>>, vector<1x16xf32>
    %10 = vector.broadcast %9 : vector<1x16xf32> to vector<128x16xf32>
    %11 = arith.addf %8, %10 : vector<128x16xf32>
    %cst_12 = arith.constant 0.000000e+00 : f32
    %12 = vector.broadcast %cst_12 : f32 to vector<128x16xf32>
    %13 = arith.cmpf ogt, %11, %12 : vector<128x16xf32>
    %cst_13 = arith.constant 2.000000e-01 : f32
    %14 = vector.broadcast %cst_13 : f32 to vector<128x16xf32>
    %15 = arith.mulf %14, %11 : vector<128x16xf32>
    %16 = arith.select %13, %11, %15 : vector<128x16xi1>, vector<128x16xf32>
    %c0_14 = arith.constant 0 : index
    %c0_15 = arith.constant 0 : index
    %17 = vector.load %arg8[%c0_14, %c0_15] : memref<16x16xf32, #tpu.memory_space<vmem>>, vector<16x16xf32>
    %cst_16 = arith.constant dense<0.000000e+00> : vector<128x16xf32>
    %18 = tpu.matmul %16, %17, %cst_16 {dimension_numbers = #tpu.dot_dimension_numbers<[1], [0], [0], [1], [0, 0, 1, 1], [], []>} : vector<128x16xf32>, vector<16x16xf32>, vector<128x16xf32> -> vector<128x16xf32>
    %c0_17 = arith.constant 0 : index
    %c0_18 = arith.constant 0 : index
    %19 = vector.load %arg9[%c0_17, %c0_18] : memref<1x16xf32, #tpu.memory_space<vmem>>, vector<1x16xf32>
    %20 = vector.broadcast %19 : vector<1x16xf32> to vector<128x16xf32>
    %21 = arith.addf %18, %20 : vector<128x16xf32>
    %c0_19 = arith.constant 0 : index
    %c0_20 = arith.constant 0 : index
    %22 = vector.load %arg10[%c0_19, %c0_20] : memref<16x16xf32, #tpu.memory_space<vmem>>, vector<16x16xf32>
    %cst_21 = arith.constant dense<0.000000e+00> : vector<128x16xf32>
    %23 = tpu.matmul %21, %22, %cst_21 {dimension_numbers = #tpu.dot_dimension_numbers<[1], [0], [0], [1], [0, 0, 1, 1], [], []>} : vector<128x16xf32>, vector<16x16xf32>, vector<128x16xf32> -> vector<128x16xf32>
    %c0_22 = arith.constant 0 : index
    %c0_23 = arith.constant 0 : index
    %24 = vector.load %arg11[%c0_22, %c0_23] : memref<1x16xf32, #tpu.memory_space<vmem>>, vector<1x16xf32>
    %25 = vector.broadcast %24 : vector<1x16xf32> to vector<128x16xf32>
    %26 = arith.addf %23, %25 : vector<128x16xf32>
    %c0_24 = arith.constant 0 : index
    %c0_25 = arith.constant 0 : index
    %27 = vector.load %arg3[%c0_24, %c0_25] : memref<16x16xf32, #tpu.memory_space<vmem>>, vector<16x16xf32>
    %c0_26 = arith.constant 0 : index
    %c0_27 = arith.constant 0 : index
    %28 = vector.load %arg10[%c0_26, %c0_27] : memref<16x16xf32, #tpu.memory_space<vmem>>, vector<16x16xf32>
    %cst_28 = arith.constant dense<0.000000e+00> : vector<16x16xf32>
    %29 = tpu.matmul %27, %28, %cst_28 {dimension_numbers = #tpu.dot_dimension_numbers<[1], [0], [0], [1], [0, 0, 1, 1], [], []>} : vector<16x16xf32>, vector<16x16xf32>, vector<16x16xf32> -> vector<16x16xf32>
    %c0_29 = arith.constant 0 : index
    %c0_30 = arith.constant 0 : index
    %c0_31 = arith.constant 0 : index
    %30 = vector.load %arg4[%c0_29, %c0_30, %c0_31] : memref<16x8x1xf32, #tpu.memory_space<vmem>>, vector<16x8x1xf32>
    %c0_32 = arith.constant 0 : index
    %c0_33 = arith.constant 0 : index
    %31 = vector.load %arg12[%c0_32, %c0_33] : memref<16x16xf32, #tpu.memory_space<vmem>>, vector<16x16xf32>
    %c0_34 = arith.constant 0 : index
    %c0_35 = arith.constant 0 : index
    %32 = vector.load %arg13[%c0_34, %c0_35] : memref<16x16xf32, #tpu.memory_space<vmem>>, vector<16x16xf32>
    %c0_36 = arith.constant 0 : index
    %c0_37 = arith.constant 0 : index
    %33 = vector.load %arg14[%c0_36, %c0_37] : memref<1x16xf32, #tpu.memory_space<vmem>>, vector<1x16xf32>
    %c0_38 = arith.constant 0 : index
    %c0_39 = arith.constant 0 : index
    %34 = vector.load %arg11[%c0_38, %c0_39] : memref<1x16xf32, #tpu.memory_space<vmem>>, vector<1x16xf32>
    %c0_40 = arith.constant 0 : index
    %c0_41 = arith.constant 0 : index
    %35 = vector.load %arg15[%c0_40, %c0_41] : memref<16x1xf32, #tpu.memory_space<vmem>>, vector<16x1xf32>
    %c0_42 = arith.constant 0 : index
    %c0_43 = arith.constant 0 : index
    %36 = vector.load %arg16[%c0_42, %c0_43] : memref<1x1xf32, #tpu.memory_space<vmem>>, vector<1x1xf32>
    %c0_44 = arith.constant 0 : index
    %c0_45 = arith.constant 0 : index
    %37 = vector.load %arg17[%c0_44, %c0_45] : memref<16x16xf32, #tpu.memory_space<vmem>>, vector<16x16xf32>
    %c0_46 = arith.constant 0 : index
    %c0_47 = arith.constant 0 : index
    %38 = vector.load %arg18[%c0_46, %c0_47] : memref<1x16xf32, #tpu.memory_space<vmem>>, vector<1x16xf32>
    %cst_48 = arith.constant dense<0.000000e+00> : vector<128x16xf32>
    %39 = tpu.matmul %26, %31, %cst_48 {dimension_numbers = #tpu.dot_dimension_numbers<[1], [0], [0], [1], [0, 0, 1, 1], [], []>} : vector<128x16xf32>, vector<16x16xf32>, vector<128x16xf32> -> vector<128x16xf32>
    %cst_49 = arith.constant dense<0.000000e+00> : vector<16x16xf32>
    %40 = tpu.matmul %29, %32, %cst_49 {dimension_numbers = #tpu.dot_dimension_numbers<[1], [0], [0], [1], [0, 0, 1, 1], [], []>} : vector<16x16xf32>, vector<16x16xf32>, vector<16x16xf32> -> vector<16x16xf32>
    %cst_50 = arith.constant dense<0.000000e+00> : vector<1x16xf32>
    %41 = tpu.matmul %34, %32, %cst_50 {dimension_numbers = #tpu.dot_dimension_numbers<[1], [0], [0], [1], [0, 0, 1, 1], [], []>} : vector<1x16xf32>, vector<16x16xf32>, vector<1x16xf32> -> vector<1x16xf32>
    %42 = arith.addf %41, %33 : vector<1x16xf32>
    %43 = vector.shape_cast %39 : vector<128x16xf32> to vector<16x8x16xf32>
    %44 = vector.shape_cast %40 : vector<16x16xf32> to vector<16x1x16xf32>
    %45 = vector.broadcast %30 : vector<16x8x1xf32> to vector<16x8x16xf32>
    %46 = vector.broadcast %44 : vector<16x1x16xf32> to vector<16x8x16xf32>
    %47 = arith.mulf %45, %46 : vector<16x8x16xf32>
    %48 = arith.addf %43, %47 : vector<16x8x16xf32>
    %49 = vector.shape_cast %42 : vector<1x16xf32> to vector<1x1x16xf32>
    %50 = vector.broadcast %49 : vector<1x1x16xf32> to vector<16x8x16xf32>
    %51 = arith.addf %48, %50 : vector<16x8x16xf32>
    %52 = vector.shape_cast %26 : vector<128x16xf32> to vector<16x8x16xf32>
    %cst_51 = arith.constant 0.000000e+00 : f32
    %53 = vector.broadcast %cst_51 : f32 to vector<16x8x16xf32>
    %54 = arith.cmpf ogt, %51, %53 : vector<16x8x16xf32>
    %cst_52 = arith.constant 2.000000e-01 : f32
    %55 = vector.broadcast %cst_52 : f32 to vector<16x8x16xf32>
    %56 = arith.mulf %55, %51 : vector<16x8x16xf32>
    %57 = arith.select %54, %51, %56 : vector<16x8x16xi1>, vector<16x8x16xf32>
    %58 = vector.shape_cast %57 : vector<16x8x16xf32> to vector<128x16xf32>
    %cst_53 = arith.constant dense<0.000000e+00> : vector<128x1xf32>
    %59 = tpu.matmul %58, %35, %cst_53 {dimension_numbers = #tpu.dot_dimension_numbers<[1], [0], [0], [1], [0, 0, 1, 1], [], []>} : vector<128x16xf32>, vector<16x1xf32>, vector<128x1xf32> -> vector<128x1xf32>
    %60 = vector.broadcast %36 : vector<1x1xf32> to vector<128x1xf32>
    %61 = arith.addf %59, %60 : vector<128x1xf32>
    %62 = math.exp %61 : vector<128x1xf32>
    %63 = vector.shape_cast %62 : vector<128x1xf32> to vector<16x8x1xf32>
    %64 = arith.mulf %63, %30 : vector<16x8x1xf32>
    %cst_54 = arith.constant dense<0.000000e+00> : vector<16x1xf32>
    %65 = vector.multi_reduction <add>, %64, %cst_54 [1] : vector<16x8x1xf32> to vector<16x1xf32>
    %66 = vector.shape_cast %65 : vector<16x1xf32> to vector<16x1x1xf32>
    %cst_55 = arith.constant 1.000000e-10 : f32
    %67 = vector.broadcast %cst_55 : f32 to vector<16x1x1xf32>
    %68 = arith.addf %66, %67 : vector<16x1x1xf32>
    %69 = vector.broadcast %68 : vector<16x1x1xf32> to vector<16x8x1xf32>
    %70 = arith.divf %64, %69 : vector<16x8x1xf32>
    %71 = vector.broadcast %70 : vector<16x8x1xf32> to vector<16x8x16xf32>
    %72 = arith.mulf %71, %52 : vector<16x8x16xf32>
    %cst_56 = arith.constant dense<0.000000e+00> : vector<16x16xf32>
    %73 = vector.multi_reduction <add>, %72, %cst_56 [1] : vector<16x8x16xf32> to vector<16x16xf32>
    %cst_57 = arith.constant dense<0.000000e+00> : vector<16x16xf32>
    %74 = tpu.matmul %73, %37, %cst_57 {dimension_numbers = #tpu.dot_dimension_numbers<[1], [0], [0], [1], [0, 0, 1, 1], [], []>} : vector<16x16xf32>, vector<16x16xf32>, vector<16x16xf32> -> vector<16x16xf32>
    %75 = vector.broadcast %38 : vector<1x16xf32> to vector<16x16xf32>
    %76 = arith.addf %74, %75 : vector<16x16xf32>
    %cst_58 = arith.constant 0.000000e+00 : f32
    %77 = vector.broadcast %cst_58 : f32 to vector<16x16xf32>
    %78 = arith.maximumf %76, %77 : vector<16x16xf32>
    %c0_59 = arith.constant 0 : index
    %c0_60 = arith.constant 0 : index
    %79 = vector.load %arg19[%c0_59, %c0_60] : memref<16x16xf32, #tpu.memory_space<vmem>>, vector<16x16xf32>
    tpu.vector_store %arg19[%c0_59, %c0_60], %78 {strides = array<i32>} : memref<16x16xf32, #tpu.memory_space<vmem>>, vector<16x16xf32>,
    return
  }
  func.func @transform_0(%arg0: i32) -> (i32, i32, i32) {
    %c0_i32 = arith.constant 0 : i32
    %c0_i32_0 = arith.constant 0 : i32
    %c0_i32_1 = arith.constant 0 : i32
    return %arg0, %c0_i32, %c0_i32_0 : i32, i32, i32
  }
  func.func @transform_1(%arg0: i32) -> (i32, i32, i32) {
    %c0_i32 = arith.constant 0 : i32
    %c0_i32_0 = arith.constant 0 : i32
    %c0_i32_1 = arith.constant 0 : i32
    return %arg0, %c0_i32, %c0_i32_0 : i32, i32, i32
  }
  func.func @transform_2(%arg0: i32) -> (i32, i32) {
    %c0_i32 = arith.constant 0 : i32
    %c0_i32_0 = arith.constant 0 : i32
    return %arg0, %c0_i32 : i32, i32
  }
  func.func @transform_3(%arg0: i32) -> (i32, i32, i32) {
    %c0_i32 = arith.constant 0 : i32
    %c0_i32_0 = arith.constant 0 : i32
    %c0_i32_1 = arith.constant 0 : i32
    return %arg0, %c0_i32, %c0_i32_0 : i32, i32, i32
  }
  func.func @transform_4(%arg0: i32) -> (i32, i32) {
    %c0_i32 = arith.constant 0 : i32
    %c0_i32_0 = arith.constant 0 : i32
    %c0_i32_1 = arith.constant 0 : i32
    return %c0_i32, %c0_i32_0 : i32, i32
  }
  func.func @transform_5(%arg0: i32) -> (i32, i32) {
    %c0_i32 = arith.constant 0 : i32
    %c0_i32_0 = arith.constant 0 : i32
    %c0_i32_1 = arith.constant 0 : i32
    return %c0_i32, %c0_i32_0 : i32, i32
  }
  func.func @transform_6(%arg0: i32) -> (i32, i32) {
    %c0_i32 = arith.constant 0 : i32
    %c0_i32_0 = arith.constant 0 : i32
    %c0_i32_1 = arith.constant 0 : i32
    return %c0_i32, %c0_i32_0 : i32, i32
  }
  func.func @transform_7(%arg0: i32) -> (i32, i32) {
    %c0_i32 = arith.constant 0 : i32
    %c0_i32_0 = arith.constant 0 : i32
    %c0_i32_1 = arith.constant 0 : i32
    return %c0_i32, %c0_i32_0 : i32, i32
  }
  func.func @transform_8(%arg0: i32) -> (i32, i32) {
    %c0_i32 = arith.constant 0 : i32
    %c0_i32_0 = arith.constant 0 : i32
    %c0_i32_1 = arith.constant 0 : i32
    return %c0_i32, %c0_i32_0 : i32, i32
  }
  func.func @transform_9(%arg0: i32) -> (i32, i32) {
    %c0_i32 = arith.constant 0 : i32
    %c0_i32_0 = arith.constant 0 : i32
    %c0_i32_1 = arith.constant 0 : i32
    return %c0_i32, %c0_i32_0 : i32, i32
  }
  func.func @transform_10(%arg0: i32) -> (i32, i32) {
    %c0_i32 = arith.constant 0 : i32
    %c0_i32_0 = arith.constant 0 : i32
    %c0_i32_1 = arith.constant 0 : i32
    return %c0_i32, %c0_i32_0 : i32, i32
  }
  func.func @transform_11(%arg0: i32) -> (i32, i32) {
    %c0_i32 = arith.constant 0 : i32
    %c0_i32_0 = arith.constant 0 : i32
    %c0_i32_1 = arith.constant 0 : i32
    return %c0_i32, %c0_i32_0 : i32, i32
  }
  func.func @transform_12(%arg0: i32) -> (i32, i32) {
    %c0_i32 = arith.constant 0 : i32
    %c0_i32_0 = arith.constant 0 : i32
    %c0_i32_1 = arith.constant 0 : i32
    return %c0_i32, %c0_i32_0 : i32, i32
  }
  func.func @transform_13(%arg0: i32) -> (i32, i32) {
    %c0_i32 = arith.constant 0 : i32
    %c0_i32_0 = arith.constant 0 : i32
    %c0_i32_1 = arith.constant 0 : i32
    return %c0_i32, %c0_i32_0 : i32, i32
  }
  func.func @transform_14(%arg0: i32) -> (i32, i32) {
    %c0_i32 = arith.constant 0 : i32
    %c0_i32_0 = arith.constant 0 : i32
    %c0_i32_1 = arith.constant 0 : i32
    return %c0_i32, %c0_i32_0 : i32, i32
  }
  func.func @transform_15(%arg0: i32) -> (i32, i32) {
    %c0_i32 = arith.constant 0 : i32
    %c0_i32_0 = arith.constant 0 : i32
    %c0_i32_1 = arith.constant 0 : i32
    return %c0_i32, %c0_i32_0 : i32, i32
  }
  func.func @transform_16(%arg0: i32) -> (i32, i32) {
    %c0_i32 = arith.constant 0 : i32
    %c0_i32_0 = arith.constant 0 : i32
    %c0_i32_1 = arith.constant 0 : i32
    return %c0_i32, %c0_i32_0 : i32, i32
  }
  func.func @transform_17(%arg0: i32) -> (i32, i32) {
    %c0_i32 = arith.constant 0 : i32
    %c0_i32_0 = arith.constant 0 : i32
    %c0_i32_1 = arith.constant 0 : i32
    return %c0_i32, %c0_i32_0 : i32, i32
  }
  func.func @transform_18(%arg0: i32) -> (i32, i32) {
    %c0_i32 = arith.constant 0 : i32
    %c0_i32_0 = arith.constant 0 : i32
    return %arg0, %c0_i32 : i32, i32
  }
}

module attributes {stable_mosaic.version = 11 : i64} {
  func.func @_attn_bcast_kernel(%arg0: i32, %arg1: memref<8x8x16xf32, #tpu.memory_space<vmem>>, %arg2: memref<8x16xf32, #tpu.memory_space<vmem>>, %arg3: memref<8x8x1xf32, #tpu.memory_space<vmem>>, %arg4: memref<16x16xf32, #tpu.memory_space<vmem>>, %arg5: memref<1x16xf32, #tpu.memory_space<vmem>>, %arg6: memref<16x16xf32, #tpu.memory_space<vmem>>, %arg7: memref<16x16xf32, #tpu.memory_space<vmem>>, %arg8: memref<1x16xf32, #tpu.memory_space<vmem>>, %arg9: memref<16x1xf32, #tpu.memory_space<vmem>>, %arg10: memref<1x1xf32, #tpu.memory_space<vmem>>, %arg11: memref<16x16xf32, #tpu.memory_space<vmem>>, %arg12: memref<1x16xf32, #tpu.memory_space<vmem>>, %arg13: memref<8x16xf32, #tpu.memory_space<vmem>>) attributes {dimension_semantics = [#tpu.dimension_semantics<parallel>], iteration_bounds = array<i64: 1>, scalar_prefetch = 0 : i64, scratch_operands = 0 : i64, tpu.core_type = #tpu.core_type<tc>, window_params = [{transform_indices = @transform_0, window_bounds = array<i64: 8, 8, 16>}, {transform_indices = @transform_1, window_bounds = array<i64: 8, 16>}, {transform_indices = @transform_2, window_bounds = array<i64: 8, 8, 1>}, {pipeline_mode = #tpu.pipeline_mode<synchronous>, transform_indices = @transform_3, window_bounds = array<i64: 16, 16>}, {pipeline_mode = #tpu.pipeline_mode<synchronous>, transform_indices = @transform_4, window_bounds = array<i64: 1, 16>}, {pipeline_mode = #tpu.pipeline_mode<synchronous>, transform_indices = @transform_5, window_bounds = array<i64: 16, 16>}, {pipeline_mode = #tpu.pipeline_mode<synchronous>, transform_indices = @transform_6, window_bounds = array<i64: 16, 16>}, {pipeline_mode = #tpu.pipeline_mode<synchronous>, transform_indices = @transform_7, window_bounds = array<i64: 1, 16>}, {pipeline_mode = #tpu.pipeline_mode<synchronous>, transform_indices = @transform_8, window_bounds = array<i64: 16, 1>}, {pipeline_mode = #tpu.pipeline_mode<synchronous>, transform_indices = @transform_9, window_bounds = array<i64: 1, 1>}, {pipeline_mode = #tpu.pipeline_mode<synchronous>, transform_indices = @transform_10, window_bounds = array<i64: 16, 16>}, {pipeline_mode = #tpu.pipeline_mode<synchronous>, transform_indices = @transform_11, window_bounds = array<i64: 1, 16>}, {transform_indices = @transform_12, window_bounds = array<i64: 8, 16>}]} {
    %c0 = arith.constant 0 : index
    %c0_0 = arith.constant 0 : index
    %c0_1 = arith.constant 0 : index
    %0 = vector.load %arg1[%c0, %c0_0, %c0_1] : memref<8x8x16xf32, #tpu.memory_space<vmem>>, vector<8x8x16xf32>
    %1 = vector.shape_cast %0 : vector<8x8x16xf32> to vector<64x16xf32>
    %c0_2 = arith.constant 0 : index
    %c0_3 = arith.constant 0 : index
    %2 = vector.load %arg4[%c0_2, %c0_3] : memref<16x16xf32, #tpu.memory_space<vmem>>, vector<16x16xf32>
    %cst = arith.constant dense<0.000000e+00> : vector<64x16xf32>
    %3 = tpu.matmul %1, %2, %cst {dimension_numbers = #tpu.dot_dimension_numbers<[1], [0], [0], [1], [0, 0, 1, 1], [], []>} : vector<64x16xf32>, vector<16x16xf32>, vector<64x16xf32> -> vector<64x16xf32>
    %c0_4 = arith.constant 0 : index
    %c0_5 = arith.constant 0 : index
    %4 = vector.load %arg5[%c0_4, %c0_5] : memref<1x16xf32, #tpu.memory_space<vmem>>, vector<1x16xf32>
    %5 = vector.broadcast %4 : vector<1x16xf32> to vector<64x16xf32>
    %6 = arith.addf %3, %5 : vector<64x16xf32>
    %c0_6 = arith.constant 0 : index
    %c0_7 = arith.constant 0 : index
    %7 = vector.load %arg2[%c0_6, %c0_7] : memref<8x16xf32, #tpu.memory_space<vmem>>, vector<8x16xf32>
    %c0_8 = arith.constant 0 : index
    %c0_9 = arith.constant 0 : index
    %8 = vector.load %arg4[%c0_8, %c0_9] : memref<16x16xf32, #tpu.memory_space<vmem>>, vector<16x16xf32>
    %cst_10 = arith.constant dense<0.000000e+00> : vector<8x16xf32>
    %9 = tpu.matmul %7, %8, %cst_10 {dimension_numbers = #tpu.dot_dimension_numbers<[1], [0], [0], [1], [0, 0, 1, 1], [], []>} : vector<8x16xf32>, vector<16x16xf32>, vector<8x16xf32> -> vector<8x16xf32>
    %c0_11 = arith.constant 0 : index
    %c0_12 = arith.constant 0 : index
    %c0_13 = arith.constant 0 : index
    %10 = vector.load %arg3[%c0_11, %c0_12, %c0_13] : memref<8x8x1xf32, #tpu.memory_space<vmem>>, vector<8x8x1xf32>
    %c0_14 = arith.constant 0 : index
    %c0_15 = arith.constant 0 : index
    %11 = vector.load %arg6[%c0_14, %c0_15] : memref<16x16xf32, #tpu.memory_space<vmem>>, vector<16x16xf32>
    %c0_16 = arith.constant 0 : index
    %c0_17 = arith.constant 0 : index
    %12 = vector.load %arg7[%c0_16, %c0_17] : memref<16x16xf32, #tpu.memory_space<vmem>>, vector<16x16xf32>
    %c0_18 = arith.constant 0 : index
    %c0_19 = arith.constant 0 : index
    %13 = vector.load %arg8[%c0_18, %c0_19] : memref<1x16xf32, #tpu.memory_space<vmem>>, vector<1x16xf32>
    %c0_20 = arith.constant 0 : index
    %c0_21 = arith.constant 0 : index
    %14 = vector.load %arg5[%c0_20, %c0_21] : memref<1x16xf32, #tpu.memory_space<vmem>>, vector<1x16xf32>
    %c0_22 = arith.constant 0 : index
    %c0_23 = arith.constant 0 : index
    %15 = vector.load %arg9[%c0_22, %c0_23] : memref<16x1xf32, #tpu.memory_space<vmem>>, vector<16x1xf32>
    %c0_24 = arith.constant 0 : index
    %c0_25 = arith.constant 0 : index
    %16 = vector.load %arg10[%c0_24, %c0_25] : memref<1x1xf32, #tpu.memory_space<vmem>>, vector<1x1xf32>
    %c0_26 = arith.constant 0 : index
    %c0_27 = arith.constant 0 : index
    %17 = vector.load %arg11[%c0_26, %c0_27] : memref<16x16xf32, #tpu.memory_space<vmem>>, vector<16x16xf32>
    %c0_28 = arith.constant 0 : index
    %c0_29 = arith.constant 0 : index
    %18 = vector.load %arg12[%c0_28, %c0_29] : memref<1x16xf32, #tpu.memory_space<vmem>>, vector<1x16xf32>
    %cst_30 = arith.constant dense<0.000000e+00> : vector<64x16xf32>
    %19 = tpu.matmul %6, %11, %cst_30 {dimension_numbers = #tpu.dot_dimension_numbers<[1], [0], [0], [1], [0, 0, 1, 1], [], []>} : vector<64x16xf32>, vector<16x16xf32>, vector<64x16xf32> -> vector<64x16xf32>
    %cst_31 = arith.constant dense<0.000000e+00> : vector<8x16xf32>
    %20 = tpu.matmul %9, %12, %cst_31 {dimension_numbers = #tpu.dot_dimension_numbers<[1], [0], [0], [1], [0, 0, 1, 1], [], []>} : vector<8x16xf32>, vector<16x16xf32>, vector<8x16xf32> -> vector<8x16xf32>
    %cst_32 = arith.constant dense<0.000000e+00> : vector<1x16xf32>
    %21 = tpu.matmul %14, %12, %cst_32 {dimension_numbers = #tpu.dot_dimension_numbers<[1], [0], [0], [1], [0, 0, 1, 1], [], []>} : vector<1x16xf32>, vector<16x16xf32>, vector<1x16xf32> -> vector<1x16xf32>
    %22 = arith.addf %21, %13 : vector<1x16xf32>
    %23 = vector.shape_cast %19 : vector<64x16xf32> to vector<8x8x16xf32>
    %24 = vector.shape_cast %20 : vector<8x16xf32> to vector<8x1x16xf32>
    %25 = vector.broadcast %10 : vector<8x8x1xf32> to vector<8x8x16xf32>
    %26 = vector.broadcast %24 : vector<8x1x16xf32> to vector<8x8x16xf32>
    %27 = arith.mulf %25, %26 : vector<8x8x16xf32>
    %28 = arith.addf %23, %27 : vector<8x8x16xf32>
    %29 = vector.shape_cast %22 : vector<1x16xf32> to vector<1x1x16xf32>
    %30 = vector.broadcast %29 : vector<1x1x16xf32> to vector<8x8x16xf32>
    %31 = arith.addf %28, %30 : vector<8x8x16xf32>
    %32 = vector.shape_cast %6 : vector<64x16xf32> to vector<8x8x16xf32>
    %cst_33 = arith.constant 0.000000e+00 : f32
    %33 = vector.broadcast %cst_33 : f32 to vector<8x8x16xf32>
    %34 = arith.cmpf ogt, %31, %33 : vector<8x8x16xf32>
    %cst_34 = arith.constant 2.000000e-01 : f32
    %35 = vector.broadcast %cst_34 : f32 to vector<8x8x16xf32>
    %36 = arith.mulf %35, %31 : vector<8x8x16xf32>
    %37 = arith.select %34, %31, %36 : vector<8x8x16xi1>, vector<8x8x16xf32>
    %38 = vector.shape_cast %37 : vector<8x8x16xf32> to vector<64x16xf32>
    %cst_35 = arith.constant dense<0.000000e+00> : vector<64x1xf32>
    %39 = tpu.matmul %38, %15, %cst_35 {dimension_numbers = #tpu.dot_dimension_numbers<[1], [0], [0], [1], [0, 0, 1, 1], [], []>} : vector<64x16xf32>, vector<16x1xf32>, vector<64x1xf32> -> vector<64x1xf32>
    %40 = vector.broadcast %16 : vector<1x1xf32> to vector<64x1xf32>
    %41 = arith.addf %39, %40 : vector<64x1xf32>
    %42 = math.exp %41 : vector<64x1xf32>
    %43 = vector.shape_cast %42 : vector<64x1xf32> to vector<8x8x1xf32>
    %44 = arith.mulf %43, %10 : vector<8x8x1xf32>
    %cst_36 = arith.constant dense<0.000000e+00> : vector<8x1xf32>
    %45 = vector.multi_reduction <add>, %44, %cst_36 [1] : vector<8x8x1xf32> to vector<8x1xf32>
    %46 = vector.shape_cast %45 : vector<8x1xf32> to vector<8x1x1xf32>
    %cst_37 = arith.constant 1.000000e-10 : f32
    %47 = vector.broadcast %cst_37 : f32 to vector<8x1x1xf32>
    %48 = arith.addf %46, %47 : vector<8x1x1xf32>
    %49 = vector.broadcast %48 : vector<8x1x1xf32> to vector<8x8x1xf32>
    %50 = arith.divf %44, %49 : vector<8x8x1xf32>
    %51 = vector.broadcast %50 : vector<8x8x1xf32> to vector<8x8x16xf32>
    %52 = arith.mulf %51, %32 : vector<8x8x16xf32>
    %cst_38 = arith.constant dense<0.000000e+00> : vector<8x16xf32>
    %53 = vector.multi_reduction <add>, %52, %cst_38 [1] : vector<8x8x16xf32> to vector<8x16xf32>
    %cst_39 = arith.constant dense<0.000000e+00> : vector<8x16xf32>
    %54 = tpu.matmul %53, %17, %cst_39 {dimension_numbers = #tpu.dot_dimension_numbers<[1], [0], [0], [1], [0, 0, 1, 1], [], []>} : vector<8x16xf32>, vector<16x16xf32>, vector<8x16xf32> -> vector<8x16xf32>
    %55 = vector.broadcast %18 : vector<1x16xf32> to vector<8x16xf32>
    %56 = arith.addf %54, %55 : vector<8x16xf32>
    %cst_40 = arith.constant 0.000000e+00 : f32
    %57 = vector.broadcast %cst_40 : f32 to vector<8x16xf32>
    %58 = arith.maximumf %56, %57 : vector<8x16xf32>
    %c0_41 = arith.constant 0 : index
    %c0_42 = arith.constant 0 : index
    %59 = vector.load %arg13[%c0_41, %c0_42] : memref<8x16xf32, #tpu.memory_space<vmem>>, vector<8x16xf32>
    tpu.vector_store %arg13[%c0_41, %c0_42], %58 {strides = array<i32>} : memref<8x16xf32, #tpu.memory_space<vmem>>, vector<8x16xf32>,
    return
  }
  func.func @transform_0(%arg0: i32) -> (i32, i32, i32) {
    %c0_i32 = arith.constant 0 : i32
    %c0_i32_0 = arith.constant 0 : i32
    %c0_i32_1 = arith.constant 0 : i32
    return %arg0, %c0_i32, %c0_i32_0 : i32, i32, i32
  }
  func.func @transform_1(%arg0: i32) -> (i32, i32) {
    %c0_i32 = arith.constant 0 : i32
    %c0_i32_0 = arith.constant 0 : i32
    return %arg0, %c0_i32 : i32, i32
  }
  func.func @transform_2(%arg0: i32) -> (i32, i32, i32) {
    %c0_i32 = arith.constant 0 : i32
    %c0_i32_0 = arith.constant 0 : i32
    %c0_i32_1 = arith.constant 0 : i32
    return %arg0, %c0_i32, %c0_i32_0 : i32, i32, i32
  }
  func.func @transform_3(%arg0: i32) -> (i32, i32) {
    %c0_i32 = arith.constant 0 : i32
    %c0_i32_0 = arith.constant 0 : i32
    %c0_i32_1 = arith.constant 0 : i32
    return %c0_i32, %c0_i32_0 : i32, i32
  }
  func.func @transform_4(%arg0: i32) -> (i32, i32) {
    %c0_i32 = arith.constant 0 : i32
    %c0_i32_0 = arith.constant 0 : i32
    %c0_i32_1 = arith.constant 0 : i32
    return %c0_i32, %c0_i32_0 : i32, i32
  }
  func.func @transform_5(%arg0: i32) -> (i32, i32) {
    %c0_i32 = arith.constant 0 : i32
    %c0_i32_0 = arith.constant 0 : i32
    %c0_i32_1 = arith.constant 0 : i32
    return %c0_i32, %c0_i32_0 : i32, i32
  }
  func.func @transform_6(%arg0: i32) -> (i32, i32) {
    %c0_i32 = arith.constant 0 : i32
    %c0_i32_0 = arith.constant 0 : i32
    %c0_i32_1 = arith.constant 0 : i32
    return %c0_i32, %c0_i32_0 : i32, i32
  }
  func.func @transform_7(%arg0: i32) -> (i32, i32) {
    %c0_i32 = arith.constant 0 : i32
    %c0_i32_0 = arith.constant 0 : i32
    %c0_i32_1 = arith.constant 0 : i32
    return %c0_i32, %c0_i32_0 : i32, i32
  }
  func.func @transform_8(%arg0: i32) -> (i32, i32) {
    %c0_i32 = arith.constant 0 : i32
    %c0_i32_0 = arith.constant 0 : i32
    %c0_i32_1 = arith.constant 0 : i32
    return %c0_i32, %c0_i32_0 : i32, i32
  }
  func.func @transform_9(%arg0: i32) -> (i32, i32) {
    %c0_i32 = arith.constant 0 : i32
    %c0_i32_0 = arith.constant 0 : i32
    %c0_i32_1 = arith.constant 0 : i32
    return %c0_i32, %c0_i32_0 : i32, i32
  }
  func.func @transform_10(%arg0: i32) -> (i32, i32) {
    %c0_i32 = arith.constant 0 : i32
    %c0_i32_0 = arith.constant 0 : i32
    %c0_i32_1 = arith.constant 0 : i32
    return %c0_i32, %c0_i32_0 : i32, i32
  }
  func.func @transform_11(%arg0: i32) -> (i32, i32) {
    %c0_i32 = arith.constant 0 : i32
    %c0_i32_0 = arith.constant 0 : i32
    %c0_i32_1 = arith.constant 0 : i32
    return %c0_i32, %c0_i32_0 : i32, i32
  }
  func.func @transform_12(%arg0: i32) -> (i32, i32) {
    %c0_i32 = arith.constant 0 : i32
    %c0_i32_0 = arith.constant 0 : i32
    return %arg0, %c0_i32 : i32, i32
  }
}

module attributes {stable_mosaic.version = 11 : i64} {
  func.func @_attn_full_kernel(%arg0: i32, %arg1: memref<8x8x16xf32, #tpu.memory_space<vmem>>, %arg2: memref<8x8x16xf32, #tpu.memory_space<vmem>>, %arg3: memref<8x8x1xf32, #tpu.memory_space<vmem>>, %arg4: memref<16x16xf32, #tpu.memory_space<vmem>>, %arg5: memref<1x16xf32, #tpu.memory_space<vmem>>, %arg6: memref<16x16xf32, #tpu.memory_space<vmem>>, %arg7: memref<16x16xf32, #tpu.memory_space<vmem>>, %arg8: memref<1x16xf32, #tpu.memory_space<vmem>>, %arg9: memref<16x1xf32, #tpu.memory_space<vmem>>, %arg10: memref<1x1xf32, #tpu.memory_space<vmem>>, %arg11: memref<16x16xf32, #tpu.memory_space<vmem>>, %arg12: memref<1x16xf32, #tpu.memory_space<vmem>>, %arg13: memref<8x16xf32, #tpu.memory_space<vmem>>) attributes {dimension_semantics = [#tpu.dimension_semantics<parallel>], iteration_bounds = array<i64: 1>, scalar_prefetch = 0 : i64, scratch_operands = 0 : i64, tpu.core_type = #tpu.core_type<tc>, window_params = [{transform_indices = @transform_0, window_bounds = array<i64: 8, 8, 16>}, {transform_indices = @transform_1, window_bounds = array<i64: 8, 8, 16>}, {transform_indices = @transform_2, window_bounds = array<i64: 8, 8, 1>}, {pipeline_mode = #tpu.pipeline_mode<synchronous>, transform_indices = @transform_3, window_bounds = array<i64: 16, 16>}, {pipeline_mode = #tpu.pipeline_mode<synchronous>, transform_indices = @transform_4, window_bounds = array<i64: 1, 16>}, {pipeline_mode = #tpu.pipeline_mode<synchronous>, transform_indices = @transform_5, window_bounds = array<i64: 16, 16>}, {pipeline_mode = #tpu.pipeline_mode<synchronous>, transform_indices = @transform_6, window_bounds = array<i64: 16, 16>}, {pipeline_mode = #tpu.pipeline_mode<synchronous>, transform_indices = @transform_7, window_bounds = array<i64: 1, 16>}, {pipeline_mode = #tpu.pipeline_mode<synchronous>, transform_indices = @transform_8, window_bounds = array<i64: 16, 1>}, {pipeline_mode = #tpu.pipeline_mode<synchronous>, transform_indices = @transform_9, window_bounds = array<i64: 1, 1>}, {pipeline_mode = #tpu.pipeline_mode<synchronous>, transform_indices = @transform_10, window_bounds = array<i64: 16, 16>}, {pipeline_mode = #tpu.pipeline_mode<synchronous>, transform_indices = @transform_11, window_bounds = array<i64: 1, 16>}, {transform_indices = @transform_12, window_bounds = array<i64: 8, 16>}]} {
    %c0 = arith.constant 0 : index
    %c0_0 = arith.constant 0 : index
    %c0_1 = arith.constant 0 : index
    %0 = vector.load %arg1[%c0, %c0_0, %c0_1] : memref<8x8x16xf32, #tpu.memory_space<vmem>>, vector<8x8x16xf32>
    %1 = vector.shape_cast %0 : vector<8x8x16xf32> to vector<64x16xf32>
    %c0_2 = arith.constant 0 : index
    %c0_3 = arith.constant 0 : index
    %c0_4 = arith.constant 0 : index
    %2 = vector.load %arg2[%c0_2, %c0_3, %c0_4] : memref<8x8x16xf32, #tpu.memory_space<vmem>>, vector<8x8x16xf32>
    %3 = vector.shape_cast %2 : vector<8x8x16xf32> to vector<64x16xf32>
    %c0_5 = arith.constant 0 : index
    %c0_6 = arith.constant 0 : index
    %4 = vector.load %arg4[%c0_5, %c0_6] : memref<16x16xf32, #tpu.memory_space<vmem>>, vector<16x16xf32>
    %cst = arith.constant dense<0.000000e+00> : vector<64x16xf32>
    %5 = tpu.matmul %1, %4, %cst {dimension_numbers = #tpu.dot_dimension_numbers<[1], [0], [0], [1], [0, 0, 1, 1], [], []>} : vector<64x16xf32>, vector<16x16xf32>, vector<64x16xf32> -> vector<64x16xf32>
    %c0_7 = arith.constant 0 : index
    %c0_8 = arith.constant 0 : index
    %6 = vector.load %arg5[%c0_7, %c0_8] : memref<1x16xf32, #tpu.memory_space<vmem>>, vector<1x16xf32>
    %7 = vector.broadcast %6 : vector<1x16xf32> to vector<64x16xf32>
    %8 = arith.addf %5, %7 : vector<64x16xf32>
    %c0_9 = arith.constant 0 : index
    %c0_10 = arith.constant 0 : index
    %9 = vector.load %arg4[%c0_9, %c0_10] : memref<16x16xf32, #tpu.memory_space<vmem>>, vector<16x16xf32>
    %cst_11 = arith.constant dense<0.000000e+00> : vector<64x16xf32>
    %10 = tpu.matmul %3, %9, %cst_11 {dimension_numbers = #tpu.dot_dimension_numbers<[1], [0], [0], [1], [0, 0, 1, 1], [], []>} : vector<64x16xf32>, vector<16x16xf32>, vector<64x16xf32> -> vector<64x16xf32>
    %c0_12 = arith.constant 0 : index
    %c0_13 = arith.constant 0 : index
    %11 = vector.load %arg5[%c0_12, %c0_13] : memref<1x16xf32, #tpu.memory_space<vmem>>, vector<1x16xf32>
    %12 = vector.broadcast %11 : vector<1x16xf32> to vector<64x16xf32>
    %13 = arith.addf %10, %12 : vector<64x16xf32>
    %c0_14 = arith.constant 0 : index
    %c0_15 = arith.constant 0 : index
    %14 = vector.load %arg6[%c0_14, %c0_15] : memref<16x16xf32, #tpu.memory_space<vmem>>, vector<16x16xf32>
    %cst_16 = arith.constant dense<0.000000e+00> : vector<64x16xf32>
    %15 = tpu.matmul %8, %14, %cst_16 {dimension_numbers = #tpu.dot_dimension_numbers<[1], [0], [0], [1], [0, 0, 1, 1], [], []>} : vector<64x16xf32>, vector<16x16xf32>, vector<64x16xf32> -> vector<64x16xf32>
    %c0_17 = arith.constant 0 : index
    %c0_18 = arith.constant 0 : index
    %16 = vector.load %arg7[%c0_17, %c0_18] : memref<16x16xf32, #tpu.memory_space<vmem>>, vector<16x16xf32>
    %cst_19 = arith.constant dense<0.000000e+00> : vector<64x16xf32>
    %17 = tpu.matmul %13, %16, %cst_19 {dimension_numbers = #tpu.dot_dimension_numbers<[1], [0], [0], [1], [0, 0, 1, 1], [], []>} : vector<64x16xf32>, vector<16x16xf32>, vector<64x16xf32> -> vector<64x16xf32>
    %18 = arith.addf %15, %17 : vector<64x16xf32>
    %c0_20 = arith.constant 0 : index
    %c0_21 = arith.constant 0 : index
    %19 = vector.load %arg8[%c0_20, %c0_21] : memref<1x16xf32, #tpu.memory_space<vmem>>, vector<1x16xf32>
    %20 = vector.broadcast %19 : vector<1x16xf32> to vector<64x16xf32>
    %21 = arith.addf %18, %20 : vector<64x16xf32>
    %22 = vector.shape_cast %21 : vector<64x16xf32> to vector<8x8x16xf32>
    %23 = vector.shape_cast %8 : vector<64x16xf32> to vector<8x8x16xf32>
    %c0_22 = arith.constant 0 : index
    %c0_23 = arith.constant 0 : index
    %c0_24 = arith.constant 0 : index
    %24 = vector.load %arg3[%c0_22, %c0_23, %c0_24] : memref<8x8x1xf32, #tpu.memory_space<vmem>>, vector<8x8x1xf32>
    %c0_25 = arith.constant 0 : index
    %c0_26 = arith.constant 0 : index
    %25 = vector.load %arg9[%c0_25, %c0_26] : memref<16x1xf32, #tpu.memory_space<vmem>>, vector<16x1xf32>
    %c0_27 = arith.constant 0 : index
    %c0_28 = arith.constant 0 : index
    %26 = vector.load %arg10[%c0_27, %c0_28] : memref<1x1xf32, #tpu.memory_space<vmem>>, vector<1x1xf32>
    %c0_29 = arith.constant 0 : index
    %c0_30 = arith.constant 0 : index
    %27 = vector.load %arg11[%c0_29, %c0_30] : memref<16x16xf32, #tpu.memory_space<vmem>>, vector<16x16xf32>
    %c0_31 = arith.constant 0 : index
    %c0_32 = arith.constant 0 : index
    %28 = vector.load %arg12[%c0_31, %c0_32] : memref<1x16xf32, #tpu.memory_space<vmem>>, vector<1x16xf32>
    %cst_33 = arith.constant 0.000000e+00 : f32
    %29 = vector.broadcast %cst_33 : f32 to vector<8x8x16xf32>
    %30 = arith.cmpf ogt, %22, %29 : vector<8x8x16xf32>
    %cst_34 = arith.constant 2.000000e-01 : f32
    %31 = vector.broadcast %cst_34 : f32 to vector<8x8x16xf32>
    %32 = arith.mulf %31, %22 : vector<8x8x16xf32>
    %33 = arith.select %30, %22, %32 : vector<8x8x16xi1>, vector<8x8x16xf32>
    %34 = vector.shape_cast %33 : vector<8x8x16xf32> to vector<64x16xf32>
    %cst_35 = arith.constant dense<0.000000e+00> : vector<64x1xf32>
    %35 = tpu.matmul %34, %25, %cst_35 {dimension_numbers = #tpu.dot_dimension_numbers<[1], [0], [0], [1], [0, 0, 1, 1], [], []>} : vector<64x16xf32>, vector<16x1xf32>, vector<64x1xf32> -> vector<64x1xf32>
    %36 = vector.broadcast %26 : vector<1x1xf32> to vector<64x1xf32>
    %37 = arith.addf %35, %36 : vector<64x1xf32>
    %38 = math.exp %37 : vector<64x1xf32>
    %39 = vector.shape_cast %38 : vector<64x1xf32> to vector<8x8x1xf32>
    %40 = arith.mulf %39, %24 : vector<8x8x1xf32>
    %cst_36 = arith.constant dense<0.000000e+00> : vector<8x1xf32>
    %41 = vector.multi_reduction <add>, %40, %cst_36 [1] : vector<8x8x1xf32> to vector<8x1xf32>
    %42 = vector.shape_cast %41 : vector<8x1xf32> to vector<8x1x1xf32>
    %cst_37 = arith.constant 1.000000e-10 : f32
    %43 = vector.broadcast %cst_37 : f32 to vector<8x1x1xf32>
    %44 = arith.addf %42, %43 : vector<8x1x1xf32>
    %45 = vector.broadcast %44 : vector<8x1x1xf32> to vector<8x8x1xf32>
    %46 = arith.divf %40, %45 : vector<8x8x1xf32>
    %47 = vector.broadcast %46 : vector<8x8x1xf32> to vector<8x8x16xf32>
    %48 = arith.mulf %47, %23 : vector<8x8x16xf32>
    %cst_38 = arith.constant dense<0.000000e+00> : vector<8x16xf32>
    %49 = vector.multi_reduction <add>, %48, %cst_38 [1] : vector<8x8x16xf32> to vector<8x16xf32>
    %cst_39 = arith.constant dense<0.000000e+00> : vector<8x16xf32>
    %50 = tpu.matmul %49, %27, %cst_39 {dimension_numbers = #tpu.dot_dimension_numbers<[1], [0], [0], [1], [0, 0, 1, 1], [], []>} : vector<8x16xf32>, vector<16x16xf32>, vector<8x16xf32> -> vector<8x16xf32>
    %51 = vector.broadcast %28 : vector<1x16xf32> to vector<8x16xf32>
    %52 = arith.addf %50, %51 : vector<8x16xf32>
    %cst_40 = arith.constant 0.000000e+00 : f32
    %53 = vector.broadcast %cst_40 : f32 to vector<8x16xf32>
    %54 = arith.maximumf %52, %53 : vector<8x16xf32>
    %c0_41 = arith.constant 0 : index
    %c0_42 = arith.constant 0 : index
    %55 = vector.load %arg13[%c0_41, %c0_42] : memref<8x16xf32, #tpu.memory_space<vmem>>, vector<8x16xf32>
    tpu.vector_store %arg13[%c0_41, %c0_42], %54 {strides = array<i32>} : memref<8x16xf32, #tpu.memory_space<vmem>>, vector<8x16xf32>,
    return
  }
  func.func @transform_0(%arg0: i32) -> (i32, i32, i32) {
    %c0_i32 = arith.constant 0 : i32
    %c0_i32_0 = arith.constant 0 : i32
    %c0_i32_1 = arith.constant 0 : i32
    return %arg0, %c0_i32, %c0_i32_0 : i32, i32, i32
  }
  func.func @transform_1(%arg0: i32) -> (i32, i32, i32) {
    %c0_i32 = arith.constant 0 : i32
    %c0_i32_0 = arith.constant 0 : i32
    %c0_i32_1 = arith.constant 0 : i32
    return %arg0, %c0_i32, %c0_i32_0 : i32, i32, i32
  }
  func.func @transform_2(%arg0: i32) -> (i32, i32, i32) {
    %c0_i32 = arith.constant 0 : i32
    %c0_i32_0 = arith.constant 0 : i32
    %c0_i32_1 = arith.constant 0 : i32
    return %arg0, %c0_i32, %c0_i32_0 : i32, i32, i32
  }
  func.func @transform_3(%arg0: i32) -> (i32, i32) {
    %c0_i32 = arith.constant 0 : i32
    %c0_i32_0 = arith.constant 0 : i32
    %c0_i32_1 = arith.constant 0 : i32
    return %c0_i32, %c0_i32_0 : i32, i32
  }
  func.func @transform_4(%arg0: i32) -> (i32, i32) {
    %c0_i32 = arith.constant 0 : i32
    %c0_i32_0 = arith.constant 0 : i32
    %c0_i32_1 = arith.constant 0 : i32
    return %c0_i32, %c0_i32_0 : i32, i32
  }
  func.func @transform_5(%arg0: i32) -> (i32, i32) {
    %c0_i32 = arith.constant 0 : i32
    %c0_i32_0 = arith.constant 0 : i32
    %c0_i32_1 = arith.constant 0 : i32
    return %c0_i32, %c0_i32_0 : i32, i32
  }
  func.func @transform_6(%arg0: i32) -> (i32, i32) {
    %c0_i32 = arith.constant 0 : i32
    %c0_i32_0 = arith.constant 0 : i32
    %c0_i32_1 = arith.constant 0 : i32
    return %c0_i32, %c0_i32_0 : i32, i32
  }
  func.func @transform_7(%arg0: i32) -> (i32, i32) {
    %c0_i32 = arith.constant 0 : i32
    %c0_i32_0 = arith.constant 0 : i32
    %c0_i32_1 = arith.constant 0 : i32
    return %c0_i32, %c0_i32_0 : i32, i32
  }
  func.func @transform_8(%arg0: i32) -> (i32, i32) {
    %c0_i32 = arith.constant 0 : i32
    %c0_i32_0 = arith.constant 0 : i32
    %c0_i32_1 = arith.constant 0 : i32
    return %c0_i32, %c0_i32_0 : i32, i32
  }
  func.func @transform_9(%arg0: i32) -> (i32, i32) {
    %c0_i32 = arith.constant 0 : i32
    %c0_i32_0 = arith.constant 0 : i32
    %c0_i32_1 = arith.constant 0 : i32
    return %c0_i32, %c0_i32_0 : i32, i32
  }
  func.func @transform_10(%arg0: i32) -> (i32, i32) {
    %c0_i32 = arith.constant 0 : i32
    %c0_i32_0 = arith.constant 0 : i32
    %c0_i32_1 = arith.constant 0 : i32
    return %c0_i32, %c0_i32_0 : i32, i32
  }
  func.func @transform_11(%arg0: i32) -> (i32, i32) {
    %c0_i32 = arith.constant 0 : i32
    %c0_i32_0 = arith.constant 0 : i32
    %c0_i32_1 = arith.constant 0 : i32
    return %c0_i32, %c0_i32_0 : i32, i32
  }
  func.func @transform_12(%arg0: i32) -> (i32, i32) {
    %c0_i32 = arith.constant 0 : i32
    %c0_i32_0 = arith.constant 0 : i32
    return %arg0, %c0_i32 : i32, i32
  }
}

module attributes {stable_mosaic.version = 11 : i64} {
  func.func @_item_agg_kernel(%arg0: i32, %arg1: memref<8x8x16xf32, #tpu.memory_space<vmem>>, %arg2: memref<8x8x16xf32, #tpu.memory_space<vmem>>, %arg3: memref<8x16xf32, #tpu.memory_space<vmem>>, %arg4: memref<8x8x1xf32, #tpu.memory_space<vmem>>, %arg5: memref<16x16xf32, #tpu.memory_space<vmem>>, %arg6: memref<16x16xf32, #tpu.memory_space<vmem>>, %arg7: memref<1x16xf32, #tpu.memory_space<vmem>>, %arg8: memref<16x16xf32, #tpu.memory_space<vmem>>, %arg9: memref<1x16xf32, #tpu.memory_space<vmem>>, %arg10: memref<16x16xf32, #tpu.memory_space<vmem>>, %arg11: memref<1x16xf32, #tpu.memory_space<vmem>>, %arg12: memref<16x16xf32, #tpu.memory_space<vmem>>, %arg13: memref<16x16xf32, #tpu.memory_space<vmem>>, %arg14: memref<1x16xf32, #tpu.memory_space<vmem>>, %arg15: memref<16x1xf32, #tpu.memory_space<vmem>>, %arg16: memref<1x1xf32, #tpu.memory_space<vmem>>, %arg17: memref<16x16xf32, #tpu.memory_space<vmem>>, %arg18: memref<1x16xf32, #tpu.memory_space<vmem>>, %arg19: memref<8x16xf32, #tpu.memory_space<vmem>>) attributes {dimension_semantics = [#tpu.dimension_semantics<parallel>], iteration_bounds = array<i64: 1>, scalar_prefetch = 0 : i64, scratch_operands = 0 : i64, tpu.core_type = #tpu.core_type<tc>, window_params = [{transform_indices = @transform_0, window_bounds = array<i64: 8, 8, 16>}, {transform_indices = @transform_1, window_bounds = array<i64: 8, 8, 16>}, {transform_indices = @transform_2, window_bounds = array<i64: 8, 16>}, {transform_indices = @transform_3, window_bounds = array<i64: 8, 8, 1>}, {pipeline_mode = #tpu.pipeline_mode<synchronous>, transform_indices = @transform_4, window_bounds = array<i64: 16, 16>}, {pipeline_mode = #tpu.pipeline_mode<synchronous>, transform_indices = @transform_5, window_bounds = array<i64: 16, 16>}, {pipeline_mode = #tpu.pipeline_mode<synchronous>, transform_indices = @transform_6, window_bounds = array<i64: 1, 16>}, {pipeline_mode = #tpu.pipeline_mode<synchronous>, transform_indices = @transform_7, window_bounds = array<i64: 16, 16>}, {pipeline_mode = #tpu.pipeline_mode<synchronous>, transform_indices = @transform_8, window_bounds = array<i64: 1, 16>}, {pipeline_mode = #tpu.pipeline_mode<synchronous>, transform_indices = @transform_9, window_bounds = array<i64: 16, 16>}, {pipeline_mode = #tpu.pipeline_mode<synchronous>, transform_indices = @transform_10, window_bounds = array<i64: 1, 16>}, {pipeline_mode = #tpu.pipeline_mode<synchronous>, transform_indices = @transform_11, window_bounds = array<i64: 16, 16>}, {pipeline_mode = #tpu.pipeline_mode<synchronous>, transform_indices = @transform_12, window_bounds = array<i64: 16, 16>}, {pipeline_mode = #tpu.pipeline_mode<synchronous>, transform_indices = @transform_13, window_bounds = array<i64: 1, 16>}, {pipeline_mode = #tpu.pipeline_mode<synchronous>, transform_indices = @transform_14, window_bounds = array<i64: 16, 1>}, {pipeline_mode = #tpu.pipeline_mode<synchronous>, transform_indices = @transform_15, window_bounds = array<i64: 1, 1>}, {pipeline_mode = #tpu.pipeline_mode<synchronous>, transform_indices = @transform_16, window_bounds = array<i64: 16, 16>}, {pipeline_mode = #tpu.pipeline_mode<synchronous>, transform_indices = @transform_17, window_bounds = array<i64: 1, 16>}, {transform_indices = @transform_18, window_bounds = array<i64: 8, 16>}]} {
    %c0 = arith.constant 0 : index
    %c0_0 = arith.constant 0 : index
    %c0_1 = arith.constant 0 : index
    %0 = vector.load %arg1[%c0, %c0_0, %c0_1] : memref<8x8x16xf32, #tpu.memory_space<vmem>>, vector<8x8x16xf32>
    %1 = vector.shape_cast %0 : vector<8x8x16xf32> to vector<64x16xf32>
    %c0_2 = arith.constant 0 : index
    %c0_3 = arith.constant 0 : index
    %c0_4 = arith.constant 0 : index
    %2 = vector.load %arg2[%c0_2, %c0_3, %c0_4] : memref<8x8x16xf32, #tpu.memory_space<vmem>>, vector<8x8x16xf32>
    %3 = vector.shape_cast %2 : vector<8x8x16xf32> to vector<64x16xf32>
    %c0_5 = arith.constant 0 : index
    %c0_6 = arith.constant 0 : index
    %4 = vector.load %arg5[%c0_5, %c0_6] : memref<16x16xf32, #tpu.memory_space<vmem>>, vector<16x16xf32>
    %cst = arith.constant dense<0.000000e+00> : vector<64x16xf32>
    %5 = tpu.matmul %1, %4, %cst {dimension_numbers = #tpu.dot_dimension_numbers<[1], [0], [0], [1], [0, 0, 1, 1], [], []>} : vector<64x16xf32>, vector<16x16xf32>, vector<64x16xf32> -> vector<64x16xf32>
    %c0_7 = arith.constant 0 : index
    %c0_8 = arith.constant 0 : index
    %6 = vector.load %arg6[%c0_7, %c0_8] : memref<16x16xf32, #tpu.memory_space<vmem>>, vector<16x16xf32>
    %cst_9 = arith.constant dense<0.000000e+00> : vector<64x16xf32>
    %7 = tpu.matmul %3, %6, %cst_9 {dimension_numbers = #tpu.dot_dimension_numbers<[1], [0], [0], [1], [0, 0, 1, 1], [], []>} : vector<64x16xf32>, vector<16x16xf32>, vector<64x16xf32> -> vector<64x16xf32>
    %8 = arith.addf %5, %7 : vector<64x16xf32>
    %c0_10 = arith.constant 0 : index
    %c0_11 = arith.constant 0 : index
    %9 = vector.load %arg7[%c0_10, %c0_11] : memref<1x16xf32, #tpu.memory_space<vmem>>, vector<1x16xf32>
    %10 = vector.broadcast %9 : vector<1x16xf32> to vector<64x16xf32>
    %11 = arith.addf %8, %10 : vector<64x16xf32>
    %cst_12 = arith.constant 0.000000e+00 : f32
    %12 = vector.broadcast %cst_12 : f32 to vector<64x16xf32>
    %13 = arith.cmpf ogt, %11, %12 : vector<64x16xf32>
    %cst_13 = arith.constant 2.000000e-01 : f32
    %14 = vector.broadcast %cst_13 : f32 to vector<64x16xf32>
    %15 = arith.mulf %14, %11 : vector<64x16xf32>
    %16 = arith.select %13, %11, %15 : vector<64x16xi1>, vector<64x16xf32>
    %c0_14 = arith.constant 0 : index
    %c0_15 = arith.constant 0 : index
    %17 = vector.load %arg8[%c0_14, %c0_15] : memref<16x16xf32, #tpu.memory_space<vmem>>, vector<16x16xf32>
    %cst_16 = arith.constant dense<0.000000e+00> : vector<64x16xf32>
    %18 = tpu.matmul %16, %17, %cst_16 {dimension_numbers = #tpu.dot_dimension_numbers<[1], [0], [0], [1], [0, 0, 1, 1], [], []>} : vector<64x16xf32>, vector<16x16xf32>, vector<64x16xf32> -> vector<64x16xf32>
    %c0_17 = arith.constant 0 : index
    %c0_18 = arith.constant 0 : index
    %19 = vector.load %arg9[%c0_17, %c0_18] : memref<1x16xf32, #tpu.memory_space<vmem>>, vector<1x16xf32>
    %20 = vector.broadcast %19 : vector<1x16xf32> to vector<64x16xf32>
    %21 = arith.addf %18, %20 : vector<64x16xf32>
    %c0_19 = arith.constant 0 : index
    %c0_20 = arith.constant 0 : index
    %22 = vector.load %arg10[%c0_19, %c0_20] : memref<16x16xf32, #tpu.memory_space<vmem>>, vector<16x16xf32>
    %cst_21 = arith.constant dense<0.000000e+00> : vector<64x16xf32>
    %23 = tpu.matmul %21, %22, %cst_21 {dimension_numbers = #tpu.dot_dimension_numbers<[1], [0], [0], [1], [0, 0, 1, 1], [], []>} : vector<64x16xf32>, vector<16x16xf32>, vector<64x16xf32> -> vector<64x16xf32>
    %c0_22 = arith.constant 0 : index
    %c0_23 = arith.constant 0 : index
    %24 = vector.load %arg11[%c0_22, %c0_23] : memref<1x16xf32, #tpu.memory_space<vmem>>, vector<1x16xf32>
    %25 = vector.broadcast %24 : vector<1x16xf32> to vector<64x16xf32>
    %26 = arith.addf %23, %25 : vector<64x16xf32>
    %c0_24 = arith.constant 0 : index
    %c0_25 = arith.constant 0 : index
    %27 = vector.load %arg3[%c0_24, %c0_25] : memref<8x16xf32, #tpu.memory_space<vmem>>, vector<8x16xf32>
    %c0_26 = arith.constant 0 : index
    %c0_27 = arith.constant 0 : index
    %28 = vector.load %arg10[%c0_26, %c0_27] : memref<16x16xf32, #tpu.memory_space<vmem>>, vector<16x16xf32>
    %cst_28 = arith.constant dense<0.000000e+00> : vector<8x16xf32>
    %29 = tpu.matmul %27, %28, %cst_28 {dimension_numbers = #tpu.dot_dimension_numbers<[1], [0], [0], [1], [0, 0, 1, 1], [], []>} : vector<8x16xf32>, vector<16x16xf32>, vector<8x16xf32> -> vector<8x16xf32>
    %c0_29 = arith.constant 0 : index
    %c0_30 = arith.constant 0 : index
    %c0_31 = arith.constant 0 : index
    %30 = vector.load %arg4[%c0_29, %c0_30, %c0_31] : memref<8x8x1xf32, #tpu.memory_space<vmem>>, vector<8x8x1xf32>
    %c0_32 = arith.constant 0 : index
    %c0_33 = arith.constant 0 : index
    %31 = vector.load %arg12[%c0_32, %c0_33] : memref<16x16xf32, #tpu.memory_space<vmem>>, vector<16x16xf32>
    %c0_34 = arith.constant 0 : index
    %c0_35 = arith.constant 0 : index
    %32 = vector.load %arg13[%c0_34, %c0_35] : memref<16x16xf32, #tpu.memory_space<vmem>>, vector<16x16xf32>
    %c0_36 = arith.constant 0 : index
    %c0_37 = arith.constant 0 : index
    %33 = vector.load %arg14[%c0_36, %c0_37] : memref<1x16xf32, #tpu.memory_space<vmem>>, vector<1x16xf32>
    %c0_38 = arith.constant 0 : index
    %c0_39 = arith.constant 0 : index
    %34 = vector.load %arg11[%c0_38, %c0_39] : memref<1x16xf32, #tpu.memory_space<vmem>>, vector<1x16xf32>
    %c0_40 = arith.constant 0 : index
    %c0_41 = arith.constant 0 : index
    %35 = vector.load %arg15[%c0_40, %c0_41] : memref<16x1xf32, #tpu.memory_space<vmem>>, vector<16x1xf32>
    %c0_42 = arith.constant 0 : index
    %c0_43 = arith.constant 0 : index
    %36 = vector.load %arg16[%c0_42, %c0_43] : memref<1x1xf32, #tpu.memory_space<vmem>>, vector<1x1xf32>
    %c0_44 = arith.constant 0 : index
    %c0_45 = arith.constant 0 : index
    %37 = vector.load %arg17[%c0_44, %c0_45] : memref<16x16xf32, #tpu.memory_space<vmem>>, vector<16x16xf32>
    %c0_46 = arith.constant 0 : index
    %c0_47 = arith.constant 0 : index
    %38 = vector.load %arg18[%c0_46, %c0_47] : memref<1x16xf32, #tpu.memory_space<vmem>>, vector<1x16xf32>
    %cst_48 = arith.constant dense<0.000000e+00> : vector<64x16xf32>
    %39 = tpu.matmul %26, %31, %cst_48 {dimension_numbers = #tpu.dot_dimension_numbers<[1], [0], [0], [1], [0, 0, 1, 1], [], []>} : vector<64x16xf32>, vector<16x16xf32>, vector<64x16xf32> -> vector<64x16xf32>
    %cst_49 = arith.constant dense<0.000000e+00> : vector<8x16xf32>
    %40 = tpu.matmul %29, %32, %cst_49 {dimension_numbers = #tpu.dot_dimension_numbers<[1], [0], [0], [1], [0, 0, 1, 1], [], []>} : vector<8x16xf32>, vector<16x16xf32>, vector<8x16xf32> -> vector<8x16xf32>
    %cst_50 = arith.constant dense<0.000000e+00> : vector<1x16xf32>
    %41 = tpu.matmul %34, %32, %cst_50 {dimension_numbers = #tpu.dot_dimension_numbers<[1], [0], [0], [1], [0, 0, 1, 1], [], []>} : vector<1x16xf32>, vector<16x16xf32>, vector<1x16xf32> -> vector<1x16xf32>
    %42 = arith.addf %41, %33 : vector<1x16xf32>
    %43 = vector.shape_cast %39 : vector<64x16xf32> to vector<8x8x16xf32>
    %44 = vector.shape_cast %40 : vector<8x16xf32> to vector<8x1x16xf32>
    %45 = vector.broadcast %30 : vector<8x8x1xf32> to vector<8x8x16xf32>
    %46 = vector.broadcast %44 : vector<8x1x16xf32> to vector<8x8x16xf32>
    %47 = arith.mulf %45, %46 : vector<8x8x16xf32>
    %48 = arith.addf %43, %47 : vector<8x8x16xf32>
    %49 = vector.shape_cast %42 : vector<1x16xf32> to vector<1x1x16xf32>
    %50 = vector.broadcast %49 : vector<1x1x16xf32> to vector<8x8x16xf32>
    %51 = arith.addf %48, %50 : vector<8x8x16xf32>
    %52 = vector.shape_cast %26 : vector<64x16xf32> to vector<8x8x16xf32>
    %cst_51 = arith.constant 0.000000e+00 : f32
    %53 = vector.broadcast %cst_51 : f32 to vector<8x8x16xf32>
    %54 = arith.cmpf ogt, %51, %53 : vector<8x8x16xf32>
    %cst_52 = arith.constant 2.000000e-01 : f32
    %55 = vector.broadcast %cst_52 : f32 to vector<8x8x16xf32>
    %56 = arith.mulf %55, %51 : vector<8x8x16xf32>
    %57 = arith.select %54, %51, %56 : vector<8x8x16xi1>, vector<8x8x16xf32>
    %58 = vector.shape_cast %57 : vector<8x8x16xf32> to vector<64x16xf32>
    %cst_53 = arith.constant dense<0.000000e+00> : vector<64x1xf32>
    %59 = tpu.matmul %58, %35, %cst_53 {dimension_numbers = #tpu.dot_dimension_numbers<[1], [0], [0], [1], [0, 0, 1, 1], [], []>} : vector<64x16xf32>, vector<16x1xf32>, vector<64x1xf32> -> vector<64x1xf32>
    %60 = vector.broadcast %36 : vector<1x1xf32> to vector<64x1xf32>
    %61 = arith.addf %59, %60 : vector<64x1xf32>
    %62 = math.exp %61 : vector<64x1xf32>
    %63 = vector.shape_cast %62 : vector<64x1xf32> to vector<8x8x1xf32>
    %64 = arith.mulf %63, %30 : vector<8x8x1xf32>
    %cst_54 = arith.constant dense<0.000000e+00> : vector<8x1xf32>
    %65 = vector.multi_reduction <add>, %64, %cst_54 [1] : vector<8x8x1xf32> to vector<8x1xf32>
    %66 = vector.shape_cast %65 : vector<8x1xf32> to vector<8x1x1xf32>
    %cst_55 = arith.constant 1.000000e-10 : f32
    %67 = vector.broadcast %cst_55 : f32 to vector<8x1x1xf32>
    %68 = arith.addf %66, %67 : vector<8x1x1xf32>
    %69 = vector.broadcast %68 : vector<8x1x1xf32> to vector<8x8x1xf32>
    %70 = arith.divf %64, %69 : vector<8x8x1xf32>
    %71 = vector.broadcast %70 : vector<8x8x1xf32> to vector<8x8x16xf32>
    %72 = arith.mulf %71, %52 : vector<8x8x16xf32>
    %cst_56 = arith.constant dense<0.000000e+00> : vector<8x16xf32>
    %73 = vector.multi_reduction <add>, %72, %cst_56 [1] : vector<8x8x16xf32> to vector<8x16xf32>
    %cst_57 = arith.constant dense<0.000000e+00> : vector<8x16xf32>
    %74 = tpu.matmul %73, %37, %cst_57 {dimension_numbers = #tpu.dot_dimension_numbers<[1], [0], [0], [1], [0, 0, 1, 1], [], []>} : vector<8x16xf32>, vector<16x16xf32>, vector<8x16xf32> -> vector<8x16xf32>
    %75 = vector.broadcast %38 : vector<1x16xf32> to vector<8x16xf32>
    %76 = arith.addf %74, %75 : vector<8x16xf32>
    %cst_58 = arith.constant 0.000000e+00 : f32
    %77 = vector.broadcast %cst_58 : f32 to vector<8x16xf32>
    %78 = arith.maximumf %76, %77 : vector<8x16xf32>
    %c0_59 = arith.constant 0 : index
    %c0_60 = arith.constant 0 : index
    %79 = vector.load %arg19[%c0_59, %c0_60] : memref<8x16xf32, #tpu.memory_space<vmem>>, vector<8x16xf32>
    tpu.vector_store %arg19[%c0_59, %c0_60], %78 {strides = array<i32>} : memref<8x16xf32, #tpu.memory_space<vmem>>, vector<8x16xf32>,
    return
  }
  func.func @transform_0(%arg0: i32) -> (i32, i32, i32) {
    %c0_i32 = arith.constant 0 : i32
    %c0_i32_0 = arith.constant 0 : i32
    %c0_i32_1 = arith.constant 0 : i32
    return %arg0, %c0_i32, %c0_i32_0 : i32, i32, i32
  }
  func.func @transform_1(%arg0: i32) -> (i32, i32, i32) {
    %c0_i32 = arith.constant 0 : i32
    %c0_i32_0 = arith.constant 0 : i32
    %c0_i32_1 = arith.constant 0 : i32
    return %arg0, %c0_i32, %c0_i32_0 : i32, i32, i32
  }
  func.func @transform_2(%arg0: i32) -> (i32, i32) {
    %c0_i32 = arith.constant 0 : i32
    %c0_i32_0 = arith.constant 0 : i32
    return %arg0, %c0_i32 : i32, i32
  }
  func.func @transform_3(%arg0: i32) -> (i32, i32, i32) {
    %c0_i32 = arith.constant 0 : i32
    %c0_i32_0 = arith.constant 0 : i32
    %c0_i32_1 = arith.constant 0 : i32
    return %arg0, %c0_i32, %c0_i32_0 : i32, i32, i32
  }
  func.func @transform_4(%arg0: i32) -> (i32, i32) {
    %c0_i32 = arith.constant 0 : i32
    %c0_i32_0 = arith.constant 0 : i32
    %c0_i32_1 = arith.constant 0 : i32
    return %c0_i32, %c0_i32_0 : i32, i32
  }
  func.func @transform_5(%arg0: i32) -> (i32, i32) {
    %c0_i32 = arith.constant 0 : i32
    %c0_i32_0 = arith.constant 0 : i32
    %c0_i32_1 = arith.constant 0 : i32
    return %c0_i32, %c0_i32_0 : i32, i32
  }
  func.func @transform_6(%arg0: i32) -> (i32, i32) {
    %c0_i32 = arith.constant 0 : i32
    %c0_i32_0 = arith.constant 0 : i32
    %c0_i32_1 = arith.constant 0 : i32
    return %c0_i32, %c0_i32_0 : i32, i32
  }
  func.func @transform_7(%arg0: i32) -> (i32, i32) {
    %c0_i32 = arith.constant 0 : i32
    %c0_i32_0 = arith.constant 0 : i32
    %c0_i32_1 = arith.constant 0 : i32
    return %c0_i32, %c0_i32_0 : i32, i32
  }
  func.func @transform_8(%arg0: i32) -> (i32, i32) {
    %c0_i32 = arith.constant 0 : i32
    %c0_i32_0 = arith.constant 0 : i32
    %c0_i32_1 = arith.constant 0 : i32
    return %c0_i32, %c0_i32_0 : i32, i32
  }
  func.func @transform_9(%arg0: i32) -> (i32, i32) {
    %c0_i32 = arith.constant 0 : i32
    %c0_i32_0 = arith.constant 0 : i32
    %c0_i32_1 = arith.constant 0 : i32
    return %c0_i32, %c0_i32_0 : i32, i32
  }
  func.func @transform_10(%arg0: i32) -> (i32, i32) {
    %c0_i32 = arith.constant 0 : i32
    %c0_i32_0 = arith.constant 0 : i32
    %c0_i32_1 = arith.constant 0 : i32
    return %c0_i32, %c0_i32_0 : i32, i32
  }
  func.func @transform_11(%arg0: i32) -> (i32, i32) {
    %c0_i32 = arith.constant 0 : i32
    %c0_i32_0 = arith.constant 0 : i32
    %c0_i32_1 = arith.constant 0 : i32
    return %c0_i32, %c0_i32_0 : i32, i32
  }
  func.func @transform_12(%arg0: i32) -> (i32, i32) {
    %c0_i32 = arith.constant 0 : i32
    %c0_i32_0 = arith.constant 0 : i32
    %c0_i32_1 = arith.constant 0 : i32
    return %c0_i32, %c0_i32_0 : i32, i32
  }
  func.func @transform_13(%arg0: i32) -> (i32, i32) {
    %c0_i32 = arith.constant 0 : i32
    %c0_i32_0 = arith.constant 0 : i32
    %c0_i32_1 = arith.constant 0 : i32
    return %c0_i32, %c0_i32_0 : i32, i32
  }
  func.func @transform_14(%arg0: i32) -> (i32, i32) {
    %c0_i32 = arith.constant 0 : i32
    %c0_i32_0 = arith.constant 0 : i32
    %c0_i32_1 = arith.constant 0 : i32
    return %c0_i32, %c0_i32_0 : i32, i32
  }
  func.func @transform_15(%arg0: i32) -> (i32, i32) {
    %c0_i32 = arith.constant 0 : i32
    %c0_i32_0 = arith.constant 0 : i32
    %c0_i32_1 = arith.constant 0 : i32
    return %c0_i32, %c0_i32_0 : i32, i32
  }
  func.func @transform_16(%arg0: i32) -> (i32, i32) {
    %c0_i32 = arith.constant 0 : i32
    %c0_i32_0 = arith.constant 0 : i32
    %c0_i32_1 = arith.constant 0 : i32
    return %c0_i32, %c0_i32_0 : i32, i32
  }
  func.func @transform_17(%arg0: i32) -> (i32, i32) {
    %c0_i32 = arith.constant 0 : i32
    %c0_i32_0 = arith.constant 0 : i32
    %c0_i32_1 = arith.constant 0 : i32
    return %c0_i32, %c0_i32_0 : i32, i32
  }
  func.func @transform_18(%arg0: i32) -> (i32, i32) {
    %c0_i32 = arith.constant 0 : i32
    %c0_i32_0 = arith.constant 0 : i32
    return %arg0, %c0_i32 : i32, i32
  }
}

module attributes {stable_mosaic.version = 11 : i64} {
  func.func @_combine_kernel(%arg0: i32, %arg1: memref<8x80xf32, #tpu.memory_space<vmem>>, %arg2: memref<80x48xf32, #tpu.memory_space<vmem>>, %arg3: memref<1x48xf32, #tpu.memory_space<vmem>>, %arg4: memref<48x16xf32, #tpu.memory_space<vmem>>, %arg5: memref<1x16xf32, #tpu.memory_space<vmem>>, %arg6: memref<8x16xf32, #tpu.memory_space<vmem>>) attributes {dimension_semantics = [#tpu.dimension_semantics<parallel>], iteration_bounds = array<i64: 1>, scalar_prefetch = 0 : i64, scratch_operands = 0 : i64, tpu.core_type = #tpu.core_type<tc>, window_params = [{transform_indices = @transform_0, window_bounds = array<i64: 8, 80>}, {pipeline_mode = #tpu.pipeline_mode<synchronous>, transform_indices = @transform_1, window_bounds = array<i64: 80, 48>}, {pipeline_mode = #tpu.pipeline_mode<synchronous>, transform_indices = @transform_2, window_bounds = array<i64: 1, 48>}, {pipeline_mode = #tpu.pipeline_mode<synchronous>, transform_indices = @transform_3, window_bounds = array<i64: 48, 16>}, {pipeline_mode = #tpu.pipeline_mode<synchronous>, transform_indices = @transform_4, window_bounds = array<i64: 1, 16>}, {transform_indices = @transform_5, window_bounds = array<i64: 8, 16>}]} {
    %c0 = arith.constant 0 : index
    %c0_0 = arith.constant 0 : index
    %0 = vector.load %arg1[%c0, %c0_0] : memref<8x80xf32, #tpu.memory_space<vmem>>, vector<8x80xf32>
    %c0_1 = arith.constant 0 : index
    %c0_2 = arith.constant 0 : index
    %1 = vector.load %arg2[%c0_1, %c0_2] : memref<80x48xf32, #tpu.memory_space<vmem>>, vector<80x48xf32>
    %cst = arith.constant dense<0.000000e+00> : vector<8x48xf32>
    %2 = tpu.matmul %0, %1, %cst {dimension_numbers = #tpu.dot_dimension_numbers<[1], [0], [0], [1], [0, 0, 1, 1], [], []>} : vector<8x80xf32>, vector<80x48xf32>, vector<8x48xf32> -> vector<8x48xf32>
    %c0_3 = arith.constant 0 : index
    %c0_4 = arith.constant 0 : index
    %3 = vector.load %arg3[%c0_3, %c0_4] : memref<1x48xf32, #tpu.memory_space<vmem>>, vector<1x48xf32>
    %4 = vector.broadcast %3 : vector<1x48xf32> to vector<8x48xf32>
    %5 = arith.addf %2, %4 : vector<8x48xf32>
    %cst_5 = arith.constant 0.000000e+00 : f32
    %6 = vector.broadcast %cst_5 : f32 to vector<8x48xf32>
    %7 = arith.maximumf %5, %6 : vector<8x48xf32>
    %c0_6 = arith.constant 0 : index
    %c0_7 = arith.constant 0 : index
    %8 = vector.load %arg4[%c0_6, %c0_7] : memref<48x16xf32, #tpu.memory_space<vmem>>, vector<48x16xf32>
    %cst_8 = arith.constant dense<0.000000e+00> : vector<8x16xf32>
    %9 = tpu.matmul %7, %8, %cst_8 {dimension_numbers = #tpu.dot_dimension_numbers<[1], [0], [0], [1], [0, 0, 1, 1], [], []>} : vector<8x48xf32>, vector<48x16xf32>, vector<8x16xf32> -> vector<8x16xf32>
    %c0_9 = arith.constant 0 : index
    %c0_10 = arith.constant 0 : index
    %10 = vector.load %arg5[%c0_9, %c0_10] : memref<1x16xf32, #tpu.memory_space<vmem>>, vector<1x16xf32>
    %11 = vector.broadcast %10 : vector<1x16xf32> to vector<8x16xf32>
    %12 = arith.addf %9, %11 : vector<8x16xf32>
    %cst_11 = arith.constant 0.000000e+00 : f32
    %13 = vector.broadcast %cst_11 : f32 to vector<8x16xf32>
    %14 = arith.maximumf %12, %13 : vector<8x16xf32>
    %c0_12 = arith.constant 0 : index
    %c0_13 = arith.constant 0 : index
    %15 = vector.load %arg6[%c0_12, %c0_13] : memref<8x16xf32, #tpu.memory_space<vmem>>, vector<8x16xf32>
    tpu.vector_store %arg6[%c0_12, %c0_13], %14 {strides = array<i32>} : memref<8x16xf32, #tpu.memory_space<vmem>>, vector<8x16xf32>,
    return
  }
  func.func @transform_0(%arg0: i32) -> (i32, i32) {
    %c0_i32 = arith.constant 0 : i32
    %c0_i32_0 = arith.constant 0 : i32
    return %arg0, %c0_i32 : i32, i32
  }
  func.func @transform_1(%arg0: i32) -> (i32, i32) {
    %c0_i32 = arith.constant 0 : i32
    %c0_i32_0 = arith.constant 0 : i32
    %c0_i32_1 = arith.constant 0 : i32
    return %c0_i32, %c0_i32_0 : i32, i32
  }
  func.func @transform_2(%arg0: i32) -> (i32, i32) {
    %c0_i32 = arith.constant 0 : i32
    %c0_i32_0 = arith.constant 0 : i32
    %c0_i32_1 = arith.constant 0 : i32
    return %c0_i32, %c0_i32_0 : i32, i32
  }
  func.func @transform_3(%arg0: i32) -> (i32, i32) {
    %c0_i32 = arith.constant 0 : i32
    %c0_i32_0 = arith.constant 0 : i32
    %c0_i32_1 = arith.constant 0 : i32
    return %c0_i32, %c0_i32_0 : i32, i32
  }
  func.func @transform_4(%arg0: i32) -> (i32, i32) {
    %c0_i32 = arith.constant 0 : i32
    %c0_i32_0 = arith.constant 0 : i32
    %c0_i32_1 = arith.constant 0 : i32
    return %c0_i32, %c0_i32_0 : i32, i32
  }
  func.func @transform_5(%arg0: i32) -> (i32, i32) {
    %c0_i32 = arith.constant 0 : i32
    %c0_i32_0 = arith.constant 0 : i32
    return %arg0, %c0_i32 : i32, i32
  }
}

</mosaic_0001>

<llo_original>
// kernel: user_model_forward.12
$region0: #{user_model_forward.12}
  #allocation0 [shape = 'u32[]', space=smem, size = 0x4, offset = 0x4, fixed_abs, tag = 'smem constant byte address 0x4 - core index']
  #allocation1 [shape = 'u32[72,128]{1,0:T(1,128)}', space=vmem, size = 0x9000, scoped, tag = 'internal scratch']
  #allocation2 [shape = 'f32[1,1]{1,0:T(1,128)S(1)}', space=vmem, size = 0x200, scoped, tag = 'scoped memory for user_model_forward.12']
  %s0 = inlined_call_operand.vmem [shape: f32[8,8,16], index: 0, kind: input, shape index: {}]
  %s1 = inlined_call_operand.vmem [shape: f32[8,8,16], index: 1, kind: input, shape index: {}]
  %s2 = inlined_call_operand.vmem [shape: f32[8,8,1], index: 2, kind: input, shape index: {}]
  %s3 = inlined_call_operand.vmem [shape: f32[16,16], index: 3, kind: input, shape index: {}]
  %s4 = inlined_call_operand.vmem [shape: f32[1,16], index: 4, kind: input, shape index: {}]
  %s5 = inlined_call_operand.vmem [shape: f32[16,16], index: 5, kind: input, shape index: {}]
  %s6 = inlined_call_operand.vmem [shape: f32[16,16], index: 6, kind: input, shape index: {}]
  %s7 = inlined_call_operand.vmem [shape: f32[1,16], index: 7, kind: input, shape index: {}]
  %s8 = inlined_call_operand.vmem [shape: f32[16,1], index: 8, kind: input, shape index: {}]
  %s9 = inlined_call_operand.<no memory space> [shape: f32[1,1], index: 9, kind: input, shape index: {}]
  %s10 = inlined_call_operand.vmem [shape: f32[16,16], index: 10, kind: input, shape index: {}]
  %s11 = inlined_call_operand.vmem [shape: f32[1,16], index: 11, kind: input, shape index: {}]
  %s12 = inlined_call_operand.vmem [shape: f32[8,16], index: 12, kind: output, shape index: {}]
  %s13 = sld [smem:[#allocation0]]
  $region58: #{user_model_forward.12} parent=0
    _
  %s15 = ssub.s32 1, %s13
  %s16 = scalar_select 0, %s15, %s13
  %v17 = vstv %s9
  %18 = vst [vmem:[#allocation2] sm:$0x1] %v17
  // Predicated region
  $region2: #{user_model_forward.12} parent=0 // pred_check
    _
  $region3: #{user_model_forward.12} parent=0 // pred_check_branch
    %20 = sbr.rel (0) target = $region5
  $region4: #{user_model_forward.12} parent=0 // pred_region
    _
  $region5: #{user_model_forward.12} parent=0 // pred_fallthru
    _
  // Predicated region
  $region6: #{user_model_forward.12} parent=0 // pred_check
    _
  $region7: #{user_model_forward.12} parent=0 // pred_check_branch
    %22 = sbr.rel (0) target = $region9
  $region8: #{user_model_forward.12} parent=0 // pred_region
    _
  $region9: #{user_model_forward.12} parent=0 // pred_fallthru
    _
  // Predicated region
  $region10: #{user_model_forward.12} parent=0 // pred_check
    _
  $region11: #{user_model_forward.12} parent=0 // pred_check_branch
    %24 = sbr.rel (0) target = $region13
  $region12: #{user_model_forward.12} parent=0 // pred_region
    _
  $region13: #{user_model_forward.12} parent=0 // pred_fallthru
    _
  // Predicated region
  $region14: #{user_model_forward.12} parent=0 // pred_check
    _
  $region15: #{user_model_forward.12} parent=0 // pred_check_branch
    %26 = sbr.rel (0) target = $region17
  $region16: #{user_model_forward.12} parent=0 // pred_region
    _
  $region17: #{user_model_forward.12} parent=0 // pred_fallthru
    _
  // Predicated region
  $region18: #{user_model_forward.12} parent=0 // pred_check
    _
  $region19: #{user_model_forward.12} parent=0 // pred_check_branch
    %28 = sbr.rel (0) target = $region21
  $region20: #{user_model_forward.12} parent=0 // pred_region
    _
  $region21: #{user_model_forward.12} parent=0 // pred_fallthru
    _
  // Predicated region
  $region22: #{user_model_forward.12} parent=0 // pred_check
    _
  $region23: #{user_model_forward.12} parent=0 // pred_check_branch
    %30 = sbr.rel (0) target = $region25
  $region24: #{user_model_forward.12} parent=0 // pred_region
    _
  $region25: #{user_model_forward.12} parent=0 // pred_fallthru
    _
  // Predicated region
  $region26: #{user_model_forward.12} parent=0 // pred_check
    _
  $region27: #{user_model_forward.12} parent=0 // pred_check_branch
    %32 = sbr.rel (0) target = $region29
  $region28: #{user_model_forward.12} parent=0 // pred_region
    _
  $region29: #{user_model_forward.12} parent=0 // pred_fallthru
    _
  // Predicated region
  $region30: #{user_model_forward.12} parent=0 // pred_check
    _
  $region31: #{user_model_forward.12} parent=0 // pred_check_branch
    %34 = sbr.rel (0) target = $region33
  $region32: #{user_model_forward.12} parent=0 // pred_region
    _
  $region33: #{user_model_forward.12} parent=0 // pred_fallthru
    _
  // Predicated region
  $region34: #{user_model_forward.12} parent=0 // pred_check
    _
  $region35: #{user_model_forward.12} parent=0 // pred_check_branch
    %36 = sbr.rel (0) target = $region37
  $region36: #{user_model_forward.12} parent=0 // pred_region
    _
  $region37: #{user_model_forward.12} parent=0 // pred_fallthru
    _
  // Predicated region
  $region38: #{user_model_forward.12} parent=0 // pred_check
    _
  $region39: #{user_model_forward.12} parent=0 // pred_check_branch
    %38 = sbr.rel (0) target = $region41
  $region40: #{user_model_forward.12} parent=0 // pred_region
    _
  $region41: #{user_model_forward.12} parent=0 // pred_fallthru
    _
  // Predicated region
  $region42: #{user_model_forward.12} parent=0 // pred_check
    _
  $region43: #{user_model_forward.12} parent=0 // pred_check_branch
    %40 = sbr.rel (0) target = $region45
  $region44: #{user_model_forward.12} parent=0 // pred_region
    _
  $region45: #{user_model_forward.12} parent=0 // pred_fallthru
    _
  // Predicated region
  $region46: #{user_model_forward.12} parent=0 // pred_check
    _
  $region47: #{user_model_forward.12} parent=0 // pred_check_branch
    %42 = sbr.rel (0) target = $region49
  $region48: #{user_model_forward.12} parent=0 // pred_region
    _
  $region49: #{user_model_forward.12} parent=0 // pred_fallthru
    _
  %v43 = vld [vmem:[%s0] sm:$0xff]
  %v44 = vld [vmem:[%s0 + $0x8] sm:$0xff]
  %v45 = vld [vmem:[%s0 + $0x10] sm:$0xff]
  %v46 = vld [vmem:[%s0 + $0x18] sm:$0xff]
  %v47 = vld [vmem:[%s0 + $0x20] sm:$0xff]
  %v48 = vld [vmem:[%s0 + $0x28] sm:$0xff]
  %v49 = vld [vmem:[%s0 + $0x30] sm:$0xff]
  %v50 = vld [vmem:[%s0 + $0x38] sm:$0xff]
  %v51 = vld [vmem:[%s1] sm:$0xff]
  %v52 = vld [vmem:[%s1 + $0x8] sm:$0xff]
  %v53 = vld [vmem:[%s1 + $0x10] sm:$0xff]
  %v54 = vld [vmem:[%s1 + $0x18] sm:$0xff]
  %v55 = vld [vmem:[%s1 + $0x20] sm:$0xff]
  %v56 = vld [vmem:[%s1 + $0x28] sm:$0xff]
  %v57 = vld [vmem:[%s1 + $0x30] sm:$0xff]
  %v58 = vld [vmem:[%s1 + $0x38] sm:$0xff]
  %v59 = vld [vmem:[%s3] sm:$0xff]
  %v60 = vld [vmem:[%s3 + $0x8] sm:$0xff]
  %v61 = vld [vmem:[%s4] sm:$0x1]
  %v63 = vperm.slane %v61, 0
  %vm65 = vcmask 130048
  %v67 = vsel %vm65, %v43, 0
  %v70 = vsel %vm65, %v44, 0
  %v73 = vsel %vm65, %v45, 0
  %v76 = vsel %vm65, %v46, 0
  %v79 = vsel %vm65, %v47, 0
  %v82 = vsel %vm65, %v48, 0
  %v85 = vsel %vm65, %v49, 0
  %v88 = vsel %vm65, %v50, 0
  %90 = vmatpush.msra.mxu0 0.0
  %91 = vmatpush.msra.mxu0 0.0
  %92 = vmatpush.msra.mxu0 0.0
  %93 = vmatpush.msra.mxu0 0.0
  %94 = vmatpush.msra.mxu0 0.0
  %95 = vmatpush.msra.mxu0 0.0
  %96 = vmatpush.msra.mxu0 0.0
  %97 = vmatpush.msra.mxu0 0.0
  %98 = vmatpush.msra.mxu0 0.0
  %99 = vmatpush.msra.mxu0 0.0
  %100 = vmatpush.msra.mxu0 0.0
  %101 = vmatpush.msra.mxu0 0.0
  %102 = vmatpush.msra.mxu0 0.0
  %103 = vmatpush.msra.mxu0 0.0
  %104 = vmatpush.msra.mxu0 %v60
  %105 = vmatpush.msra.mxu0 %v59
  %106 = vmatmul.f32.gmra.mxu0 %v67
  %v107 = vpop.f32.mrf.mxu0
  %v108 = vadd.f32 %v63, %v107
  %109 = vmatmul.f32.gmra.mxu0 %v70
  %v110 = vpop.f32.mrf.mxu0
  %v111 = vadd.f32 %v63, %v110
  %112 = vmatmul.f32.gmra.mxu0 %v73
  %v113 = vpop.f32.mrf.mxu0
  %v114 = vadd.f32 %v63, %v113
  %115 = vmatmul.f32.gmra.mxu0 %v76
  %v116 = vpop.f32.mrf.mxu0
  %v117 = vadd.f32 %v63, %v116
  %118 = vmatmul.f32.gmra.mxu0 %v79
  %v119 = vpop.f32.mrf.mxu0
  %v120 = vadd.f32 %v63, %v119
  %121 = vmatmul.f32.gmra.mxu0 %v82
  %v122 = vpop.f32.mrf.mxu0
  %v123 = vadd.f32 %v63, %v122
  %124 = vmatmul.f32.gmra.mxu0 %v85
  %v125 = vpop.f32.mrf.mxu0
  %v126 = vadd.f32 %v63, %v125
  %127 = vmatmul.f32.gmra.mxu0 %v88
  %v128 = vpop.f32.mrf.mxu0
  %v129 = vadd.f32 %v63, %v128
  %130 = vdwg.mxu0
  %v132 = vsel %vm65, %v51, 0
  %v135 = vsel %vm65, %v52, 0
  %v138 = vsel %vm65, %v53, 0
  %v141 = vsel %vm65, %v54, 0
  %v144 = vsel %vm65, %v55, 0
  %v147 = vsel %vm65, %v56, 0
  %v150 = vsel %vm65, %v57, 0
  %v153 = vsel %vm65, %v58, 0
  %155 = vmatpush.msra.mxu0 0.0
  %156 = vmatpush.msra.mxu0 0.0
  %157 = vmatpush.msra.mxu0 0.0
  %158 = vmatpush.msra.mxu0 0.0
  %159 = vmatpush.msra.mxu0 0.0
  %160 = vmatpush.msra.mxu0 0.0
  %161 = vmatpush.msra.mxu0 0.0
  %162 = vmatpush.msra.mxu0 0.0
  %163 = vmatpush.msra.mxu0 0.0
  %164 = vmatpush.msra.mxu0 0.0
  %165 = vmatpush.msra.mxu0 0.0
  %166 = vmatpush.msra.mxu0 0.0
  %167 = vmatpush.msra.mxu0 0.0
  %168 = vmatpush.msra.mxu0 0.0
  %169 = vmatpush.msra.mxu0 %v60
  %170 = vmatpush.msra.mxu0 %v59
  %171 = vmatmul.f32.gmra.mxu0 %v132
  %v172 = vpop.f32.mrf.mxu0
  %v173 = vadd.f32 %v63, %v172
  %174 = vmatmul.f32.gmra.mxu0 %v135
  %v175 = vpop.f32.mrf.mxu0
  %v176 = vadd.f32 %v63, %v175
  %177 = vmatmul.f32.gmra.mxu0 %v138
  %v178 = vpop.f32.mrf.mxu0
  %v179 = vadd.f32 %v63, %v178
  %180 = vmatmul.f32.gmra.mxu0 %v141
  %v181 = vpop.f32.mrf.mxu0
  %v182 = vadd.f32 %v63, %v181
  %183 = vmatmul.f32.gmra.mxu0 %v144
  %v184 = vpop.f32.mrf.mxu0
  %v185 = vadd.f32 %v63, %v184
  %186 = vmatmul.f32.gmra.mxu0 %v147
  %v187 = vpop.f32.mrf.mxu0
  %v188 = vadd.f32 %v63, %v187
  %189 = vmatmul.f32.gmra.mxu0 %v150
  %v190 = vpop.f32.mrf.mxu0
  %v191 = vadd.f32 %v63, %v190
  %192 = vmatmul.f32.gmra.mxu0 %v153
  %v193 = vpop.f32.mrf.mxu0
  %v194 = vadd.f32 %v63, %v193
  %195 = vdwg.mxu0
  %v196 = vld [vmem:[%s5] sm:$0xff]
  %v197 = vld [vmem:[%s5 + $0x8] sm:$0xff]
  %v198 = vld [vmem:[%s6] sm:$0xff]
  %v199 = vld [vmem:[%s6 + $0x8] sm:$0xff]
  %v201 = vsel %vm65, %v173, 0
  %v204 = vsel %vm65, %v176, 0
  %v207 = vsel %vm65, %v179, 0
  %v210 = vsel %vm65, %v182, 0
  %v213 = vsel %vm65, %v185, 0
  %v216 = vsel %vm65, %v188, 0
  %v219 = vsel %vm65, %v191, 0
  %v222 = vsel %vm65, %v194, 0
  %224 = vmatpush.msra.mxu0 0.0
  %225 = vmatpush.msra.mxu0 0.0
  %226 = vmatpush.msra.mxu0 0.0
  %227 = vmatpush.msra.mxu0 0.0
  %228 = vmatpush.msra.mxu0 0.0
  %229 = vmatpush.msra.mxu0 0.0
  %230 = vmatpush.msra.mxu0 0.0
  %231 = vmatpush.msra.mxu0 0.0
  %232 = vmatpush.msra.mxu0 0.0
  %233 = vmatpush.msra.mxu0 0.0
  %234 = vmatpush.msra.mxu0 0.0
  %235 = vmatpush.msra.mxu0 0.0
  %236 = vmatpush.msra.mxu0 0.0
  %237 = vmatpush.msra.mxu0 0.0
  %238 = vmatpush.msra.mxu0 %v199
  %239 = vmatpush.msra.mxu0 %v198
  %240 = vmatmul.f32.gmra.mxu0 %v201
  %v241 = vpop.f32.mrf.mxu0
  %v242 = vadd.f32 0.0, %v241
  %243 = vmatmul.f32.gmra.mxu0 %v204
  %v244 = vpop.f32.mrf.mxu0
  %v245 = vadd.f32 0.0, %v244
  %246 = vmatmul.f32.gmra.mxu0 %v207
  %v247 = vpop.f32.mrf.mxu0
  %v248 = vadd.f32 0.0, %v247
  %249 = vmatmul.f32.gmra.mxu0 %v210
  %v250 = vpop.f32.mrf.mxu0
  %v251 = vadd.f32 0.0, %v250
  %252 = vmatmul.f32.gmra.mxu0 %v213
  %v253 = vpop.f32.mrf.mxu0
  %v254 = vadd.f32 0.0, %v253
  %255 = vmatmul.f32.gmra.mxu0 %v216
  %v256 = vpop.f32.mrf.mxu0
  %v257 = vadd.f32 0.0, %v256
  %258 = vmatmul.f32.gmra.mxu0 %v219
  %v259 = vpop.f32.mrf.mxu0
  %v260 = vadd.f32 0.0, %v259
  %261 = vmatmul.f32.gmra.mxu0 %v222
  %v262 = vpop.f32.mrf.mxu0
  %v263 = vadd.f32 0.0, %v262
  %264 = vdwg.mxu0
  %v266 = vsel %vm65, %v108, 0
  %v269 = vsel %vm65, %v111, 0
  %v272 = vsel %vm65, %v114, 0
  %v275 = vsel %vm65, %v117, 0
  %v278 = vsel %vm65, %v120, 0
  %v281 = vsel %vm65, %v123, 0
  %v284 = vsel %vm65, %v126, 0
  %v287 = vsel %vm65, %v129, 0
  %289 = vmatpush.msra.mxu0 0.0
  %290 = vmatpush.msra.mxu0 0.0
  %291 = vmatpush.msra.mxu0 0.0
  %292 = vmatpush.msra.mxu0 0.0
  %293 = vmatpush.msra.mxu0 0.0
  %294 = vmatpush.msra.mxu0 0.0
  %295 = vmatpush.msra.mxu0 0.0
  %296 = vmatpush.msra.mxu0 0.0
  %297 = vmatpush.msra.mxu0 0.0
  %298 = vmatpush.msra.mxu0 0.0
  %299 = vmatpush.msra.mxu0 0.0
  %300 = vmatpush.msra.mxu0 0.0
  %301 = vmatpush.msra.mxu0 0.0
  %302 = vmatpush.msra.mxu0 0.0
  %303 = vmatpush.msra.mxu0 %v197
  %304 = vmatpush.msra.mxu0 %v196
  %305 = vmatmul.f32.gmra.mxu0 %v266
  %v306 = vpop.f32.mrf.mxu0
  %v307 = vadd.f32 %v242, %v306
  %308 = vmatmul.f32.gmra.mxu0 %v269
  %v309 = vpop.f32.mrf.mxu0
  %v310 = vadd.f32 %v245, %v309
  %311 = vmatmul.f32.gmra.mxu0 %v272
  %v312 = vpop.f32.mrf.mxu0
  %v313 = vadd.f32 %v248, %v312
  %314 = vmatmul.f32.gmra.mxu0 %v275
  %v315 = vpop.f32.mrf.mxu0
  %v316 = vadd.f32 %v251, %v315
  %317 = vmatmul.f32.gmra.mxu0 %v278
  %v318 = vpop.f32.mrf.mxu0
  %v319 = vadd.f32 %v254, %v318
  %320 = vmatmul.f32.gmra.mxu0 %v281
  %v321 = vpop.f32.mrf.mxu0
  %v322 = vadd.f32 %v257, %v321
  %323 = vmatmul.f32.gmra.mxu0 %v284
  %v324 = vpop.f32.mrf.mxu0
  %v325 = vadd.f32 %v260, %v324
  %326 = vmatmul.f32.gmra.mxu0 %v287
  %v327 = vpop.f32.mrf.mxu0
  %v328 = vadd.f32 %v263, %v327
  %329 = vdwg.mxu0
  %v330 = vld [vmem:[%s7] sm:$0x1]
  %v332 = vperm.slane %v330, 0
  %v334 = vadd.f32 %v307, %v332
  %v335 = vadd.f32 %v310, %v332
  %v336 = vadd.f32 %v313, %v332
  %v337 = vadd.f32 %v316, %v332
  %v338 = vadd.f32 %v319, %v332
  %v339 = vadd.f32 %v322, %v332
  %v340 = vadd.f32 %v325, %v332
  %v341 = vadd.f32 %v328, %v332
  %v342 = vld [vmem:[%s2] sm:$0xff]
  %v343 = vld [vmem:[%s2 + $0x8] sm:$0xff]
  %v344 = vld [vmem:[%s2 + $0x10] sm:$0xff]
  %v345 = vld [vmem:[%s2 + $0x18] sm:$0xff]
  %v346 = vld [vmem:[%s2 + $0x20] sm:$0xff]
  %v347 = vld [vmem:[%s2 + $0x28] sm:$0xff]
  %v348 = vld [vmem:[%s2 + $0x30] sm:$0xff]
  %v349 = vld [vmem:[%s2 + $0x38] sm:$0xff]
  %v350 = vld [vmem:[%s8] sm:$0xff]
  %v351 = vld [vmem:[%s8 + $0x8] sm:$0xff]
  %v352 = vld [vmem:[#allocation2] sm:$0x1]
  %v353 = vld [vmem:[%s10] sm:$0xff]
  %v354 = vld [vmem:[%s10 + $0x8] sm:$0xff]
  %v355 = vld [vmem:[%s11] sm:$0x1]
  %vm356 = vcmp.gt.f32.partialorder %v334, 0.0
  %vm357 = vcmp.gt.f32.partialorder %v335, 0.0
  %vm358 = vcmp.gt.f32.partialorder %v336, 0.0
  %vm359 = vcmp.gt.f32.partialorder %v337, 0.0
  %vm360 = vcmp.gt.f32.partialorder %v338, 0.0
  %vm361 = vcmp.gt.f32.partialorder %v339, 0.0
  %vm362 = vcmp.gt.f32.partialorder %v340, 0.0
  %vm363 = vcmp.gt.f32.partialorder %v341, 0.0
  %v364 = vmul.f32 %v334, 0.2
  %v365 = vmul.f32 %v335, 0.2
  %v366 = vmul.f32 %v336, 0.2
  %v367 = vmul.f32 %v337, 0.2
  %v368 = vmul.f32 %v338, 0.2
  %v369 = vmul.f32 %v339, 0.2
  %v370 = vmul.f32 %v340, 0.2
  %v371 = vmul.f32 %v341, 0.2
  %v372 = vsel %vm356, %v334, %v364
  %v373 = vsel %vm357, %v335, %v365
  %v374 = vsel %vm358, %v336, %v366
  %v375 = vsel %vm359, %v337, %v367
  %v376 = vsel %vm360, %v338, %v368
  %v377 = vsel %vm361, %v339, %v369
  %v378 = vsel %vm362, %v340, %v370
  %v379 = vsel %vm363, %v341, %v371
  %v381 = vperm.slane %v352, 0
  %v384 = vsel %vm65, %v372, 0
  %v387 = vsel %vm65, %v373, 0
  %v390 = vsel %vm65, %v374, 0
  %v393 = vsel %vm65, %v375, 0
  %v396 = vsel %vm65, %v376, 0
  %v399 = vsel %vm65, %v377, 0
  %v402 = vsel %vm65, %v378, 0
  %v405 = vsel %vm65, %v379, 0
  %407 = vmatpush.msra.mxu0 0.0
  %408 = vmatpush.msra.mxu0 0.0
  %409 = vmatpush.msra.mxu0 0.0
  %410 = vmatpush.msra.mxu0 0.0
  %411 = vmatpush.msra.mxu0 0.0
  %412 = vmatpush.msra.mxu0 0.0
  %413 = vmatpush.msra.mxu0 0.0
  %414 = vmatpush.msra.mxu0 0.0
  %415 = vmatpush.msra.mxu0 0.0
  %416 = vmatpush.msra.mxu0 0.0
  %417 = vmatpush.msra.mxu0 0.0
  %418 = vmatpush.msra.mxu0 0.0
  %419 = vmatpush.msra.mxu0 0.0
  %420 = vmatpush.msra.mxu0 0.0
  %421 = vmatpush.msra.mxu0 %v351
  %422 = vmatpush.msra.mxu0 %v350
  %423 = vmatmul.f32.gmra.mxu0 %v384
  %v424 = vpop.f32.mrf.mxu0
  %v425 = vadd.f32 %v381, %v424
  %426 = vmatmul.f32.gmra.mxu0 %v387
  %v427 = vpop.f32.mrf.mxu0
  %v428 = vadd.f32 %v381, %v427
  %429 = vmatmul.f32.gmra.mxu0 %v390
  %v430 = vpop.f32.mrf.mxu0
  %v431 = vadd.f32 %v381, %v430
  %432 = vmatmul.f32.gmra.mxu0 %v393
  %v433 = vpop.f32.mrf.mxu0
  %v434 = vadd.f32 %v381, %v433
  %435 = vmatmul.f32.gmra.mxu0 %v396
  %v436 = vpop.f32.mrf.mxu0
  %v437 = vadd.f32 %v381, %v436
  %438 = vmatmul.f32.gmra.mxu0 %v399
  %v439 = vpop.f32.mrf.mxu0
  %v440 = vadd.f32 %v381, %v439
  %441 = vmatmul.f32.gmra.mxu0 %v402
  %v442 = vpop.f32.mrf.mxu0
  %v443 = vadd.f32 %v381, %v442
  %444 = vmatmul.f32.gmra.mxu0 %v405
  %v445 = vpop.f32.mrf.mxu0
  %v446 = vadd.f32 %v381, %v445
  %447 = vdwg.mxu0
  %v448 = vmul.f32 %v425, 1.442695
  %v449 = vpow.pop %v448
  %v450 = vmul.f32 %v428, 1.442695
  %v451 = vpow.pop %v450
  %v452 = vmul.f32 %v431, 1.442695
  %v453 = vpow.pop %v452
  %v454 = vmul.f32 %v434, 1.442695
  %v455 = vpow.pop %v454
  %v456 = vmul.f32 %v437, 1.442695
  %v457 = vpow.pop %v456
  %v458 = vmul.f32 %v440, 1.442695
  %v459 = vpow.pop %v458
  %v460 = vmul.f32 %v443, 1.442695
  %v461 = vpow.pop %v460
  %v462 = vmul.f32 %v446, 1.442695
  %v463 = vpow.pop %v462
  %v464 = vmul.f32 %v449, %v342
  %v465 = vmul.f32 %v451, %v343
  %v466 = vmul.f32 %v453, %v344
  %v467 = vmul.f32 %v455, %v345
  %v468 = vmul.f32 %v457, %v346
  %v469 = vmul.f32 %v459, %v347
  %v470 = vmul.f32 %v461, %v348
  %v471 = vmul.f32 %v463, %v349
  %vm472 = vcmask 7168
  %v473 = vsel %vm472, %v464, 0.0
  %v474 = vrot.slane %v473, 4
  %v475 = vadd.f32 %v473, %v474
  %v476 = vrot.slane %v475, 2
  %v477 = vadd.f32 %v475, %v476
  %v478 = vrot.slane %v477, 1
  %v479 = vadd.f32 %v477, %v478
  %v480 = vsel %vm472, %v465, 0.0
  %v481 = vrot.slane %v480, 4
  %v482 = vadd.f32 %v480, %v481
  %v483 = vrot.slane %v482, 2
  %v484 = vadd.f32 %v482, %v483
  %v485 = vrot.slane %v484, 1
  %v486 = vadd.f32 %v484, %v485
  %v487 = vsel %vm472, %v466, 0.0
  %v488 = vrot.slane %v487, 4
  %v489 = vadd.f32 %v487, %v488
  %v490 = vrot.slane %v489, 2
  %v491 = vadd.f32 %v489, %v490
  %v492 = vrot.slane %v491, 1
  %v493 = vadd.f32 %v491, %v492
  %v494 = vsel %vm472, %v467, 0.0
  %v495 = vrot.slane %v494, 4
  %v496 = vadd.f32 %v494, %v495
  %v497 = vrot.slane %v496, 2
  %v498 = vadd.f32 %v496, %v497
  %v499 = vrot.slane %v498, 1
  %v500 = vadd.f32 %v498, %v499
  %v501 = vsel %vm472, %v468, 0.0
  %v502 = vrot.slane %v501, 4
  %v503 = vadd.f32 %v501, %v502
  %v504 = vrot.slane %v503, 2
  %v505 = vadd.f32 %v503, %v504
  %v506 = vrot.slane %v505, 1
  %v507 = vadd.f32 %v505, %v506
  %v508 = vsel %vm472, %v469, 0.0
  %v509 = vrot.slane %v508, 4
  %v510 = vadd.f32 %v508, %v509
  %v511 = vrot.slane %v510, 2
  %v512 = vadd.f32 %v510, %v511
  %v513 = vrot.slane %v512, 1
  %v514 = vadd.f32 %v512, %v513
  %v515 = vsel %vm472, %v470, 0.0
  %v516 = vrot.slane %v515, 4
  %v517 = vadd.f32 %v515, %v516
  %v518 = vrot.slane %v517, 2
  %v519 = vadd.f32 %v517, %v518
  %v520 = vrot.slane %v519, 1
  %v521 = vadd.f32 %v519, %v520
  %v522 = vsel %vm472, %v471, 0.0
  %v523 = vrot.slane %v522, 4
  %v524 = vadd.f32 %v522, %v523
  %v525 = vrot.slane %v524, 2
  %v526 = vadd.f32 %v524, %v525
  %v527 = vrot.slane %v526, 1
  %v528 = vadd.f32 %v526, %v527
  %v529 = vadd.f32 %v479, 1e-10
  %v530 = vadd.f32 %v486, 1e-10
  %v531 = vadd.f32 %v493, 1e-10
  %v532 = vadd.f32 %v500, 1e-10
  %v533 = vadd.f32 %v507, 1e-10
  %v534 = vadd.f32 %v514, 1e-10
  %v535 = vadd.f32 %v521, 1e-10
  %v536 = vadd.f32 %v528, 1e-10
  %v537 = vrcp.pop %v529
  %v538 = vmul.f32 %v529, %v537
  %v539 = vsub.f32 1.0, %v538
  %v540 = vmul.f32 %v537, %v539
  %v541 = vadd.f32 %v537, %v540
  %vm542 = vweird.f32 %v529
  %vm543 = vweird.f32 %v537
  %vm544 = vmor %vm542, %vm543
  %v545 = vsel %vm544, %v537, %v541
  %v546 = vand.u32 2147483647, %v529
  %vm547 = vcmp.eq.f32.partialorder %v546, 8.507059e+37
  %v548 = vand.u32 %v529, 2147483648
  %v549 = vor.u32 1.1754944e-38, %v548
  %v550 = vsel %vm547, %v549, %v545
  %v551 = vmul.f32 %v464, %v550
  %v552 = vrcp.pop %v530
  %v553 = vmul.f32 %v530, %v552
  %v554 = vsub.f32 1.0, %v553
  %v555 = vmul.f32 %v552, %v554
  %v556 = vadd.f32 %v552, %v555
  %vm557 = vweird.f32 %v530
  %vm558 = vweird.f32 %v552
  %vm559 = vmor %vm557, %vm558
  %v560 = vsel %vm559, %v552, %v556
  %v561 = vand.u32 2147483647, %v530
  %vm562 = vcmp.eq.f32.partialorder %v561, 8.507059e+37
  %v563 = vand.u32 %v530, 2147483648
  %v564 = vor.u32 1.1754944e-38, %v563
  %v565 = vsel %vm562, %v564, %v560
  %v566 = vmul.f32 %v465, %v565
  %v567 = vrcp.pop %v531
  %v568 = vmul.f32 %v531, %v567
  %v569 = vsub.f32 1.0, %v568
  %v570 = vmul.f32 %v567, %v569
  %v571 = vadd.f32 %v567, %v570
  %vm572 = vweird.f32 %v531
  %vm573 = vweird.f32 %v567
  %vm574 = vmor %vm572, %vm573
  %v575 = vsel %vm574, %v567, %v571
  %v576 = vand.u32 2147483647, %v531
  %vm577 = vcmp.eq.f32.partialorder %v576, 8.507059e+37
  %v578 = vand.u32 %v531, 2147483648
  %v579 = vor.u32 1.1754944e-38, %v578
  %v580 = vsel %vm577, %v579, %v575
  %v581 = vmul.f32 %v466, %v580
  %v582 = vrcp.pop %v532
  %v583 = vmul.f32 %v532, %v582
  %v584 = vsub.f32 1.0, %v583
  %v585 = vmul.f32 %v582, %v584
  %v586 = vadd.f32 %v582, %v585
  %vm587 = vweird.f32 %v532
  %vm588 = vweird.f32 %v582
  %vm589 = vmor %vm587, %vm588
  %v590 = vsel %vm589, %v582, %v586
  %v591 = vand.u32 2147483647, %v532
  %vm592 = vcmp.eq.f32.partialorder %v591, 8.507059e+37
  %v593 = vand.u32 %v532, 2147483648
  %v594 = vor.u32 1.1754944e-38, %v593
  %v595 = vsel %vm592, %v594, %v590
  %v596 = vmul.f32 %v467, %v595
  %v597 = vrcp.pop %v533
  %v598 = vmul.f32 %v533, %v597
  %v599 = vsub.f32 1.0, %v598
  %v600 = vmul.f32 %v597, %v599
  %v601 = vadd.f32 %v597, %v600
  %vm602 = vweird.f32 %v533
  %vm603 = vweird.f32 %v597
  %vm604 = vmor %vm602, %vm603
  %v605 = vsel %vm604, %v597, %v601
  %v606 = vand.u32 2147483647, %v533
  %vm607 = vcmp.eq.f32.partialorder %v606, 8.507059e+37
  %v608 = vand.u32 %v533, 2147483648
  %v609 = vor.u32 1.1754944e-38, %v608
  %v610 = vsel %vm607, %v609, %v605
  %v611 = vmul.f32 %v468, %v610
  %v612 = vrcp.pop %v534
  %v613 = vmul.f32 %v534, %v612
  %v614 = vsub.f32 1.0, %v613
  %v615 = vmul.f32 %v612, %v614
  %v616 = vadd.f32 %v612, %v615
  %vm617 = vweird.f32 %v534
  %vm618 = vweird.f32 %v612
  %vm619 = vmor %vm617, %vm618
  %v620 = vsel %vm619, %v612, %v616
  %v621 = vand.u32 2147483647, %v534
  %vm622 = vcmp.eq.f32.partialorder %v621, 8.507059e+37
  %v623 = vand.u32 %v534, 2147483648
  %v624 = vor.u32 1.1754944e-38, %v623
  %v625 = vsel %vm622, %v624, %v620
  %v626 = vmul.f32 %v469, %v625
  %v627 = vrcp.pop %v535
  %v628 = vmul.f32 %v535, %v627
  %v629 = vsub.f32 1.0, %v628
  %v630 = vmul.f32 %v627, %v629
  %v631 = vadd.f32 %v627, %v630
  %vm632 = vweird.f32 %v535
  %vm633 = vweird.f32 %v627
  %vm634 = vmor %vm632, %vm633
  %v635 = vsel %vm634, %v627, %v631
  %v636 = vand.u32 2147483647, %v535
  %vm637 = vcmp.eq.f32.partialorder %v636, 8.507059e+37
  %v638 = vand.u32 %v535, 2147483648
  %v639 = vor.u32 1.1754944e-38, %v638
  %v640 = vsel %vm637, %v639, %v635
  %v641 = vmul.f32 %v470, %v640
  %v642 = vrcp.pop %v536
  %v643 = vmul.f32 %v536, %v642
  %v644 = vsub.f32 1.0, %v643
  %v645 = vmul.f32 %v642, %v644
  %v646 = vadd.f32 %v642, %v645
  %vm647 = vweird.f32 %v536
  %vm648 = vweird.f32 %v642
  %vm649 = vmor %vm647, %vm648
  %v650 = vsel %vm649, %v642, %v646
  %v651 = vand.u32 2147483647, %v536
  %vm652 = vcmp.eq.f32.partialorder %v651, 8.507059e+37
  %v653 = vand.u32 %v536, 2147483648
  %v654 = vor.u32 1.1754944e-38, %v653
  %v655 = vsel %vm652, %v654, %v650
  %v656 = vmul.f32 %v471, %v655
  %658 = vset.pattern.permute.xlu0 0
  %659 = vperm.xlu0 %658, %v551
  %v660 = vpop.permute.xlu0 %659
  %663 = vset.pattern.permute.xlu0 0
  %664 = vperm.xlu0 %663, %v566
  %v665 = vpop.permute.xlu0 %664
  %668 = vset.pattern.permute.xlu0 0
  %669 = vperm.xlu0 %668, %v581
  %v670 = vpop.permute.xlu0 %669
  %673 = vset.pattern.permute.xlu0 0
  %674 = vperm.xlu0 %673, %v596
  %v675 = vpop.permute.xlu0 %674
  %678 = vset.pattern.permute.xlu0 0
  %679 = vperm.xlu0 %678, %v611
  %v680 = vpop.permute.xlu0 %679
  %683 = vset.pattern.permute.xlu0 0
  %684 = vperm.xlu0 %683, %v626
  %v685 = vpop.permute.xlu0 %684
  %688 = vset.pattern.permute.xlu0 0
  %689 = vperm.xlu0 %688, %v641
  %v690 = vpop.permute.xlu0 %689
  %693 = vset.pattern.permute.xlu0 0
  %694 = vperm.xlu0 %693, %v656
  %v695 = vpop.permute.xlu0 %694
  %v697 = vmul.f32 %v660, %v108
  %v698 = vmul.f32 %v665, %v111
  %v699 = vmul.f32 %v670, %v114
  %v700 = vmul.f32 %v675, %v117
  %v701 = vmul.f32 %v680, %v120
  %v702 = vmul.f32 %v685, %v123
  %v703 = vmul.f32 %v690, %v126
  %v704 = vmul.f32 %v695, %v129
  %v705 = vsel %vm65, %v697, 0.0
  %v706 = vrot.slane %v705, 4
  %v707 = vadd.f32 %v705, %v706
  %v708 = vrot.slane %v707, 2
  %v709 = vadd.f32 %v707, %v708
  %v710 = vrot.slane %v709, 1
  %v711 = vadd.f32 %v709, %v710
  %v712 = vsel %vm65, %v698, 0.0
  %v713 = vrot.slane %v712, 4
  %v714 = vadd.f32 %v712, %v713
  %v715 = vrot.slane %v714, 2
  %v716 = vadd.f32 %v714, %v715
  %v717 = vrot.slane %v716, 1
  %v718 = vadd.f32 %v716, %v717
  %v719 = vsel %vm65, %v699, 0.0
  %v720 = vrot.slane %v719, 4
  %v721 = vadd.f32 %v719, %v720
  %v722 = vrot.slane %v721, 2
  %v723 = vadd.f32 %v721, %v722
  %v724 = vrot.slane %v723, 1
  %v725 = vadd.f32 %v723, %v724
  %v726 = vsel %vm65, %v700, 0.0
  %v727 = vrot.slane %v726, 4
  %v728 = vadd.f32 %v726, %v727
  %v729 = vrot.slane %v728, 2
  %v730 = vadd.f32 %v728, %v729
  %v731 = vrot.slane %v730, 1
  %v732 = vadd.f32 %v730, %v731
  %v733 = vsel %vm65, %v701, 0.0
  %v734 = vrot.slane %v733, 4
  %v735 = vadd.f32 %v733, %v734
  %v736 = vrot.slane %v735, 2
  %v737 = vadd.f32 %v735, %v736
  %v738 = vrot.slane %v737, 1
  %v739 = vadd.f32 %v737, %v738
  %v740 = vsel %vm65, %v702, 0.0
  %v741 = vrot.slane %v740, 4
  %v742 = vadd.f32 %v740, %v741
  %v743 = vrot.slane %v742, 2
  %v744 = vadd.f32 %v742, %v743
  %v745 = vrot.slane %v744, 1
  %v746 = vadd.f32 %v744, %v745
  %v747 = vsel %vm65, %v703, 0.0
  %v748 = vrot.slane %v747, 4
  %v749 = vadd.f32 %v747, %v748
  %v750 = vrot.slane %v749, 2
  %v751 = vadd.f32 %v749, %v750
  %v752 = vrot.slane %v751, 1
  %v753 = vadd.f32 %v751, %v752
  %v754 = vsel %vm65, %v704, 0.0
  %v755 = vrot.slane %v754, 4
  %v756 = vadd.f32 %v754, %v755
  %v757 = vrot.slane %v756, 2
  %v758 = vadd.f32 %v756, %v757
  %v759 = vrot.slane %v758, 1
  %v760 = vadd.f32 %v758, %v759
  %v762 = vperm.slane %v355, 0
  %vm772 = vcmask 1041409
  %v773 = vsel %vm772, %v718, %v711
  %vm774 = vcmask 1042434
  %v775 = vsel %vm774, %v725, %v773
  %vm776 = vcmask 1043459
  %v777 = vsel %vm776, %v732, %v775
  %vm778 = vcmask 1044484
  %v779 = vsel %vm778, %v739, %v777
  %vm780 = vcmask 1045509
  %v781 = vsel %vm780, %v746, %v779
  %vm782 = vcmask 1046534
  %v783 = vsel %vm782, %v753, %v781
  %vm784 = vcmask 1047559
  %v785 = vsel %vm784, %v760, %v783
  %v786 = vsel %vm65, %v785, 0
  %788 = vmatpush.msra.mxu0 0.0
  %789 = vmatpush.msra.mxu0 0.0
  %790 = vmatpush.msra.mxu0 0.0
  %791 = vmatpush.msra.mxu0 0.0
  %792 = vmatpush.msra.mxu0 0.0
  %793 = vmatpush.msra.mxu0 0.0
  %794 = vmatpush.msra.mxu0 0.0
  %795 = vmatpush.msra.mxu0 0.0
  %796 = vmatpush.msra.mxu0 0.0
  %797 = vmatpush.msra.mxu0 0.0
  %798 = vmatpush.msra.mxu0 0.0
  %799 = vmatpush.msra.mxu0 0.0
  %800 = vmatpush.msra.mxu0 0.0
  %801 = vmatpush.msra.mxu0 0.0
  %802 = vmatpush.msra.mxu0 %v354
  %803 = vmatpush.msra.mxu0 %v353
  %804 = vmatmul.f32.gmra.mxu0 %v786
  %v805 = vpop.f32.mrf.mxu0
  %v806 = vadd.f32 %v762, %v805
  %807 = vdwg.mxu0
  %v808 = vmax.f32 %v806, 0.0
  %809 = vst.msk [vmem:[%s12] sm:$0xff] %vm65, %v808
  // Predicated region
  $region50: #{user_model_forward.12} parent=0 // pred_check
    _
  $region51: #{user_model_forward.12} parent=0 // pred_check_branch
    %811 = sbr.rel (0) target = $region53
  $region52: #{user_model_forward.12} parent=0 // pred_region
    _
  $region53: #{user_model_forward.12} parent=0 // pred_fallthru
    _
  // Predicated region
  $region54: #{user_model_forward.12} parent=0 // pred_check
    _
  $region55: #{user_model_forward.12} parent=0 // pred_check_branch
    %813 = sbr.rel (0) target = $region57
  $region56: #{user_model_forward.12} parent=0 // pred_region
    _
  $region57: #{user_model_forward.12} parent=0 // pred_fallthru
    _

// kernel: user_model_forward.10
$region0: #{user_model_forward.10}
  #allocation0 [shape = 'u32[]', space=smem, size = 0x4, offset = 0x4, fixed_abs, tag = 'smem constant byte address 0x4 - core index']
  #allocation1 [shape = 'u32[72,128]{1,0:T(1,128)}', space=vmem, size = 0x9000, scoped, tag = 'internal scratch']
  #allocation2 [shape = 'f32[1,1]{1,0:T(1,128)S(1)}', space=vmem, size = 0x200, scoped, tag = 'scoped memory for user_model_forward.10']
  %s0 = inlined_call_operand.vmem [shape: f32[8,8,16], index: 0, kind: input, shape index: {}]
  %s1 = inlined_call_operand.vmem [shape: f32[8,16], index: 1, kind: input, shape index: {}]
  %s2 = inlined_call_operand.vmem [shape: f32[8,8,1], index: 2, kind: input, shape index: {}]
  %s3 = inlined_call_operand.vmem [shape: f32[16,16], index: 3, kind: input, shape index: {}]
  %s4 = inlined_call_operand.vmem [shape: f32[1,16], index: 4, kind: input, shape index: {}]
  %s5 = inlined_call_operand.vmem [shape: f32[16,16], index: 5, kind: input, shape index: {}]
  %s6 = inlined_call_operand.vmem [shape: f32[16,16], index: 6, kind: input, shape index: {}]
  %s7 = inlined_call_operand.vmem [shape: f32[1,16], index: 7, kind: input, shape index: {}]
  %s8 = inlined_call_operand.vmem [shape: f32[16,1], index: 8, kind: input, shape index: {}]
  %s9 = inlined_call_operand.<no memory space> [shape: f32[1,1], index: 9, kind: input, shape index: {}]
  %s10 = inlined_call_operand.vmem [shape: f32[16,16], index: 10, kind: input, shape index: {}]
  %s11 = inlined_call_operand.vmem [shape: f32[1,16], index: 11, kind: input, shape index: {}]
  %s12 = inlined_call_operand.vmem [shape: f32[8,16], index: 12, kind: output, shape index: {}]
  %s13 = sld [smem:[#allocation0]]
  $region58: #{user_model_forward.10} parent=0
    _
  %s15 = ssub.s32 1, %s13
  %s16 = scalar_select 0, %s15, %s13
  %v17 = vstv %s9
  %18 = vst [vmem:[#allocation2] sm:$0x1] %v17
  // Predicated region
  $region2: #{user_model_forward.10} parent=0 // pred_check
    _
  $region3: #{user_model_forward.10} parent=0 // pred_check_branch
    %20 = sbr.rel (0) target = $region5
  $region4: #{user_model_forward.10} parent=0 // pred_region
    _
  $region5: #{user_model_forward.10} parent=0 // pred_fallthru
    _
  // Predicated region
  $region6: #{user_model_forward.10} parent=0 // pred_check
    _
  $region7: #{user_model_forward.10} parent=0 // pred_check_branch
    %22 = sbr.rel (0) target = $region9
  $region8: #{user_model_forward.10} parent=0 // pred_region
    _
  $region9: #{user_model_forward.10} parent=0 // pred_fallthru
    _
  // Predicated region
  $region10: #{user_model_forward.10} parent=0 // pred_check
    _
  $region11: #{user_model_forward.10} parent=0 // pred_check_branch
    %24 = sbr.rel (0) target = $region13
  $region12: #{user_model_forward.10} parent=0 // pred_region
    _
  $region13: #{user_model_forward.10} parent=0 // pred_fallthru
    _
  // Predicated region
  $region14: #{user_model_forward.10} parent=0 // pred_check
    _
  $region15: #{user_model_forward.10} parent=0 // pred_check_branch
    %26 = sbr.rel (0) target = $region17
  $region16: #{user_model_forward.10} parent=0 // pred_region
    _
  $region17: #{user_model_forward.10} parent=0 // pred_fallthru
    _
  // Predicated region
  $region18: #{user_model_forward.10} parent=0 // pred_check
    _
  $region19: #{user_model_forward.10} parent=0 // pred_check_branch
    %28 = sbr.rel (0) target = $region21
  $region20: #{user_model_forward.10} parent=0 // pred_region
    _
  $region21: #{user_model_forward.10} parent=0 // pred_fallthru
    _
  // Predicated region
  $region22: #{user_model_forward.10} parent=0 // pred_check
    _
  $region23: #{user_model_forward.10} parent=0 // pred_check_branch
    %30 = sbr.rel (0) target = $region25
  $region24: #{user_model_forward.10} parent=0 // pred_region
    _
  $region25: #{user_model_forward.10} parent=0 // pred_fallthru
    _
  // Predicated region
  $region26: #{user_model_forward.10} parent=0 // pred_check
    _
  $region27: #{user_model_forward.10} parent=0 // pred_check_branch
    %32 = sbr.rel (0) target = $region29
  $region28: #{user_model_forward.10} parent=0 // pred_region
    _
  $region29: #{user_model_forward.10} parent=0 // pred_fallthru
    _
  // Predicated region
  $region30: #{user_model_forward.10} parent=0 // pred_check
    _
  $region31: #{user_model_forward.10} parent=0 // pred_check_branch
    %34 = sbr.rel (0) target = $region33
  $region32: #{user_model_forward.10} parent=0 // pred_region
    _
  $region33: #{user_model_forward.10} parent=0 // pred_fallthru
    _
  // Predicated region
  $region34: #{user_model_forward.10} parent=0 // pred_check
    _
  $region35: #{user_model_forward.10} parent=0 // pred_check_branch
    %36 = sbr.rel (0) target = $region37
  $region36: #{user_model_forward.10} parent=0 // pred_region
    _
  $region37: #{user_model_forward.10} parent=0 // pred_fallthru
    _
  // Predicated region
  $region38: #{user_model_forward.10} parent=0 // pred_check
    _
  $region39: #{user_model_forward.10} parent=0 // pred_check_branch
    %38 = sbr.rel (0) target = $region41
  $region40: #{user_model_forward.10} parent=0 // pred_region
    _
  $region41: #{user_model_forward.10} parent=0 // pred_fallthru
    _
  // Predicated region
  $region42: #{user_model_forward.10} parent=0 // pred_check
    _
  $region43: #{user_model_forward.10} parent=0 // pred_check_branch
    %40 = sbr.rel (0) target = $region45
  $region44: #{user_model_forward.10} parent=0 // pred_region
    _
  $region45: #{user_model_forward.10} parent=0 // pred_fallthru
    _
  // Predicated region
  $region46: #{user_model_forward.10} parent=0 // pred_check
    _
  $region47: #{user_model_forward.10} parent=0 // pred_check_branch
    %42 = sbr.rel (0) target = $region49
  $region48: #{user_model_forward.10} parent=0 // pred_region
    _
  $region49: #{user_model_forward.10} parent=0 // pred_fallthru
    _
  %v43 = vld [vmem:[%s0] sm:$0xff]
  %v44 = vld [vmem:[%s0 + $0x8] sm:$0xff]
  %v45 = vld [vmem:[%s0 + $0x10] sm:$0xff]
  %v46 = vld [vmem:[%s0 + $0x18] sm:$0xff]
  %v47 = vld [vmem:[%s0 + $0x20] sm:$0xff]
  %v48 = vld [vmem:[%s0 + $0x28] sm:$0xff]
  %v49 = vld [vmem:[%s0 + $0x30] sm:$0xff]
  %v50 = vld [vmem:[%s0 + $0x38] sm:$0xff]
  %v51 = vld [vmem:[%s3] sm:$0xff]
  %v52 = vld [vmem:[%s3 + $0x8] sm:$0xff]
  %v53 = vld [vmem:[%s4] sm:$0x1]
  %v55 = vperm.slane %v53, 0
  %vm57 = vcmask 130048
  %v59 = vsel %vm57, %v43, 0
  %v62 = vsel %vm57, %v44, 0
  %v65 = vsel %vm57, %v45, 0
  %v68 = vsel %vm57, %v46, 0
  %v71 = vsel %vm57, %v47, 0
  %v74 = vsel %vm57, %v48, 0
  %v77 = vsel %vm57, %v49, 0
  %v80 = vsel %vm57, %v50, 0
  %82 = vmatpush.msra.mxu0 0.0
  %83 = vmatpush.msra.mxu0 0.0
  %84 = vmatpush.msra.mxu0 0.0
  %85 = vmatpush.msra.mxu0 0.0
  %86 = vmatpush.msra.mxu0 0.0
  %87 = vmatpush.msra.mxu0 0.0
  %88 = vmatpush.msra.mxu0 0.0
  %89 = vmatpush.msra.mxu0 0.0
  %90 = vmatpush.msra.mxu0 0.0
  %91 = vmatpush.msra.mxu0 0.0
  %92 = vmatpush.msra.mxu0 0.0
  %93 = vmatpush.msra.mxu0 0.0
  %94 = vmatpush.msra.mxu0 0.0
  %95 = vmatpush.msra.mxu0 0.0
  %96 = vmatpush.msra.mxu0 %v52
  %97 = vmatpush.msra.mxu0 %v51
  %98 = vmatmul.f32.gmra.mxu0 %v59
  %v99 = vpop.f32.mrf.mxu0
  %v100 = vadd.f32 %v55, %v99
  %101 = vmatmul.f32.gmra.mxu0 %v62
  %v102 = vpop.f32.mrf.mxu0
  %v103 = vadd.f32 %v55, %v102
  %104 = vmatmul.f32.gmra.mxu0 %v65
  %v105 = vpop.f32.mrf.mxu0
  %v106 = vadd.f32 %v55, %v105
  %107 = vmatmul.f32.gmra.mxu0 %v68
  %v108 = vpop.f32.mrf.mxu0
  %v109 = vadd.f32 %v55, %v108
  %110 = vmatmul.f32.gmra.mxu0 %v71
  %v111 = vpop.f32.mrf.mxu0
  %v112 = vadd.f32 %v55, %v111
  %113 = vmatmul.f32.gmra.mxu0 %v74
  %v114 = vpop.f32.mrf.mxu0
  %v115 = vadd.f32 %v55, %v114
  %116 = vmatmul.f32.gmra.mxu0 %v77
  %v117 = vpop.f32.mrf.mxu0
  %v118 = vadd.f32 %v55, %v117
  %119 = vmatmul.f32.gmra.mxu0 %v80
  %v120 = vpop.f32.mrf.mxu0
  %v121 = vadd.f32 %v55, %v120
  %122 = vdwg.mxu0
  %v123 = vld [vmem:[%s1] sm:$0xff]
  %v125 = vsel %vm57, %v123, 0
  %127 = vmatpush.msra.mxu0 0.0
  %128 = vmatpush.msra.mxu0 0.0
  %129 = vmatpush.msra.mxu0 0.0
  %130 = vmatpush.msra.mxu0 0.0
  %131 = vmatpush.msra.mxu0 0.0
  %132 = vmatpush.msra.mxu0 0.0
  %133 = vmatpush.msra.mxu0 0.0
  %134 = vmatpush.msra.mxu0 0.0
  %135 = vmatpush.msra.mxu0 0.0
  %136 = vmatpush.msra.mxu0 0.0
  %137 = vmatpush.msra.mxu0 0.0
  %138 = vmatpush.msra.mxu0 0.0
  %139 = vmatpush.msra.mxu0 0.0
  %140 = vmatpush.msra.mxu0 0.0
  %141 = vmatpush.msra.mxu0 %v52
  %142 = vmatpush.msra.mxu0 %v51
  %143 = vmatmul.f32.gmra.mxu0 %v125
  %v144 = vpop.f32.mrf.mxu0
  %v145 = vadd.f32 0.0, %v144
  %146 = vdwg.mxu0
  %v147 = vld [vmem:[%s2] sm:$0xff]
  %v148 = vld [vmem:[%s2 + $0x8] sm:$0xff]
  %v149 = vld [vmem:[%s2 + $0x10] sm:$0xff]
  %v150 = vld [vmem:[%s2 + $0x18] sm:$0xff]
  %v151 = vld [vmem:[%s2 + $0x20] sm:$0xff]
  %v152 = vld [vmem:[%s2 + $0x28] sm:$0xff]
  %v153 = vld [vmem:[%s2 + $0x30] sm:$0xff]
  %v154 = vld [vmem:[%s2 + $0x38] sm:$0xff]
  %v155 = vld [vmem:[%s5] sm:$0xff]
  %v156 = vld [vmem:[%s5 + $0x8] sm:$0xff]
  %v157 = vld [vmem:[%s6] sm:$0xff]
  %v158 = vld [vmem:[%s6 + $0x8] sm:$0xff]
  %v159 = vld [vmem:[%s7] sm:$0x1]
  %v160 = vld [vmem:[%s8] sm:$0xff]
  %v161 = vld [vmem:[%s8 + $0x8] sm:$0xff]
  %v162 = vld [vmem:[#allocation2] sm:$0x1]
  %v163 = vld [vmem:[%s10] sm:$0xff]
  %v164 = vld [vmem:[%s10 + $0x8] sm:$0xff]
  %v165 = vld [vmem:[%s11] sm:$0x1]
  %v167 = vsel %vm57, %v100, 0
  %v170 = vsel %vm57, %v103, 0
  %v173 = vsel %vm57, %v106, 0
  %v176 = vsel %vm57, %v109, 0
  %v179 = vsel %vm57, %v112, 0
  %v182 = vsel %vm57, %v115, 0
  %v185 = vsel %vm57, %v118, 0
  %v188 = vsel %vm57, %v121, 0
  %190 = vmatpush.msra.mxu0 0.0
  %191 = vmatpush.msra.mxu0 0.0
  %192 = vmatpush.msra.mxu0 0.0
  %193 = vmatpush.msra.mxu0 0.0
  %194 = vmatpush.msra.mxu0 0.0
  %195 = vmatpush.msra.mxu0 0.0
  %196 = vmatpush.msra.mxu0 0.0
  %197 = vmatpush.msra.mxu0 0.0
  %198 = vmatpush.msra.mxu0 0.0
  %199 = vmatpush.msra.mxu0 0.0
  %200 = vmatpush.msra.mxu0 0.0
  %201 = vmatpush.msra.mxu0 0.0
  %202 = vmatpush.msra.mxu0 0.0
  %203 = vmatpush.msra.mxu0 0.0
  %204 = vmatpush.msra.mxu0 %v156
  %205 = vmatpush.msra.mxu0 %v155
  %206 = vmatmul.f32.gmra.mxu0 %v167
  %v207 = vpop.f32.mrf.mxu0
  %v208 = vadd.f32 0.0, %v207
  %209 = vmatmul.f32.gmra.mxu0 %v170
  %v210 = vpop.f32.mrf.mxu0
  %v211 = vadd.f32 0.0, %v210
  %212 = vmatmul.f32.gmra.mxu0 %v173
  %v213 = vpop.f32.mrf.mxu0
  %v214 = vadd.f32 0.0, %v213
  %215 = vmatmul.f32.gmra.mxu0 %v176
  %v216 = vpop.f32.mrf.mxu0
  %v217 = vadd.f32 0.0, %v216
  %218 = vmatmul.f32.gmra.mxu0 %v179
  %v219 = vpop.f32.mrf.mxu0
  %v220 = vadd.f32 0.0, %v219
  %221 = vmatmul.f32.gmra.mxu0 %v182
  %v222 = vpop.f32.mrf.mxu0
  %v223 = vadd.f32 0.0, %v222
  %224 = vmatmul.f32.gmra.mxu0 %v185
  %v225 = vpop.f32.mrf.mxu0
  %v226 = vadd.f32 0.0, %v225
  %227 = vmatmul.f32.gmra.mxu0 %v188
  %v228 = vpop.f32.mrf.mxu0
  %v229 = vadd.f32 0.0, %v228
  %230 = vdwg.mxu0
  %v232 = vsel %vm57, %v145, 0
  %234 = vmatpush.msra.mxu0 0.0
  %235 = vmatpush.msra.mxu0 0.0
  %236 = vmatpush.msra.mxu0 0.0
  %237 = vmatpush.msra.mxu0 0.0
  %238 = vmatpush.msra.mxu0 0.0
  %239 = vmatpush.msra.mxu0 0.0
  %240 = vmatpush.msra.mxu0 0.0
  %241 = vmatpush.msra.mxu0 0.0
  %242 = vmatpush.msra.mxu0 0.0
  %243 = vmatpush.msra.mxu0 0.0
  %244 = vmatpush.msra.mxu0 0.0
  %245 = vmatpush.msra.mxu0 0.0
  %246 = vmatpush.msra.mxu0 0.0
  %247 = vmatpush.msra.mxu0 0.0
  %248 = vmatpush.msra.mxu0 %v158
  %249 = vmatpush.msra.mxu0 %v157
  %250 = vmatmul.f32.gmra.mxu0 %v232
  %v251 = vpop.f32.mrf.mxu0
  %v252 = vadd.f32 0.0, %v251
  %253 = vdwg.mxu0
  %v254 = vsel %vm57, %v53, 0
  %256 = vmatpush.msra.mxu0 0.0
  %257 = vmatpush.msra.mxu0 0.0
  %258 = vmatpush.msra.mxu0 0.0
  %259 = vmatpush.msra.mxu0 0.0
  %260 = vmatpush.msra.mxu0 0.0
  %261 = vmatpush.msra.mxu0 0.0
  %262 = vmatpush.msra.mxu0 0.0
  %263 = vmatpush.msra.mxu0 0.0
  %264 = vmatpush.msra.mxu0 0.0
  %265 = vmatpush.msra.mxu0 0.0
  %266 = vmatpush.msra.mxu0 0.0
  %267 = vmatpush.msra.mxu0 0.0
  %268 = vmatpush.msra.mxu0 0.0
  %269 = vmatpush.msra.mxu0 0.0
  %270 = vmatpush.msra.mxu0 %v158
  %271 = vmatpush.msra.mxu0 %v157
  %272 = vmatmul.f32.gmra.mxu0 %v254
  %v273 = vpop.f32.mrf.mxu0
  %v274 = vadd.f32 %v159, %v273
  %275 = vdwg.mxu0
  %v277 = vrot.slane %v252, 1
  %v278 = vrot.slane %v252, 2
  %v279 = vrot.slane %v252, 3
  %v280 = vrot.slane %v252, 4
  %v281 = vrot.slane %v252, 5
  %v282 = vrot.slane %v252, 6
  %v283 = vrot.slane %v252, 7
  %285 = vset.pattern.permute.xlu0 0
  %286 = vperm.xlu0 %285, %v147
  %v287 = vpop.permute.xlu0 %286
  %290 = vset.pattern.permute.xlu0 0
  %291 = vperm.xlu0 %290, %v148
  %v292 = vpop.permute.xlu0 %291
  %295 = vset.pattern.permute.xlu0 0
  %296 = vperm.xlu0 %295, %v149
  %v297 = vpop.permute.xlu0 %296
  %300 = vset.pattern.permute.xlu0 0
  %301 = vperm.xlu0 %300, %v150
  %v302 = vpop.permute.xlu0 %301
  %305 = vset.pattern.permute.xlu0 0
  %306 = vperm.xlu0 %305, %v151
  %v307 = vpop.permute.xlu0 %306
  %310 = vset.pattern.permute.xlu0 0
  %311 = vperm.xlu0 %310, %v152
  %v312 = vpop.permute.xlu0 %311
  %315 = vset.pattern.permute.xlu0 0
  %316 = vperm.xlu0 %315, %v153
  %v317 = vpop.permute.xlu0 %316
  %320 = vset.pattern.permute.xlu0 0
  %321 = vperm.xlu0 %320, %v154
  %v322 = vpop.permute.xlu0 %321
  %v324 = vperm.slane %v252, 0
  %v325 = vperm.slane %v277, 0
  %v326 = vperm.slane %v278, 0
  %v327 = vperm.slane %v279, 0
  %v328 = vperm.slane %v280, 0
  %v329 = vperm.slane %v281, 0
  %v330 = vperm.slane %v282, 0
  %v331 = vperm.slane %v283, 0
  %v340 = vmul.f32 %v287, %v324
  %v341 = vmul.f32 %v292, %v325
  %v342 = vmul.f32 %v297, %v326
  %v343 = vmul.f32 %v302, %v327
  %v344 = vmul.f32 %v307, %v328
  %v345 = vmul.f32 %v312, %v329
  %v346 = vmul.f32 %v317, %v330
  %v347 = vmul.f32 %v322, %v331
  %v348 = vadd.f32 %v208, %v340
  %v349 = vadd.f32 %v211, %v341
  %v350 = vadd.f32 %v214, %v342
  %v351 = vadd.f32 %v217, %v343
  %v352 = vadd.f32 %v220, %v344
  %v353 = vadd.f32 %v223, %v345
  %v354 = vadd.f32 %v226, %v346
  %v355 = vadd.f32 %v229, %v347
  %v356 = vperm.slane %v274, 0
  %v357 = vadd.f32 %v348, %v356
  %v358 = vadd.f32 %v349, %v356
  %v359 = vadd.f32 %v350, %v356
  %v360 = vadd.f32 %v351, %v356
  %v361 = vadd.f32 %v352, %v356
  %v362 = vadd.f32 %v353, %v356
  %v363 = vadd.f32 %v354, %v356
  %v364 = vadd.f32 %v355, %v356
  %vm365 = vcmp.gt.f32.partialorder %v357, 0.0
  %vm366 = vcmp.gt.f32.partialorder %v358, 0.0
  %vm367 = vcmp.gt.f32.partialorder %v359, 0.0
  %vm368 = vcmp.gt.f32.partialorder %v360, 0.0
  %vm369 = vcmp.gt.f32.partialorder %v361, 0.0
  %vm370 = vcmp.gt.f32.partialorder %v362, 0.0
  %vm371 = vcmp.gt.f32.partialorder %v363, 0.0
  %vm372 = vcmp.gt.f32.partialorder %v364, 0.0
  %v373 = vmul.f32 %v357, 0.2
  %v374 = vmul.f32 %v358, 0.2
  %v375 = vmul.f32 %v359, 0.2
  %v376 = vmul.f32 %v360, 0.2
  %v377 = vmul.f32 %v361, 0.2
  %v378 = vmul.f32 %v362, 0.2
  %v379 = vmul.f32 %v363, 0.2
  %v380 = vmul.f32 %v364, 0.2
  %v381 = vsel %vm365, %v357, %v373
  %v382 = vsel %vm366, %v358, %v374
  %v383 = vsel %vm367, %v359, %v375
  %v384 = vsel %vm368, %v360, %v376
  %v385 = vsel %vm369, %v361, %v377
  %v386 = vsel %vm370, %v362, %v378
  %v387 = vsel %vm371, %v363, %v379
  %v388 = vsel %vm372, %v364, %v380
  %v390 = vperm.slane %v162, 0
  %v393 = vsel %vm57, %v381, 0
  %v396 = vsel %vm57, %v382, 0
  %v399 = vsel %vm57, %v383, 0
  %v402 = vsel %vm57, %v384, 0
  %v405 = vsel %vm57, %v385, 0
  %v408 = vsel %vm57, %v386, 0
  %v411 = vsel %vm57, %v387, 0
  %v414 = vsel %vm57, %v388, 0
  %416 = vmatpush.msra.mxu0 0.0
  %417 = vmatpush.msra.mxu0 0.0
  %418 = vmatpush.msra.mxu0 0.0
  %419 = vmatpush.msra.mxu0 0.0
  %420 = vmatpush.msra.mxu0 0.0
  %421 = vmatpush.msra.mxu0 0.0
  %422 = vmatpush.msra.mxu0 0.0
  %423 = vmatpush.msra.mxu0 0.0
  %424 = vmatpush.msra.mxu0 0.0
  %425 = vmatpush.msra.mxu0 0.0
  %426 = vmatpush.msra.mxu0 0.0
  %427 = vmatpush.msra.mxu0 0.0
  %428 = vmatpush.msra.mxu0 0.0
  %429 = vmatpush.msra.mxu0 0.0
  %430 = vmatpush.msra.mxu0 %v161
  %431 = vmatpush.msra.mxu0 %v160
  %432 = vmatmul.f32.gmra.mxu0 %v393
  %v433 = vpop.f32.mrf.mxu0
  %v434 = vadd.f32 %v390, %v433
  %435 = vmatmul.f32.gmra.mxu0 %v396
  %v436 = vpop.f32.mrf.mxu0
  %v437 = vadd.f32 %v390, %v436
  %438 = vmatmul.f32.gmra.mxu0 %v399
  %v439 = vpop.f32.mrf.mxu0
  %v440 = vadd.f32 %v390, %v439
  %441 = vmatmul.f32.gmra.mxu0 %v402
  %v442 = vpop.f32.mrf.mxu0
  %v443 = vadd.f32 %v390, %v442
  %444 = vmatmul.f32.gmra.mxu0 %v405
  %v445 = vpop.f32.mrf.mxu0
  %v446 = vadd.f32 %v390, %v445
  %447 = vmatmul.f32.gmra.mxu0 %v408
  %v448 = vpop.f32.mrf.mxu0
  %v449 = vadd.f32 %v390, %v448
  %450 = vmatmul.f32.gmra.mxu0 %v411
  %v451 = vpop.f32.mrf.mxu0
  %v452 = vadd.f32 %v390, %v451
  %453 = vmatmul.f32.gmra.mxu0 %v414
  %v454 = vpop.f32.mrf.mxu0
  %v455 = vadd.f32 %v390, %v454
  %456 = vdwg.mxu0
  %v457 = vmul.f32 %v434, 1.442695
  %v458 = vpow.pop %v457
  %v459 = vmul.f32 %v437, 1.442695
  %v460 = vpow.pop %v459
  %v461 = vmul.f32 %v440, 1.442695
  %v462 = vpow.pop %v461
  %v463 = vmul.f32 %v443, 1.442695
  %v464 = vpow.pop %v463
  %v465 = vmul.f32 %v446, 1.442695
  %v466 = vpow.pop %v465
  %v467 = vmul.f32 %v449, 1.442695
  %v468 = vpow.pop %v467
  %v469 = vmul.f32 %v452, 1.442695
  %v470 = vpow.pop %v469
  %v471 = vmul.f32 %v455, 1.442695
  %v472 = vpow.pop %v471
  %v473 = vmul.f32 %v458, %v147
  %v474 = vmul.f32 %v460, %v148
  %v475 = vmul.f32 %v462, %v149
  %v476 = vmul.f32 %v464, %v150
  %v477 = vmul.f32 %v466, %v151
  %v478 = vmul.f32 %v468, %v152
  %v479 = vmul.f32 %v470, %v153
  %v480 = vmul.f32 %v472, %v154
  %vm481 = vcmask 7168
  %v482 = vsel %vm481, %v473, 0.0
  %v483 = vrot.slane %v482, 4
  %v484 = vadd.f32 %v482, %v483
  %v485 = vrot.slane %v484, 2
  %v486 = vadd.f32 %v484, %v485
  %v487 = vrot.slane %v486, 1
  %v488 = vadd.f32 %v486, %v487
  %v489 = vsel %vm481, %v474, 0.0
  %v490 = vrot.slane %v489, 4
  %v491 = vadd.f32 %v489, %v490
  %v492 = vrot.slane %v491, 2
  %v493 = vadd.f32 %v491, %v492
  %v494 = vrot.slane %v493, 1
  %v495 = vadd.f32 %v493, %v494
  %v496 = vsel %vm481, %v475, 0.0
  %v497 = vrot.slane %v496, 4
  %v498 = vadd.f32 %v496, %v497
  %v499 = vrot.slane %v498, 2
  %v500 = vadd.f32 %v498, %v499
  %v501 = vrot.slane %v500, 1
  %v502 = vadd.f32 %v500, %v501
  %v503 = vsel %vm481, %v476, 0.0
  %v504 = vrot.slane %v503, 4
  %v505 = vadd.f32 %v503, %v504
  %v506 = vrot.slane %v505, 2
  %v507 = vadd.f32 %v505, %v506
  %v508 = vrot.slane %v507, 1
  %v509 = vadd.f32 %v507, %v508
  %v510 = vsel %vm481, %v477, 0.0
  %v511 = vrot.slane %v510, 4
  %v512 = vadd.f32 %v510, %v511
  %v513 = vrot.slane %v512, 2
  %v514 = vadd.f32 %v512, %v513
  %v515 = vrot.slane %v514, 1
  %v516 = vadd.f32 %v514, %v515
  %v517 = vsel %vm481, %v478, 0.0
  %v518 = vrot.slane %v517, 4
  %v519 = vadd.f32 %v517, %v518
  %v520 = vrot.slane %v519, 2
  %v521 = vadd.f32 %v519, %v520
  %v522 = vrot.slane %v521, 1
  %v523 = vadd.f32 %v521, %v522
  %v524 = vsel %vm481, %v479, 0.0
  %v525 = vrot.slane %v524, 4
  %v526 = vadd.f32 %v524, %v525
  %v527 = vrot.slane %v526, 2
  %v528 = vadd.f32 %v526, %v527
  %v529 = vrot.slane %v528, 1
  %v530 = vadd.f32 %v528, %v529
  %v531 = vsel %vm481, %v480, 0.0
  %v532 = vrot.slane %v531, 4
  %v533 = vadd.f32 %v531, %v532
  %v534 = vrot.slane %v533, 2
  %v535 = vadd.f32 %v533, %v534
  %v536 = vrot.slane %v535, 1
  %v537 = vadd.f32 %v535, %v536
  %v538 = vadd.f32 %v488, 1e-10
  %v539 = vadd.f32 %v495, 1e-10
  %v540 = vadd.f32 %v502, 1e-10
  %v541 = vadd.f32 %v509, 1e-10
  %v542 = vadd.f32 %v516, 1e-10
  %v543 = vadd.f32 %v523, 1e-10
  %v544 = vadd.f32 %v530, 1e-10
  %v545 = vadd.f32 %v537, 1e-10
  %v546 = vrcp.pop %v538
  %v547 = vmul.f32 %v538, %v546
  %v548 = vsub.f32 1.0, %v547
  %v549 = vmul.f32 %v546, %v548
  %v550 = vadd.f32 %v546, %v549
  %vm551 = vweird.f32 %v538
  %vm552 = vweird.f32 %v546
  %vm553 = vmor %vm551, %vm552
  %v554 = vsel %vm553, %v546, %v550
  %v555 = vand.u32 2147483647, %v538
  %vm556 = vcmp.eq.f32.partialorder %v555, 8.507059e+37
  %v557 = vand.u32 %v538, 2147483648
  %v558 = vor.u32 1.1754944e-38, %v557
  %v559 = vsel %vm556, %v558, %v554
  %v560 = vmul.f32 %v473, %v559
  %v561 = vrcp.pop %v539
  %v562 = vmul.f32 %v539, %v561
  %v563 = vsub.f32 1.0, %v562
  %v564 = vmul.f32 %v561, %v563
  %v565 = vadd.f32 %v561, %v564
  %vm566 = vweird.f32 %v539
  %vm567 = vweird.f32 %v561
  %vm568 = vmor %vm566, %vm567
  %v569 = vsel %vm568, %v561, %v565
  %v570 = vand.u32 2147483647, %v539
  %vm571 = vcmp.eq.f32.partialorder %v570, 8.507059e+37
  %v572 = vand.u32 %v539, 2147483648
  %v573 = vor.u32 1.1754944e-38, %v572
  %v574 = vsel %vm571, %v573, %v569
  %v575 = vmul.f32 %v474, %v574
  %v576 = vrcp.pop %v540
  %v577 = vmul.f32 %v540, %v576
  %v578 = vsub.f32 1.0, %v577
  %v579 = vmul.f32 %v576, %v578
  %v580 = vadd.f32 %v576, %v579
  %vm581 = vweird.f32 %v540
  %vm582 = vweird.f32 %v576
  %vm583 = vmor %vm581, %vm582
  %v584 = vsel %vm583, %v576, %v580
  %v585 = vand.u32 2147483647, %v540
  %vm586 = vcmp.eq.f32.partialorder %v585, 8.507059e+37
  %v587 = vand.u32 %v540, 2147483648
  %v588 = vor.u32 1.1754944e-38, %v587
  %v589 = vsel %vm586, %v588, %v584
  %v590 = vmul.f32 %v475, %v589
  %v591 = vrcp.pop %v541
  %v592 = vmul.f32 %v541, %v591
  %v593 = vsub.f32 1.0, %v592
  %v594 = vmul.f32 %v591, %v593
  %v595 = vadd.f32 %v591, %v594
  %vm596 = vweird.f32 %v541
  %vm597 = vweird.f32 %v591
  %vm598 = vmor %vm596, %vm597
  %v599 = vsel %vm598, %v591, %v595
  %v600 = vand.u32 2147483647, %v541
  %vm601 = vcmp.eq.f32.partialorder %v600, 8.507059e+37
  %v602 = vand.u32 %v541, 2147483648
  %v603 = vor.u32 1.1754944e-38, %v602
  %v604 = vsel %vm601, %v603, %v599
  %v605 = vmul.f32 %v476, %v604
  %v606 = vrcp.pop %v542
  %v607 = vmul.f32 %v542, %v606
  %v608 = vsub.f32 1.0, %v607
  %v609 = vmul.f32 %v606, %v608
  %v610 = vadd.f32 %v606, %v609
  %vm611 = vweird.f32 %v542
  %vm612 = vweird.f32 %v606
  %vm613 = vmor %vm611, %vm612
  %v614 = vsel %vm613, %v606, %v610
  %v615 = vand.u32 2147483647, %v542
  %vm616 = vcmp.eq.f32.partialorder %v615, 8.507059e+37
  %v617 = vand.u32 %v542, 2147483648
  %v618 = vor.u32 1.1754944e-38, %v617
  %v619 = vsel %vm616, %v618, %v614
  %v620 = vmul.f32 %v477, %v619
  %v621 = vrcp.pop %v543
  %v622 = vmul.f32 %v543, %v621
  %v623 = vsub.f32 1.0, %v622
  %v624 = vmul.f32 %v621, %v623
  %v625 = vadd.f32 %v621, %v624
  %vm626 = vweird.f32 %v543
  %vm627 = vweird.f32 %v621
  %vm628 = vmor %vm626, %vm627
  %v629 = vsel %vm628, %v621, %v625
  %v630 = vand.u32 2147483647, %v543
  %vm631 = vcmp.eq.f32.partialorder %v630, 8.507059e+37
  %v632 = vand.u32 %v543, 2147483648
  %v633 = vor.u32 1.1754944e-38, %v632
  %v634 = vsel %vm631, %v633, %v629
  %v635 = vmul.f32 %v478, %v634
  %v636 = vrcp.pop %v544
  %v637 = vmul.f32 %v544, %v636
  %v638 = vsub.f32 1.0, %v637
  %v639 = vmul.f32 %v636, %v638
  %v640 = vadd.f32 %v636, %v639
  %vm641 = vweird.f32 %v544
  %vm642 = vweird.f32 %v636
  %vm643 = vmor %vm641, %vm642
  %v644 = vsel %vm643, %v636, %v640
  %v645 = vand.u32 2147483647, %v544
  %vm646 = vcmp.eq.f32.partialorder %v645, 8.507059e+37
  %v647 = vand.u32 %v544, 2147483648
  %v648 = vor.u32 1.1754944e-38, %v647
  %v649 = vsel %vm646, %v648, %v644
  %v650 = vmul.f32 %v479, %v649
  %v651 = vrcp.pop %v545
  %v652 = vmul.f32 %v545, %v651
  %v653 = vsub.f32 1.0, %v652
  %v654 = vmul.f32 %v651, %v653
  %v655 = vadd.f32 %v651, %v654
  %vm656 = vweird.f32 %v545
  %vm657 = vweird.f32 %v651
  %vm658 = vmor %vm656, %vm657
  %v659 = vsel %vm658, %v651, %v655
  %v660 = vand.u32 2147483647, %v545
  %vm661 = vcmp.eq.f32.partialorder %v660, 8.507059e+37
  %v662 = vand.u32 %v545, 2147483648
  %v663 = vor.u32 1.1754944e-38, %v662
  %v664 = vsel %vm661, %v663, %v659
  %v665 = vmul.f32 %v480, %v664
  %667 = vset.pattern.permute.xlu0 0
  %668 = vperm.xlu0 %667, %v560
  %v669 = vpop.permute.xlu0 %668
  %672 = vset.pattern.permute.xlu0 0
  %673 = vperm.xlu0 %672, %v575
  %v674 = vpop.permute.xlu0 %673
  %677 = vset.pattern.permute.xlu0 0
  %678 = vperm.xlu0 %677, %v590
  %v679 = vpop.permute.xlu0 %678
  %682 = vset.pattern.permute.xlu0 0
  %683 = vperm.xlu0 %682, %v605
  %v684 = vpop.permute.xlu0 %683
  %687 = vset.pattern.permute.xlu0 0
  %688 = vperm.xlu0 %687, %v620
  %v689 = vpop.permute.xlu0 %688
  %692 = vset.pattern.permute.xlu0 0
  %693 = vperm.xlu0 %692, %v635
  %v694 = vpop.permute.xlu0 %693
  %697 = vset.pattern.permute.xlu0 0
  %698 = vperm.xlu0 %697, %v650
  %v699 = vpop.permute.xlu0 %698
  %702 = vset.pattern.permute.xlu0 0
  %703 = vperm.xlu0 %702, %v665
  %v704 = vpop.permute.xlu0 %703
  %v706 = vmul.f32 %v669, %v100
  %v707 = vmul.f32 %v674, %v103
  %v708 = vmul.f32 %v679, %v106
  %v709 = vmul.f32 %v684, %v109
  %v710 = vmul.f32 %v689, %v112
  %v711 = vmul.f32 %v694, %v115
  %v712 = vmul.f32 %v699, %v118
  %v713 = vmul.f32 %v704, %v121
  %v714 = vsel %vm57, %v706, 0.0
  %v715 = vrot.slane %v714, 4
  %v716 = vadd.f32 %v714, %v715
  %v717 = vrot.slane %v716, 2
  %v718 = vadd.f32 %v716, %v717
  %v719 = vrot.slane %v718, 1
  %v720 = vadd.f32 %v718, %v719
  %v721 = vsel %vm57, %v707, 0.0
  %v722 = vrot.slane %v721, 4
  %v723 = vadd.f32 %v721, %v722
  %v724 = vrot.slane %v723, 2
  %v725 = vadd.f32 %v723, %v724
  %v726 = vrot.slane %v725, 1
  %v727 = vadd.f32 %v725, %v726
  %v728 = vsel %vm57, %v708, 0.0
  %v729 = vrot.slane %v728, 4
  %v730 = vadd.f32 %v728, %v729
  %v731 = vrot.slane %v730, 2
  %v732 = vadd.f32 %v730, %v731
  %v733 = vrot.slane %v732, 1
  %v734 = vadd.f32 %v732, %v733
  %v735 = vsel %vm57, %v709, 0.0
  %v736 = vrot.slane %v735, 4
  %v737 = vadd.f32 %v735, %v736
  %v738 = vrot.slane %v737, 2
  %v739 = vadd.f32 %v737, %v738
  %v740 = vrot.slane %v739, 1
  %v741 = vadd.f32 %v739, %v740
  %v742 = vsel %vm57, %v710, 0.0
  %v743 = vrot.slane %v742, 4
  %v744 = vadd.f32 %v742, %v743
  %v745 = vrot.slane %v744, 2
  %v746 = vadd.f32 %v744, %v745
  %v747 = vrot.slane %v746, 1
  %v748 = vadd.f32 %v746, %v747
  %v749 = vsel %vm57, %v711, 0.0
  %v750 = vrot.slane %v749, 4
  %v751 = vadd.f32 %v749, %v750
  %v752 = vrot.slane %v751, 2
  %v753 = vadd.f32 %v751, %v752
  %v754 = vrot.slane %v753, 1
  %v755 = vadd.f32 %v753, %v754
  %v756 = vsel %vm57, %v712, 0.0
  %v757 = vrot.slane %v756, 4
  %v758 = vadd.f32 %v756, %v757
  %v759 = vrot.slane %v758, 2
  %v760 = vadd.f32 %v758, %v759
  %v761 = vrot.slane %v760, 1
  %v762 = vadd.f32 %v760, %v761
  %v763 = vsel %vm57, %v713, 0.0
  %v764 = vrot.slane %v763, 4
  %v765 = vadd.f32 %v763, %v764
  %v766 = vrot.slane %v765, 2
  %v767 = vadd.f32 %v765, %v766
  %v768 = vrot.slane %v767, 1
  %v769 = vadd.f32 %v767, %v768
  %v771 = vperm.slane %v165, 0
  %vm781 = vcmask 1041409
  %v782 = vsel %vm781, %v727, %v720
  %vm783 = vcmask 1042434
  %v784 = vsel %vm783, %v734, %v782
  %vm785 = vcmask 1043459
  %v786 = vsel %vm785, %v741, %v784
  %vm787 = vcmask 1044484
  %v788 = vsel %vm787, %v748, %v786
  %vm789 = vcmask 1045509
  %v790 = vsel %vm789, %v755, %v788
  %vm791 = vcmask 1046534
  %v792 = vsel %vm791, %v762, %v790
  %vm793 = vcmask 1047559
  %v794 = vsel %vm793, %v769, %v792
  %v795 = vsel %vm57, %v794, 0
  %797 = vmatpush.msra.mxu0 0.0
  %798 = vmatpush.msra.mxu0 0.0
  %799 = vmatpush.msra.mxu0 0.0
  %800 = vmatpush.msra.mxu0 0.0
  %801 = vmatpush.msra.mxu0 0.0
  %802 = vmatpush.msra.mxu0 0.0
  %803 = vmatpush.msra.mxu0 0.0
  %804 = vmatpush.msra.mxu0 0.0
  %805 = vmatpush.msra.mxu0 0.0
  %806 = vmatpush.msra.mxu0 0.0
  %807 = vmatpush.msra.mxu0 0.0
  %808 = vmatpush.msra.mxu0 0.0
  %809 = vmatpush.msra.mxu0 0.0
  %810 = vmatpush.msra.mxu0 0.0
  %811 = vmatpush.msra.mxu0 %v164
  %812 = vmatpush.msra.mxu0 %v163
  %813 = vmatmul.f32.gmra.mxu0 %v795
  %v814 = vpop.f32.mrf.mxu0
  %v815 = vadd.f32 %v771, %v814
  %816 = vdwg.mxu0
  %v817 = vmax.f32 %v815, 0.0
  %818 = vst.msk [vmem:[%s12] sm:$0xff] %vm57, %v817
  // Predicated region
  $region50: #{user_model_forward.10} parent=0 // pred_check
    _
  $region51: #{user_model_forward.10} parent=0 // pred_check_branch
    %820 = sbr.rel (0) target = $region53
  $region52: #{user_model_forward.10} parent=0 // pred_region
    _
  $region53: #{user_model_forward.10} parent=0 // pred_fallthru
    _
  // Predicated region
  $region54: #{user_model_forward.10} parent=0 // pred_check
    _
  $region55: #{user_model_forward.10} parent=0 // pred_check_branch
    %822 = sbr.rel (0) target = $region57
  $region56: #{user_model_forward.10} parent=0 // pred_region
    _
  $region57: #{user_model_forward.10} parent=0 // pred_fallthru
    _

// kernel: user_model_forward.9
$region0: #{user_model_forward.9}
  #allocation0 [shape = 'u32[]', space=smem, size = 0x4, offset = 0x4, fixed_abs, tag = 'smem constant byte address 0x4 - core index']
  #allocation1 [shape = 'u32[72,128]{1,0:T(1,128)}', space=vmem, size = 0x9000, scoped, tag = 'internal scratch']
  #allocation2 [shape = 'f32[1,1]{1,0:T(1,128)S(1)}', space=vmem, size = 0x200, scoped, tag = 'scoped memory for user_model_forward.9']
  %s0 = inlined_call_operand.vmem [shape: f32[16,8,16], index: 0, kind: input, shape index: {}]
  %s1 = inlined_call_operand.vmem [shape: f32[16,8,16], index: 1, kind: input, shape index: {}]
  %s2 = inlined_call_operand.vmem [shape: f32[16,16], index: 2, kind: input, shape index: {}]
  %s3 = inlined_call_operand.vmem [shape: f32[16,8,1], index: 3, kind: input, shape index: {}]
  %s4 = inlined_call_operand.vmem [shape: f32[16,16], index: 4, kind: input, shape index: {}]
  %s5 = inlined_call_operand.vmem [shape: f32[16,16], index: 5, kind: input, shape index: {}]
  %s6 = inlined_call_operand.vmem [shape: f32[1,16], index: 6, kind: input, shape index: {}]
  %s7 = inlined_call_operand.vmem [shape: f32[16,16], index: 7, kind: input, shape index: {}]
  %s8 = inlined_call_operand.vmem [shape: f32[1,16], index: 8, kind: input, shape index: {}]
  %s9 = inlined_call_operand.vmem [shape: f32[16,16], index: 9, kind: input, shape index: {}]
  %s10 = inlined_call_operand.vmem [shape: f32[1,16], index: 10, kind: input, shape index: {}]
  %s11 = inlined_call_operand.vmem [shape: f32[16,16], index: 11, kind: input, shape index: {}]
  %s12 = inlined_call_operand.vmem [shape: f32[16,16], index: 12, kind: input, shape index: {}]
  %s13 = inlined_call_operand.vmem [shape: f32[1,16], index: 13, kind: input, shape index: {}]
  %s14 = inlined_call_operand.vmem [shape: f32[16,1], index: 14, kind: input, shape index: {}]
  %s15 = inlined_call_operand.<no memory space> [shape: f32[1,1], index: 15, kind: input, shape index: {}]
  %s16 = inlined_call_operand.vmem [shape: f32[16,16], index: 16, kind: input, shape index: {}]
  %s17 = inlined_call_operand.vmem [shape: f32[1,16], index: 17, kind: input, shape index: {}]
  %s18 = inlined_call_operand.vmem [shape: f32[16,16], index: 18, kind: output, shape index: {}]
  %s19 = sld [smem:[#allocation0]]
  $region82: #{user_model_forward.9} parent=0
    _
  %s21 = ssub.s32 1, %s19
  %s22 = scalar_select 0, %s21, %s19
  %v23 = vstv %s15
  %24 = vst [vmem:[#allocation2] sm:$0x1] %v23
  // Predicated region
  $region2: #{user_model_forward.9} parent=0 // pred_check
    _
  $region3: #{user_model_forward.9} parent=0 // pred_check_branch
    %26 = sbr.rel (0) target = $region5
  $region4: #{user_model_forward.9} parent=0 // pred_region
    _
  $region5: #{user_model_forward.9} parent=0 // pred_fallthru
    _
  // Predicated region
  $region6: #{user_model_forward.9} parent=0 // pred_check
    _
  $region7: #{user_model_forward.9} parent=0 // pred_check_branch
    %28 = sbr.rel (0) target = $region9
  $region8: #{user_model_forward.9} parent=0 // pred_region
    _
  $region9: #{user_model_forward.9} parent=0 // pred_fallthru
    _
  // Predicated region
  $region10: #{user_model_forward.9} parent=0 // pred_check
    _
  $region11: #{user_model_forward.9} parent=0 // pred_check_branch
    %30 = sbr.rel (0) target = $region13
  $region12: #{user_model_forward.9} parent=0 // pred_region
    _
  $region13: #{user_model_forward.9} parent=0 // pred_fallthru
    _
  // Predicated region
  $region14: #{user_model_forward.9} parent=0 // pred_check
    _
  $region15: #{user_model_forward.9} parent=0 // pred_check_branch
    %32 = sbr.rel (0) target = $region17
  $region16: #{user_model_forward.9} parent=0 // pred_region
    _
  $region17: #{user_model_forward.9} parent=0 // pred_fallthru
    _
  // Predicated region
  $region18: #{user_model_forward.9} parent=0 // pred_check
    _
  $region19: #{user_model_forward.9} parent=0 // pred_check_branch
    %34 = sbr.rel (0) target = $region21
  $region20: #{user_model_forward.9} parent=0 // pred_region
    _
  $region21: #{user_model_forward.9} parent=0 // pred_fallthru
    _
  // Predicated region
  $region22: #{user_model_forward.9} parent=0 // pred_check
    _
  $region23: #{user_model_forward.9} parent=0 // pred_check_branch
    %36 = sbr.rel (0) target = $region25
  $region24: #{user_model_forward.9} parent=0 // pred_region
    _
  $region25: #{user_model_forward.9} parent=0 // pred_fallthru
    _
  // Predicated region
  $region26: #{user_model_forward.9} parent=0 // pred_check
    _
  $region27: #{user_model_forward.9} parent=0 // pred_check_branch
    %38 = sbr.rel (0) target = $region29
  $region28: #{user_model_forward.9} parent=0 // pred_region
    _
  $region29: #{user_model_forward.9} parent=0 // pred_fallthru
    _
  // Predicated region
  $region30: #{user_model_forward.9} parent=0 // pred_check
    _
  $region31: #{user_model_forward.9} parent=0 // pred_check_branch
    %40 = sbr.rel (0) target = $region33
  $region32: #{user_model_forward.9} parent=0 // pred_region
    _
  $region33: #{user_model_forward.9} parent=0 // pred_fallthru
    _
  // Predicated region
  $region34: #{user_model_forward.9} parent=0 // pred_check
    _
  $region35: #{user_model_forward.9} parent=0 // pred_check_branch
    %42 = sbr.rel (0) target = $region37
  $region36: #{user_model_forward.9} parent=0 // pred_region
    _
  $region37: #{user_model_forward.9} parent=0 // pred_fallthru
    _
  // Predicated region
  $region38: #{user_model_forward.9} parent=0 // pred_check
    _
  $region39: #{user_model_forward.9} parent=0 // pred_check_branch
    %44 = sbr.rel (0) target = $region41
  $region40: #{user_model_forward.9} parent=0 // pred_region
    _
  $region41: #{user_model_forward.9} parent=0 // pred_fallthru
    _
  // Predicated region
  $region42: #{user_model_forward.9} parent=0 // pred_check
    _
  $region43: #{user_model_forward.9} parent=0 // pred_check_branch
    %46 = sbr.rel (0) target = $region45
  $region44: #{user_model_forward.9} parent=0 // pred_region
    _
  $region45: #{user_model_forward.9} parent=0 // pred_fallthru
    _
  // Predicated region
  $region46: #{user_model_forward.9} parent=0 // pred_check
    _
  $region47: #{user_model_forward.9} parent=0 // pred_check_branch
    %48 = sbr.rel (0) target = $region49
  $region48: #{user_model_forward.9} parent=0 // pred_region
    _
  $region49: #{user_model_forward.9} parent=0 // pred_fallthru
    _
  // Predicated region
  $region50: #{user_model_forward.9} parent=0 // pred_check
    _
  $region51: #{user_model_forward.9} parent=0 // pred_check_branch
    %50 = sbr.rel (0) target = $region53
  $region52: #{user_model_forward.9} parent=0 // pred_region
    _
  $region53: #{user_model_forward.9} parent=0 // pred_fallthru
    _
  // Predicated region
  $region54: #{user_model_forward.9} parent=0 // pred_check
    _
  $region55: #{user_model_forward.9} parent=0 // pred_check_branch
    %52 = sbr.rel (0) target = $region57
  $region56: #{user_model_forward.9} parent=0 // pred_region
    _
  $region57: #{user_model_forward.9} parent=0 // pred_fallthru
    _
  // Predicated region
  $region58: #{user_model_forward.9} parent=0 // pred_check
    _
  $region59: #{user_model_forward.9} parent=0 // pred_check_branch
    %54 = sbr.rel (0) target = $region61
  $region60: #{user_model_forward.9} parent=0 // pred_region
    _
  $region61: #{user_model_forward.9} parent=0 // pred_fallthru
    _
  // Predicated region
  $region62: #{user_model_forward.9} parent=0 // pred_check
    _
  $region63: #{user_model_forward.9} parent=0 // pred_check_branch
    %56 = sbr.rel (0) target = $region65
  $region64: #{user_model_forward.9} parent=0 // pred_region
    _
  $region65: #{user_model_forward.9} parent=0 // pred_fallthru
    _
  // Predicated region
  $region66: #{user_model_forward.9} parent=0 // pred_check
    _
  $region67: #{user_model_forward.9} parent=0 // pred_check_branch
    %58 = sbr.rel (0) target = $region69
  $region68: #{user_model_forward.9} parent=0 // pred_region
    _
  $region69: #{user_model_forward.9} parent=0 // pred_fallthru
    _
  // Predicated region
  $region70: #{user_model_forward.9} parent=0 // pred_check
    _
  $region71: #{user_model_forward.9} parent=0 // pred_check_branch
    %60 = sbr.rel (0) target = $region73
  $region72: #{user_model_forward.9} parent=0 // pred_region
    _
  $region73: #{user_model_forward.9} parent=0 // pred_fallthru
    _
  %v61 = vld [vmem:[%s0] sm:$0xff]
  %v62 = vld [vmem:[%s0 + $0x8] sm:$0xff]
  %v63 = vld [vmem:[%s0 + $0x10] sm:$0xff]
  %v64 = vld [vmem:[%s0 + $0x18] sm:$0xff]
  %v65 = vld [vmem:[%s0 + $0x20] sm:$0xff]
  %v66 = vld [vmem:[%s0 + $0x28] sm:$0xff]
  %v67 = vld [vmem:[%s0 + $0x30] sm:$0xff]
  %v68 = vld [vmem:[%s0 + $0x38] sm:$0xff]
  %v69 = vld [vmem:[%s0 + $0x40] sm:$0xff]
  %v70 = vld [vmem:[%s0 + $0x48] sm:$0xff]
  %v71 = vld [vmem:[%s0 + $0x50] sm:$0xff]
  %v72 = vld [vmem:[%s0 + $0x58] sm:$0xff]
  %v73 = vld [vmem:[%s0 + $0x60] sm:$0xff]
  %v74 = vld [vmem:[%s0 + $0x68] sm:$0xff]
  %v75 = vld [vmem:[%s0 + $0x70] sm:$0xff]
  %v76 = vld [vmem:[%s0 + $0x78] sm:$0xff]
  %v77 = vld [vmem:[%s1] sm:$0xff]
  %v78 = vld [vmem:[%s1 + $0x8] sm:$0xff]
  %v79 = vld [vmem:[%s1 + $0x10] sm:$0xff]
  %v80 = vld [vmem:[%s1 + $0x18] sm:$0xff]
  %v81 = vld [vmem:[%s1 + $0x20] sm:$0xff]
  %v82 = vld [vmem:[%s1 + $0x28] sm:$0xff]
  %v83 = vld [vmem:[%s1 + $0x30] sm:$0xff]
  %v84 = vld [vmem:[%s1 + $0x38] sm:$0xff]
  %v85 = vld [vmem:[%s1 + $0x40] sm:$0xff]
  %v86 = vld [vmem:[%s1 + $0x48] sm:$0xff]
  %v87 = vld [vmem:[%s1 + $0x50] sm:$0xff]
  %v88 = vld [vmem:[%s1 + $0x58] sm:$0xff]
  %v89 = vld [vmem:[%s1 + $0x60] sm:$0xff]
  %v90 = vld [vmem:[%s1 + $0x68] sm:$0xff]
  %v91 = vld [vmem:[%s1 + $0x70] sm:$0xff]
  %v92 = vld [vmem:[%s1 + $0x78] sm:$0xff]
  %v93 = vld [vmem:[%s4] sm:$0xff]
  %v94 = vld [vmem:[%s4 + $0x8] sm:$0xff]
  %v95 = vld [vmem:[%s5] sm:$0xff]
  %v96 = vld [vmem:[%s5 + $0x8] sm:$0xff]
  %vm97 = vcmask 130048
  %v99 = vsel %vm97, %v77, 0
  %v102 = vsel %vm97, %v78, 0
  %v105 = vsel %vm97, %v79, 0
  %v108 = vsel %vm97, %v80, 0
  %v111 = vsel %vm97, %v81, 0
  %v114 = vsel %vm97, %v82, 0
  %v117 = vsel %vm97, %v83, 0
  %v120 = vsel %vm97, %v84, 0
  %v123 = vsel %vm97, %v85, 0
  %v126 = vsel %vm97, %v86, 0
  %v129 = vsel %vm97, %v87, 0
  %v132 = vsel %vm97, %v88, 0
  %v135 = vsel %vm97, %v89, 0
  %v138 = vsel %vm97, %v90, 0
  %v141 = vsel %vm97, %v91, 0
  %v144 = vsel %vm97, %v92, 0
  %146 = vmatpush.msra.mxu0 0.0
  %147 = vmatpush.msra.mxu0 0.0
  %148 = vmatpush.msra.mxu0 0.0
  %149 = vmatpush.msra.mxu0 0.0
  %150 = vmatpush.msra.mxu0 0.0
  %151 = vmatpush.msra.mxu0 0.0
  %152 = vmatpush.msra.mxu0 0.0
  %153 = vmatpush.msra.mxu0 0.0
  %154 = vmatpush.msra.mxu0 0.0
  %155 = vmatpush.msra.mxu0 0.0
  %156 = vmatpush.msra.mxu0 0.0
  %157 = vmatpush.msra.mxu0 0.0
  %158 = vmatpush.msra.mxu0 0.0
  %159 = vmatpush.msra.mxu0 0.0
  %160 = vmatpush.msra.mxu0 %v96
  %161 = vmatpush.msra.mxu0 %v95
  %162 = vmatmul.f32.gmra.mxu0 %v99
  %v163 = vpop.f32.mrf.mxu0
  %v164 = vadd.f32 0.0, %v163
  %165 = vmatmul.f32.gmra.mxu0 %v102
  %v166 = vpop.f32.mrf.mxu0
  %v167 = vadd.f32 0.0, %v166
  %168 = vmatmul.f32.gmra.mxu0 %v105
  %v169 = vpop.f32.mrf.mxu0
  %v170 = vadd.f32 0.0, %v169
  %171 = vmatmul.f32.gmra.mxu0 %v108
  %v172 = vpop.f32.mrf.mxu0
  %v173 = vadd.f32 0.0, %v172
  %174 = vmatmul.f32.gmra.mxu0 %v111
  %v175 = vpop.f32.mrf.mxu0
  %v176 = vadd.f32 0.0, %v175
  %177 = vmatmul.f32.gmra.mxu0 %v114
  %v178 = vpop.f32.mrf.mxu0
  %v179 = vadd.f32 0.0, %v178
  %180 = vmatmul.f32.gmra.mxu0 %v117
  %v181 = vpop.f32.mrf.mxu0
  %v182 = vadd.f32 0.0, %v181
  %183 = vmatmul.f32.gmra.mxu0 %v120
  %v184 = vpop.f32.mrf.mxu0
  %v185 = vadd.f32 0.0, %v184
  %186 = vmatmul.f32.gmra.mxu0 %v123
  %v187 = vpop.f32.mrf.mxu0
  %v188 = vadd.f32 0.0, %v187
  %189 = vmatmul.f32.gmra.mxu0 %v126
  %v190 = vpop.f32.mrf.mxu0
  %v191 = vadd.f32 0.0, %v190
  %192 = vmatmul.f32.gmra.mxu0 %v129
  %v193 = vpop.f32.mrf.mxu0
  %v194 = vadd.f32 0.0, %v193
  %195 = vmatmul.f32.gmra.mxu0 %v132
  %v196 = vpop.f32.mrf.mxu0
  %v197 = vadd.f32 0.0, %v196
  %198 = vmatmul.f32.gmra.mxu0 %v135
  %v199 = vpop.f32.mrf.mxu0
  %v200 = vadd.f32 0.0, %v199
  %201 = vmatmul.f32.gmra.mxu0 %v138
  %v202 = vpop.f32.mrf.mxu0
  %v203 = vadd.f32 0.0, %v202
  %204 = vmatmul.f32.gmra.mxu0 %v141
  %v205 = vpop.f32.mrf.mxu0
  %v206 = vadd.f32 0.0, %v205
  %207 = vmatmul.f32.gmra.mxu0 %v144
  %v208 = vpop.f32.mrf.mxu0
  %v209 = vadd.f32 0.0, %v208
  %210 = vdwg.mxu0
  %v212 = vsel %vm97, %v61, 0
  %v215 = vsel %vm97, %v62, 0
  %v218 = vsel %vm97, %v63, 0
  %v221 = vsel %vm97, %v64, 0
  %v224 = vsel %vm97, %v65, 0
  %v227 = vsel %vm97, %v66, 0
  %v230 = vsel %vm97, %v67, 0
  %v233 = vsel %vm97, %v68, 0
  %v236 = vsel %vm97, %v69, 0
  %v239 = vsel %vm97, %v70, 0
  %v242 = vsel %vm97, %v71, 0
  %v245 = vsel %vm97, %v72, 0
  %v248 = vsel %vm97, %v73, 0
  %v251 = vsel %vm97, %v74, 0
  %v254 = vsel %vm97, %v75, 0
  %v257 = vsel %vm97, %v76, 0
  %259 = vmatpush.msra.mxu0 0.0
  %260 = vmatpush.msra.mxu0 0.0
  %261 = vmatpush.msra.mxu0 0.0
  %262 = vmatpush.msra.mxu0 0.0
  %263 = vmatpush.msra.mxu0 0.0
  %264 = vmatpush.msra.mxu0 0.0
  %265 = vmatpush.msra.mxu0 0.0
  %266 = vmatpush.msra.mxu0 0.0
  %267 = vmatpush.msra.mxu0 0.0
  %268 = vmatpush.msra.mxu0 0.0
  %269 = vmatpush.msra.mxu0 0.0
  %270 = vmatpush.msra.mxu0 0.0
  %271 = vmatpush.msra.mxu0 0.0
  %272 = vmatpush.msra.mxu0 0.0
  %273 = vmatpush.msra.mxu0 %v94
  %274 = vmatpush.msra.mxu0 %v93
  %275 = vmatmul.f32.gmra.mxu0 %v212
  %v276 = vpop.f32.mrf.mxu0
  %v277 = vadd.f32 %v164, %v276
  %278 = vmatmul.f32.gmra.mxu0 %v215
  %v279 = vpop.f32.mrf.mxu0
  %v280 = vadd.f32 %v167, %v279
  %281 = vmatmul.f32.gmra.mxu0 %v218
  %v282 = vpop.f32.mrf.mxu0
  %v283 = vadd.f32 %v170, %v282
  %284 = vmatmul.f32.gmra.mxu0 %v221
  %v285 = vpop.f32.mrf.mxu0
  %v286 = vadd.f32 %v173, %v285
  %287 = vmatmul.f32.gmra.mxu0 %v224
  %v288 = vpop.f32.mrf.mxu0
  %v289 = vadd.f32 %v176, %v288
  %290 = vmatmul.f32.gmra.mxu0 %v227
  %v291 = vpop.f32.mrf.mxu0
  %v292 = vadd.f32 %v179, %v291
  %293 = vmatmul.f32.gmra.mxu0 %v230
  %v294 = vpop.f32.mrf.mxu0
  %v295 = vadd.f32 %v182, %v294
  %296 = vmatmul.f32.gmra.mxu0 %v233
  %v297 = vpop.f32.mrf.mxu0
  %v298 = vadd.f32 %v185, %v297
  %299 = vmatmul.f32.gmra.mxu0 %v236
  %v300 = vpop.f32.mrf.mxu0
  %v301 = vadd.f32 %v188, %v300
  %302 = vmatmul.f32.gmra.mxu0 %v239
  %v303 = vpop.f32.mrf.mxu0
  %v304 = vadd.f32 %v191, %v303
  %305 = vmatmul.f32.gmra.mxu0 %v242
  %v306 = vpop.f32.mrf.mxu0
  %v307 = vadd.f32 %v194, %v306
  %308 = vmatmul.f32.gmra.mxu0 %v245
  %v309 = vpop.f32.mrf.mxu0
  %v310 = vadd.f32 %v197, %v309
  %311 = vmatmul.f32.gmra.mxu0 %v248
  %v312 = vpop.f32.mrf.mxu0
  %v313 = vadd.f32 %v200, %v312
  %314 = vmatmul.f32.gmra.mxu0 %v251
  %v315 = vpop.f32.mrf.mxu0
  %v316 = vadd.f32 %v203, %v315
  %317 = vmatmul.f32.gmra.mxu0 %v254
  %v318 = vpop.f32.mrf.mxu0
  %v319 = vadd.f32 %v206, %v318
  %320 = vmatmul.f32.gmra.mxu0 %v257
  %v321 = vpop.f32.mrf.mxu0
  %v322 = vadd.f32 %v209, %v321
  %323 = vdwg.mxu0
  %v324 = vld [vmem:[%s6] sm:$0x1]
  %v326 = vperm.slane %v324, 0
  %v328 = vadd.f32 %v277, %v326
  %v329 = vadd.f32 %v280, %v326
  %v330 = vadd.f32 %v283, %v326
  %v331 = vadd.f32 %v286, %v326
  %v332 = vadd.f32 %v289, %v326
  %v333 = vadd.f32 %v292, %v326
  %v334 = vadd.f32 %v295, %v326
  %v335 = vadd.f32 %v298, %v326
  %v336 = vadd.f32 %v301, %v326
  %v337 = vadd.f32 %v304, %v326
  %v338 = vadd.f32 %v307, %v326
  %v339 = vadd.f32 %v310, %v326
  %v340 = vadd.f32 %v313, %v326
  %v341 = vadd.f32 %v316, %v326
  %v342 = vadd.f32 %v319, %v326
  %v343 = vadd.f32 %v322, %v326
  %vm344 = vcmp.gt.f32.partialorder %v328, 0.0
  %vm345 = vcmp.gt.f32.partialorder %v329, 0.0
  %vm346 = vcmp.gt.f32.partialorder %v330, 0.0
  %vm347 = vcmp.gt.f32.partialorder %v331, 0.0
  %vm348 = vcmp.gt.f32.partialorder %v332, 0.0
  %vm349 = vcmp.gt.f32.partialorder %v333, 0.0
  %vm350 = vcmp.gt.f32.partialorder %v334, 0.0
  %vm351 = vcmp.gt.f32.partialorder %v335, 0.0
  %vm352 = vcmp.gt.f32.partialorder %v336, 0.0
  %vm353 = vcmp.gt.f32.partialorder %v337, 0.0
  %vm354 = vcmp.gt.f32.partialorder %v338, 0.0
  %vm355 = vcmp.gt.f32.partialorder %v339, 0.0
  %vm356 = vcmp.gt.f32.partialorder %v340, 0.0
  %vm357 = vcmp.gt.f32.partialorder %v341, 0.0
  %vm358 = vcmp.gt.f32.partialorder %v342, 0.0
  %vm359 = vcmp.gt.f32.partialorder %v343, 0.0
  %v360 = vmul.f32 %v328, 0.2
  %v361 = vmul.f32 %v329, 0.2
  %v362 = vmul.f32 %v330, 0.2
  %v363 = vmul.f32 %v331, 0.2
  %v364 = vmul.f32 %v332, 0.2
  %v365 = vmul.f32 %v333, 0.2
  %v366 = vmul.f32 %v334, 0.2
  %v367 = vmul.f32 %v335, 0.2
  %v368 = vmul.f32 %v336, 0.2
  %v369 = vmul.f32 %v337, 0.2
  %v370 = vmul.f32 %v338, 0.2
  %v371 = vmul.f32 %v339, 0.2
  %v372 = vmul.f32 %v340, 0.2
  %v373 = vmul.f32 %v341, 0.2
  %v374 = vmul.f32 %v342, 0.2
  %v375 = vmul.f32 %v343, 0.2
  %v376 = vsel %vm344, %v328, %v360
  %v377 = vsel %vm345, %v329, %v361
  %v378 = vsel %vm346, %v330, %v362
  %v379 = vsel %vm347, %v331, %v363
  %v380 = vsel %vm348, %v332, %v364
  %v381 = vsel %vm349, %v333, %v365
  %v382 = vsel %vm350, %v334, %v366
  %v383 = vsel %vm351, %v335, %v367
  %v384 = vsel %vm352, %v336, %v368
  %v385 = vsel %vm353, %v337, %v369
  %v386 = vsel %vm354, %v338, %v370
  %v387 = vsel %vm355, %v339, %v371
  %v388 = vsel %vm356, %v340, %v372
  %v389 = vsel %vm357, %v341, %v373
  %v390 = vsel %vm358, %v342, %v374
  %v391 = vsel %vm359, %v343, %v375
  %v392 = vld [vmem:[%s7] sm:$0xff]
  %v393 = vld [vmem:[%s7 + $0x8] sm:$0xff]
  %v394 = vld [vmem:[%s8] sm:$0x1]
  %v396 = vperm.slane %v394, 0
  %v399 = vsel %vm97, %v376, 0
  %v402 = vsel %vm97, %v377, 0
  %v405 = vsel %vm97, %v378, 0
  %v408 = vsel %vm97, %v379, 0
  %v411 = vsel %vm97, %v380, 0
  %v414 = vsel %vm97, %v381, 0
  %v417 = vsel %vm97, %v382, 0
  %v420 = vsel %vm97, %v383, 0
  %v423 = vsel %vm97, %v384, 0
  %v426 = vsel %vm97, %v385, 0
  %v429 = vsel %vm97, %v386, 0
  %v432 = vsel %vm97, %v387, 0
  %v435 = vsel %vm97, %v388, 0
  %v438 = vsel %vm97, %v389, 0
  %v441 = vsel %vm97, %v390, 0
  %v444 = vsel %vm97, %v391, 0
  %446 = vmatpush.msra.mxu0 0.0
  %447 = vmatpush.msra.mxu0 0.0
  %448 = vmatpush.msra.mxu0 0.0
  %449 = vmatpush.msra.mxu0 0.0
  %450 = vmatpush.msra.mxu0 0.0
  %451 = vmatpush.msra.mxu0 0.0
  %452 = vmatpush.msra.mxu0 0.0
  %453 = vmatpush.msra.mxu0 0.0
  %454 = vmatpush.msra.mxu0 0.0
  %455 = vmatpush.msra.mxu0 0.0
  %456 = vmatpush.msra.mxu0 0.0
  %457 = vmatpush.msra.mxu0 0.0
  %458 = vmatpush.msra.mxu0 0.0
  %459 = vmatpush.msra.mxu0 0.0
  %460 = vmatpush.msra.mxu0 %v393
  %461 = vmatpush.msra.mxu0 %v392
  %462 = vmatmul.f32.gmra.mxu0 %v399
  %v463 = vpop.f32.mrf.mxu0
  %v464 = vadd.f32 %v396, %v463
  %465 = vmatmul.f32.gmra.mxu0 %v402
  %v466 = vpop.f32.mrf.mxu0
  %v467 = vadd.f32 %v396, %v466
  %468 = vmatmul.f32.gmra.mxu0 %v405
  %v469 = vpop.f32.mrf.mxu0
  %v470 = vadd.f32 %v396, %v469
  %471 = vmatmul.f32.gmra.mxu0 %v408
  %v472 = vpop.f32.mrf.mxu0
  %v473 = vadd.f32 %v396, %v472
  %474 = vmatmul.f32.gmra.mxu0 %v411
  %v475 = vpop.f32.mrf.mxu0
  %v476 = vadd.f32 %v396, %v475
  %477 = vmatmul.f32.gmra.mxu0 %v414
  %v478 = vpop.f32.mrf.mxu0
  %v479 = vadd.f32 %v396, %v478
  %480 = vmatmul.f32.gmra.mxu0 %v417
  %v481 = vpop.f32.mrf.mxu0
  %v482 = vadd.f32 %v396, %v481
  %483 = vmatmul.f32.gmra.mxu0 %v420
  %v484 = vpop.f32.mrf.mxu0
  %v485 = vadd.f32 %v396, %v484
  %486 = vmatmul.f32.gmra.mxu0 %v423
  %v487 = vpop.f32.mrf.mxu0
  %v488 = vadd.f32 %v396, %v487
  %489 = vmatmul.f32.gmra.mxu0 %v426
  %v490 = vpop.f32.mrf.mxu0
  %v491 = vadd.f32 %v396, %v490
  %492 = vmatmul.f32.gmra.mxu0 %v429
  %v493 = vpop.f32.mrf.mxu0
  %v494 = vadd.f32 %v396, %v493
  %495 = vmatmul.f32.gmra.mxu0 %v432
  %v496 = vpop.f32.mrf.mxu0
  %v497 = vadd.f32 %v396, %v496
  %498 = vmatmul.f32.gmra.mxu0 %v435
  %v499 = vpop.f32.mrf.mxu0
  %v500 = vadd.f32 %v396, %v499
  %501 = vmatmul.f32.gmra.mxu0 %v438
  %v502 = vpop.f32.mrf.mxu0
  %v503 = vadd.f32 %v396, %v502
  %504 = vmatmul.f32.gmra.mxu0 %v441
  %v505 = vpop.f32.mrf.mxu0
  %v506 = vadd.f32 %v396, %v505
  %507 = vmatmul.f32.gmra.mxu0 %v444
  %v508 = vpop.f32.mrf.mxu0
  %v509 = vadd.f32 %v396, %v508
  %510 = vdwg.mxu0
  %v511 = vld [vmem:[%s9] sm:$0xff]
  %v512 = vld [vmem:[%s9 + $0x8] sm:$0xff]
  %v513 = vld [vmem:[%s10] sm:$0x1]
  %v515 = vperm.slane %v513, 0
  %v518 = vsel %vm97, %v464, 0
  %v521 = vsel %vm97, %v467, 0
  %v524 = vsel %vm97, %v470, 0
  %v527 = vsel %vm97, %v473, 0
  %v530 = vsel %vm97, %v476, 0
  %v533 = vsel %vm97, %v479, 0
  %v536 = vsel %vm97, %v482, 0
  %v539 = vsel %vm97, %v485, 0
  %v542 = vsel %vm97, %v488, 0
  %v545 = vsel %vm97, %v491, 0
  %v548 = vsel %vm97, %v494, 0
  %v551 = vsel %vm97, %v497, 0
  %v554 = vsel %vm97, %v500, 0
  %v557 = vsel %vm97, %v503, 0
  %v560 = vsel %vm97, %v506, 0
  %v563 = vsel %vm97, %v509, 0
  %565 = vmatpush.msra.mxu0 0.0
  %566 = vmatpush.msra.mxu0 0.0
  %567 = vmatpush.msra.mxu0 0.0
  %568 = vmatpush.msra.mxu0 0.0
  %569 = vmatpush.msra.mxu0 0.0
  %570 = vmatpush.msra.mxu0 0.0
  %571 = vmatpush.msra.mxu0 0.0
  %572 = vmatpush.msra.mxu0 0.0
  %573 = vmatpush.msra.mxu0 0.0
  %574 = vmatpush.msra.mxu0 0.0
  %575 = vmatpush.msra.mxu0 0.0
  %576 = vmatpush.msra.mxu0 0.0
  %577 = vmatpush.msra.mxu0 0.0
  %578 = vmatpush.msra.mxu0 0.0
  %579 = vmatpush.msra.mxu0 %v512
  %580 = vmatpush.msra.mxu0 %v511
  %581 = vmatmul.f32.gmra.mxu0 %v518
  %v582 = vpop.f32.mrf.mxu0
  %v583 = vadd.f32 %v515, %v582
  %584 = vmatmul.f32.gmra.mxu0 %v521
  %v585 = vpop.f32.mrf.mxu0
  %v586 = vadd.f32 %v515, %v585
  %587 = vmatmul.f32.gmra.mxu0 %v524
  %v588 = vpop.f32.mrf.mxu0
  %v589 = vadd.f32 %v515, %v588
  %590 = vmatmul.f32.gmra.mxu0 %v527
  %v591 = vpop.f32.mrf.mxu0
  %v592 = vadd.f32 %v515, %v591
  %593 = vmatmul.f32.gmra.mxu0 %v530
  %v594 = vpop.f32.mrf.mxu0
  %v595 = vadd.f32 %v515, %v594
  %596 = vmatmul.f32.gmra.mxu0 %v533
  %v597 = vpop.f32.mrf.mxu0
  %v598 = vadd.f32 %v515, %v597
  %599 = vmatmul.f32.gmra.mxu0 %v536
  %v600 = vpop.f32.mrf.mxu0
  %v601 = vadd.f32 %v515, %v600
  %602 = vmatmul.f32.gmra.mxu0 %v539
  %v603 = vpop.f32.mrf.mxu0
  %v604 = vadd.f32 %v515, %v603
  %605 = vmatmul.f32.gmra.mxu0 %v542
  %v606 = vpop.f32.mrf.mxu0
  %v607 = vadd.f32 %v515, %v606
  %608 = vmatmul.f32.gmra.mxu0 %v545
  %v609 = vpop.f32.mrf.mxu0
  %v610 = vadd.f32 %v515, %v609
  %611 = vmatmul.f32.gmra.mxu0 %v548
  %v612 = vpop.f32.mrf.mxu0
  %v613 = vadd.f32 %v515, %v612
  %614 = vmatmul.f32.gmra.mxu0 %v551
  %v615 = vpop.f32.mrf.mxu0
  %v616 = vadd.f32 %v515, %v615
  %617 = vmatmul.f32.gmra.mxu0 %v554
  %v618 = vpop.f32.mrf.mxu0
  %v619 = vadd.f32 %v515, %v618
  %620 = vmatmul.f32.gmra.mxu0 %v557
  %v621 = vpop.f32.mrf.mxu0
  %v622 = vadd.f32 %v515, %v621
  %623 = vmatmul.f32.gmra.mxu0 %v560
  %v624 = vpop.f32.mrf.mxu0
  %v625 = vadd.f32 %v515, %v624
  %626 = vmatmul.f32.gmra.mxu0 %v563
  %v627 = vpop.f32.mrf.mxu0
  %v628 = vadd.f32 %v515, %v627
  %629 = vdwg.mxu0
  %v630 = vld [vmem:[%s2] sm:$0xff]
  %v631 = vld [vmem:[%s2 + $0x8] sm:$0xff]
  %v633 = vsel %vm97, %v630, 0
  %v636 = vsel %vm97, %v631, 0
  %638 = vmatpush.msra.mxu0 0.0
  %639 = vmatpush.msra.mxu0 0.0
  %640 = vmatpush.msra.mxu0 0.0
  %641 = vmatpush.msra.mxu0 0.0
  %642 = vmatpush.msra.mxu0 0.0
  %643 = vmatpush.msra.mxu0 0.0
  %644 = vmatpush.msra.mxu0 0.0
  %645 = vmatpush.msra.mxu0 0.0
  %646 = vmatpush.msra.mxu0 0.0
  %647 = vmatpush.msra.mxu0 0.0
  %648 = vmatpush.msra.mxu0 0.0
  %649 = vmatpush.msra.mxu0 0.0
  %650 = vmatpush.msra.mxu0 0.0
  %651 = vmatpush.msra.mxu0 0.0
  %652 = vmatpush.msra.mxu0 %v512
  %653 = vmatpush.msra.mxu0 %v511
  %654 = vmatmul.f32.gmra.mxu0 %v633
  %v655 = vpop.f32.mrf.mxu0
  %v656 = vadd.f32 0.0, %v655
  %657 = vmatmul.f32.gmra.mxu0 %v636
  %v658 = vpop.f32.mrf.mxu0
  %v659 = vadd.f32 0.0, %v658
  %660 = vdwg.mxu0
  %v661 = vld [vmem:[%s3] sm:$0xff]
  %v662 = vld [vmem:[%s3 + $0x8] sm:$0xff]
  %v663 = vld [vmem:[%s3 + $0x10] sm:$0xff]
  %v664 = vld [vmem:[%s3 + $0x18] sm:$0xff]
  %v665 = vld [vmem:[%s3 + $0x20] sm:$0xff]
  %v666 = vld [vmem:[%s3 + $0x28] sm:$0xff]
  %v667 = vld [vmem:[%s3 + $0x30] sm:$0xff]
  %v668 = vld [vmem:[%s3 + $0x38] sm:$0xff]
  %v669 = vld [vmem:[%s3 + $0x40] sm:$0xff]
  %v670 = vld [vmem:[%s3 + $0x48] sm:$0xff]
  %v671 = vld [vmem:[%s3 + $0x50] sm:$0xff]
  %v672 = vld [vmem:[%s3 + $0x58] sm:$0xff]
  %v673 = vld [vmem:[%s3 + $0x60] sm:$0xff]
  %v674 = vld [vmem:[%s3 + $0x68] sm:$0xff]
  %v675 = vld [vmem:[%s3 + $0x70] sm:$0xff]
  %v676 = vld [vmem:[%s3 + $0x78] sm:$0xff]
  %v677 = vld [vmem:[%s11] sm:$0xff]
  %v678 = vld [vmem:[%s11 + $0x8] sm:$0xff]
  %v679 = vld [vmem:[%s12] sm:$0xff]
  %v680 = vld [vmem:[%s12 + $0x8] sm:$0xff]
  %v681 = vld [vmem:[%s13] sm:$0x1]
  %v682 = vld [vmem:[%s14] sm:$0xff]
  %v683 = vld [vmem:[%s14 + $0x8] sm:$0xff]
  %v684 = vld [vmem:[#allocation2] sm:$0x1]
  %v685 = vld [vmem:[%s16] sm:$0xff]
  %v686 = vld [vmem:[%s16 + $0x8] sm:$0xff]
  %v687 = vld [vmem:[%s17] sm:$0x1]
  %v689 = vsel %vm97, %v583, 0
  %v692 = vsel %vm97, %v586, 0
  %v695 = vsel %vm97, %v589, 0
  %v698 = vsel %vm97, %v592, 0
  %v701 = vsel %vm97, %v595, 0
  %v704 = vsel %vm97, %v598, 0
  %v707 = vsel %vm97, %v601, 0
  %v710 = vsel %vm97, %v604, 0
  %v713 = vsel %vm97, %v607, 0
  %v716 = vsel %vm97, %v610, 0
  %v719 = vsel %vm97, %v613, 0
  %v722 = vsel %vm97, %v616, 0
  %v725 = vsel %vm97, %v619, 0
  %v728 = vsel %vm97, %v622, 0
  %v731 = vsel %vm97, %v625, 0
  %v734 = vsel %vm97, %v628, 0
  %736 = vmatpush.msra.mxu0 0.0
  %737 = vmatpush.msra.mxu0 0.0
  %738 = vmatpush.msra.mxu0 0.0
  %739 = vmatpush.msra.mxu0 0.0
  %740 = vmatpush.msra.mxu0 0.0
  %741 = vmatpush.msra.mxu0 0.0
  %742 = vmatpush.msra.mxu0 0.0
  %743 = vmatpush.msra.mxu0 0.0
  %744 = vmatpush.msra.mxu0 0.0
  %745 = vmatpush.msra.mxu0 0.0
  %746 = vmatpush.msra.mxu0 0.0
  %747 = vmatpush.msra.mxu0 0.0
  %748 = vmatpush.msra.mxu0 0.0
  %749 = vmatpush.msra.mxu0 0.0
  %750 = vmatpush.msra.mxu0 %v678
  %751 = vmatpush.msra.mxu0 %v677
  %752 = vmatmul.f32.gmra.mxu0 %v689
  %v753 = vpop.f32.mrf.mxu0
  %v754 = vadd.f32 0.0, %v753
  %755 = vmatmul.f32.gmra.mxu0 %v692
  %v756 = vpop.f32.mrf.mxu0
  %v757 = vadd.f32 0.0, %v756
  %758 = vmatmul.f32.gmra.mxu0 %v695
  %v759 = vpop.f32.mrf.mxu0
  %v760 = vadd.f32 0.0, %v759
  %761 = vmatmul.f32.gmra.mxu0 %v698
  %v762 = vpop.f32.mrf.mxu0
  %v763 = vadd.f32 0.0, %v762
  %764 = vmatmul.f32.gmra.mxu0 %v701
  %v765 = vpop.f32.mrf.mxu0
  %v766 = vadd.f32 0.0, %v765
  %767 = vmatmul.f32.gmra.mxu0 %v704
  %v768 = vpop.f32.mrf.mxu0
  %v769 = vadd.f32 0.0, %v768
  %770 = vmatmul.f32.gmra.mxu0 %v707
  %v771 = vpop.f32.mrf.mxu0
  %v772 = vadd.f32 0.0, %v771
  %773 = vmatmul.f32.gmra.mxu0 %v710
  %v774 = vpop.f32.mrf.mxu0
  %v775 = vadd.f32 0.0, %v774
  %776 = vmatmul.f32.gmra.mxu0 %v713
  %v777 = vpop.f32.mrf.mxu0
  %v778 = vadd.f32 0.0, %v777
  %779 = vmatmul.f32.gmra.mxu0 %v716
  %v780 = vpop.f32.mrf.mxu0
  %v781 = vadd.f32 0.0, %v780
  %782 = vmatmul.f32.gmra.mxu0 %v719
  %v783 = vpop.f32.mrf.mxu0
  %v784 = vadd.f32 0.0, %v783
  %785 = vmatmul.f32.gmra.mxu0 %v722
  %v786 = vpop.f32.mrf.mxu0
  %v787 = vadd.f32 0.0, %v786
  %788 = vmatmul.f32.gmra.mxu0 %v725
  %v789 = vpop.f32.mrf.mxu0
  %v790 = vadd.f32 0.0, %v789
  %791 = vmatmul.f32.gmra.mxu0 %v728
  %v792 = vpop.f32.mrf.mxu0
  %v793 = vadd.f32 0.0, %v792
  %794 = vmatmul.f32.gmra.mxu0 %v731
  %v795 = vpop.f32.mrf.mxu0
  %v796 = vadd.f32 0.0, %v795
  %797 = vmatmul.f32.gmra.mxu0 %v734
  %v798 = vpop.f32.mrf.mxu0
  %v799 = vadd.f32 0.0, %v798
  %800 = vdwg.mxu0
  %v802 = vsel %vm97, %v656, 0
  %v805 = vsel %vm97, %v659, 0
  %807 = vmatpush.msra.mxu0 0.0
  %808 = vmatpush.msra.mxu0 0.0
  %809 = vmatpush.msra.mxu0 0.0
  %810 = vmatpush.msra.mxu0 0.0
  %811 = vmatpush.msra.mxu0 0.0
  %812 = vmatpush.msra.mxu0 0.0
  %813 = vmatpush.msra.mxu0 0.0
  %814 = vmatpush.msra.mxu0 0.0
  %815 = vmatpush.msra.mxu0 0.0
  %816 = vmatpush.msra.mxu0 0.0
  %817 = vmatpush.msra.mxu0 0.0
  %818 = vmatpush.msra.mxu0 0.0
  %819 = vmatpush.msra.mxu0 0.0
  %820 = vmatpush.msra.mxu0 0.0
  %821 = vmatpush.msra.mxu0 %v680
  %822 = vmatpush.msra.mxu0 %v679
  %823 = vmatmul.f32.gmra.mxu0 %v802
  %v824 = vpop.f32.mrf.mxu0
  %v825 = vadd.f32 0.0, %v824
  %826 = vmatmul.f32.gmra.mxu0 %v805
  %v827 = vpop.f32.mrf.mxu0
  %v828 = vadd.f32 0.0, %v827
  %829 = vdwg.mxu0
  %v830 = vsel %vm97, %v513, 0
  %832 = vmatpush.msra.mxu0 0.0
  %833 = vmatpush.msra.mxu0 0.0
  %834 = vmatpush.msra.mxu0 0.0
  %835 = vmatpush.msra.mxu0 0.0
  %836 = vmatpush.msra.mxu0 0.0
  %837 = vmatpush.msra.mxu0 0.0
  %838 = vmatpush.msra.mxu0 0.0
  %839 = vmatpush.msra.mxu0 0.0
  %840 = vmatpush.msra.mxu0 0.0
  %841 = vmatpush.msra.mxu0 0.0
  %842 = vmatpush.msra.mxu0 0.0
  %843 = vmatpush.msra.mxu0 0.0
  %844 = vmatpush.msra.mxu0 0.0
  %845 = vmatpush.msra.mxu0 0.0
  %846 = vmatpush.msra.mxu0 %v680
  %847 = vmatpush.msra.mxu0 %v679
  %848 = vmatmul.f32.gmra.mxu0 %v830
  %v849 = vpop.f32.mrf.mxu0
  %v850 = vadd.f32 %v681, %v849
  %851 = vdwg.mxu0
  %v854 = vrot.slane %v825, 1
  %v855 = vrot.slane %v825, 2
  %v856 = vrot.slane %v825, 3
  %v857 = vrot.slane %v825, 4
  %v858 = vrot.slane %v825, 5
  %v859 = vrot.slane %v825, 6
  %v860 = vrot.slane %v825, 7
  %v861 = vrot.slane %v828, 1
  %v862 = vrot.slane %v828, 2
  %v863 = vrot.slane %v828, 3
  %v864 = vrot.slane %v828, 4
  %v865 = vrot.slane %v828, 5
  %v866 = vrot.slane %v828, 6
  %v867 = vrot.slane %v828, 7
  %869 = vset.pattern.permute.xlu0 0
  %870 = vperm.xlu0 %869, %v661
  %v871 = vpop.permute.xlu0 %870
  %874 = vset.pattern.permute.xlu0 0
  %875 = vperm.xlu0 %874, %v662
  %v876 = vpop.permute.xlu0 %875
  %879 = vset.pattern.permute.xlu0 0
  %880 = vperm.xlu0 %879, %v663
  %v881 = vpop.permute.xlu0 %880
  %884 = vset.pattern.permute.xlu0 0
  %885 = vperm.xlu0 %884, %v664
  %v886 = vpop.permute.xlu0 %885
  %889 = vset.pattern.permute.xlu0 0
  %890 = vperm.xlu0 %889, %v665
  %v891 = vpop.permute.xlu0 %890
  %894 = vset.pattern.permute.xlu0 0
  %895 = vperm.xlu0 %894, %v666
  %v896 = vpop.permute.xlu0 %895
  %899 = vset.pattern.permute.xlu0 0
  %900 = vperm.xlu0 %899, %v667
  %v901 = vpop.permute.xlu0 %900
  %904 = vset.pattern.permute.xlu0 0
  %905 = vperm.xlu0 %904, %v668
  %v906 = vpop.permute.xlu0 %905
  %909 = vset.pattern.permute.xlu0 0
  %910 = vperm.xlu0 %909, %v669
  %v911 = vpop.permute.xlu0 %910
  %914 = vset.pattern.permute.xlu0 0
  %915 = vperm.xlu0 %914, %v670
  %v916 = vpop.permute.xlu0 %915
  %919 = vset.pattern.permute.xlu0 0
  %920 = vperm.xlu0 %919, %v671
  %v921 = vpop.permute.xlu0 %920
  %924 = vset.pattern.permute.xlu0 0
  %925 = vperm.xlu0 %924, %v672
  %v926 = vpop.permute.xlu0 %925
  %929 = vset.pattern.permute.xlu0 0
  %930 = vperm.xlu0 %929, %v673
  %v931 = vpop.permute.xlu0 %930
  %934 = vset.pattern.permute.xlu0 0
  %935 = vperm.xlu0 %934, %v674
  %v936 = vpop.permute.xlu0 %935
  %939 = vset.pattern.permute.xlu0 0
  %940 = vperm.xlu0 %939, %v675
  %v941 = vpop.permute.xlu0 %940
  %944 = vset.pattern.permute.xlu0 0
  %945 = vperm.xlu0 %944, %v676
  %v946 = vpop.permute.xlu0 %945
  %v948 = vperm.slane %v825, 0
  %v949 = vperm.slane %v854, 0
  %v950 = vperm.slane %v855, 0
  %v951 = vperm.slane %v856, 0
  %v952 = vperm.slane %v857, 0
  %v953 = vperm.slane %v858, 0
  %v954 = vperm.slane %v859, 0
  %v955 = vperm.slane %v860, 0
  %v956 = vperm.slane %v828, 0
  %v957 = vperm.slane %v861, 0
  %v958 = vperm.slane %v862, 0
  %v959 = vperm.slane %v863, 0
  %v960 = vperm.slane %v864, 0
  %v961 = vperm.slane %v865, 0
  %v962 = vperm.slane %v866, 0
  %v963 = vperm.slane %v867, 0
  %v980 = vmul.f32 %v871, %v948
  %v981 = vmul.f32 %v876, %v949
  %v982 = vmul.f32 %v881, %v950
  %v983 = vmul.f32 %v886, %v951
  %v984 = vmul.f32 %v891, %v952
  %v985 = vmul.f32 %v896, %v953
  %v986 = vmul.f32 %v901, %v954
  %v987 = vmul.f32 %v906, %v955
  %v988 = vmul.f32 %v911, %v956
  %v989 = vmul.f32 %v916, %v957
  %v990 = vmul.f32 %v921, %v958
  %v991 = vmul.f32 %v926, %v959
  %v992 = vmul.f32 %v931, %v960
  %v993 = vmul.f32 %v936, %v961
  %v994 = vmul.f32 %v941, %v962
  %v995 = vmul.f32 %v946, %v963
  %v996 = vadd.f32 %v754, %v980
  %v997 = vadd.f32 %v757, %v981
  %v998 = vadd.f32 %v760, %v982
  %v999 = vadd.f32 %v763, %v983
  %v1000 = vadd.f32 %v766, %v984
  %v1001 = vadd.f32 %v769, %v985
  %v1002 = vadd.f32 %v772, %v986
  %v1003 = vadd.f32 %v775, %v987
  %v1004 = vadd.f32 %v778, %v988
  %v1005 = vadd.f32 %v781, %v989
  %v1006 = vadd.f32 %v784, %v990
  %v1007 = vadd.f32 %v787, %v991
  %v1008 = vadd.f32 %v790, %v992
  %v1009 = vadd.f32 %v793, %v993
  %v1010 = vadd.f32 %v796, %v994
  %v1011 = vadd.f32 %v799, %v995
  %v1012 = vperm.slane %v850, 0
  %v1013 = vadd.f32 %v996, %v1012
  %v1014 = vadd.f32 %v997, %v1012
  %v1015 = vadd.f32 %v998, %v1012
  %v1016 = vadd.f32 %v999, %v1012
  %v1017 = vadd.f32 %v1000, %v1012
  %v1018 = vadd.f32 %v1001, %v1012
  %v1019 = vadd.f32 %v1002, %v1012
  %v1020 = vadd.f32 %v1003, %v1012
  %v1021 = vadd.f32 %v1004, %v1012
  %v1022 = vadd.f32 %v1005, %v1012
  %v1023 = vadd.f32 %v1006, %v1012
  %v1024 = vadd.f32 %v1007, %v1012
  %v1025 = vadd.f32 %v1008, %v1012
  %v1026 = vadd.f32 %v1009, %v1012
  %v1027 = vadd.f32 %v1010, %v1012
  %v1028 = vadd.f32 %v1011, %v1012
  %vm1029 = vcmp.gt.f32.partialorder %v1013, 0.0
  %vm1030 = vcmp.gt.f32.partialorder %v1014, 0.0
  %vm1031 = vcmp.gt.f32.partialorder %v1015, 0.0
  %vm1032 = vcmp.gt.f32.partialorder %v1016, 0.0
  %vm1033 = vcmp.gt.f32.partialorder %v1017, 0.0
  %vm1034 = vcmp.gt.f32.partialorder %v1018, 0.0
  %vm1035 = vcmp.gt.f32.partialorder %v1019, 0.0
  %vm1036 = vcmp.gt.f32.partialorder %v1020, 0.0
  %vm1037 = vcmp.gt.f32.partialorder %v1021, 0.0
  %vm1038 = vcmp.gt.f32.partialorder %v1022, 0.0
  %vm1039 = vcmp.gt.f32.partialorder %v1023, 0.0
  %vm1040 = vcmp.gt.f32.partialorder %v1024, 0.0
  %vm1041 = vcmp.gt.f32.partialorder %v1025, 0.0
  %vm1042 = vcmp.gt.f32.partialorder %v1026, 0.0
  %vm1043 = vcmp.gt.f32.partialorder %v1027, 0.0
  %vm1044 = vcmp.gt.f32.partialorder %v1028, 0.0
  %v1045 = vmul.f32 %v1013, 0.2
  %v1046 = vmul.f32 %v1014, 0.2
  %v1047 = vmul.f32 %v1015, 0.2
  %v1048 = vmul.f32 %v1016, 0.2
  %v1049 = vmul.f32 %v1017, 0.2
  %v1050 = vmul.f32 %v1018, 0.2
  %v1051 = vmul.f32 %v1019, 0.2
  %v1052 = vmul.f32 %v1020, 0.2
  %v1053 = vmul.f32 %v1021, 0.2
  %v1054 = vmul.f32 %v1022, 0.2
  %v1055 = vmul.f32 %v1023, 0.2
  %v1056 = vmul.f32 %v1024, 0.2
  %v1057 = vmul.f32 %v1025, 0.2
  %v1058 = vmul.f32 %v1026, 0.2
  %v1059 = vmul.f32 %v1027, 0.2
  %v1060 = vmul.f32 %v1028, 0.2
  %v1061 = vsel %vm1029, %v1013, %v1045
  %v1062 = vsel %vm1030, %v1014, %v1046
  %v1063 = vsel %vm1031, %v1015, %v1047
  %v1064 = vsel %vm1032, %v1016, %v1048
  %v1065 = vsel %vm1033, %v1017, %v1049
  %v1066 = vsel %vm1034, %v1018, %v1050
  %v1067 = vsel %vm1035, %v1019, %v1051
  %v1068 = vsel %vm1036, %v1020, %v1052
  %v1069 = vsel %vm1037, %v1021, %v1053
  %v1070 = vsel %vm1038, %v1022, %v1054
  %v1071 = vsel %vm1039, %v1023, %v1055
  %v1072 = vsel %vm1040, %v1024, %v1056
  %v1073 = vsel %vm1041, %v1025, %v1057
  %v1074 = vsel %vm1042, %v1026, %v1058
  %v1075 = vsel %vm1043, %v1027, %v1059
  %v1076 = vsel %vm1044, %v1028, %v1060
  %v1078 = vperm.slane %v684, 0
  %v1081 = vsel %vm97, %v1061, 0
  %v1084 = vsel %vm97, %v1062, 0
  %v1087 = vsel %vm97, %v1063, 0
  %v1090 = vsel %vm97, %v1064, 0
  %v1093 = vsel %vm97, %v1065, 0
  %v1096 = vsel %vm97, %v1066, 0
  %v1099 = vsel %vm97, %v1067, 0
  %v1102 = vsel %vm97, %v1068, 0
  %v1105 = vsel %vm97, %v1069, 0
  %v1108 = vsel %vm97, %v1070, 0
  %v1111 = vsel %vm97, %v1071, 0
  %v1114 = vsel %vm97, %v1072, 0
  %v1117 = vsel %vm97, %v1073, 0
  %v1120 = vsel %vm97, %v1074, 0
  %v1123 = vsel %vm97, %v1075, 0
  %v1126 = vsel %vm97, %v1076, 0
  %1128 = vmatpush.msra.mxu0 0.0
  %1129 = vmatpush.msra.mxu0 0.0
  %1130 = vmatpush.msra.mxu0 0.0
  %1131 = vmatpush.msra.mxu0 0.0
  %1132 = vmatpush.msra.mxu0 0.0
  %1133 = vmatpush.msra.mxu0 0.0
  %1134 = vmatpush.msra.mxu0 0.0
  %1135 = vmatpush.msra.mxu0 0.0
  %1136 = vmatpush.msra.mxu0 0.0
  %1137 = vmatpush.msra.mxu0 0.0
  %1138 = vmatpush.msra.mxu0 0.0
  %1139 = vmatpush.msra.mxu0 0.0
  %1140 = vmatpush.msra.mxu0 0.0
  %1141 = vmatpush.msra.mxu0 0.0
  %1142 = vmatpush.msra.mxu0 %v683
  %1143 = vmatpush.msra.mxu0 %v682
  %1144 = vmatmul.f32.gmra.mxu0 %v1081
  %v1145 = vpop.f32.mrf.mxu0
  %v1146 = vadd.f32 %v1078, %v1145
  %1147 = vmatmul.f32.gmra.mxu0 %v1084
  %v1148 = vpop.f32.mrf.mxu0
  %v1149 = vadd.f32 %v1078, %v1148
  %1150 = vmatmul.f32.gmra.mxu0 %v1087
  %v1151 = vpop.f32.mrf.mxu0
  %v1152 = vadd.f32 %v1078, %v1151
  %1153 = vmatmul.f32.gmra.mxu0 %v1090
  %v1154 = vpop.f32.mrf.mxu0
  %v1155 = vadd.f32 %v1078, %v1154
  %1156 = vmatmul.f32.gmra.mxu0 %v1093
  %v1157 = vpop.f32.mrf.mxu0
  %v1158 = vadd.f32 %v1078, %v1157
  %1159 = vmatmul.f32.gmra.mxu0 %v1096
  %v1160 = vpop.f32.mrf.mxu0
  %v1161 = vadd.f32 %v1078, %v1160
  %1162 = vmatmul.f32.gmra.mxu0 %v1099
  %v1163 = vpop.f32.mrf.mxu0
  %v1164 = vadd.f32 %v1078, %v1163
  %1165 = vmatmul.f32.gmra.mxu0 %v1102
  %v1166 = vpop.f32.mrf.mxu0
  %v1167 = vadd.f32 %v1078, %v1166
  %1168 = vmatmul.f32.gmra.mxu0 %v1105
  %v1169 = vpop.f32.mrf.mxu0
  %v1170 = vadd.f32 %v1078, %v1169
  %1171 = vmatmul.f32.gmra.mxu0 %v1108
  %v1172 = vpop.f32.mrf.mxu0
  %v1173 = vadd.f32 %v1078, %v1172
  %1174 = vmatmul.f32.gmra.mxu0 %v1111
  %v1175 = vpop.f32.mrf.mxu0
  %v1176 = vadd.f32 %v1078, %v1175
  %1177 = vmatmul.f32.gmra.mxu0 %v1114
  %v1178 = vpop.f32.mrf.mxu0
  %v1179 = vadd.f32 %v1078, %v1178
  %1180 = vmatmul.f32.gmra.mxu0 %v1117
  %v1181 = vpop.f32.mrf.mxu0
  %v1182 = vadd.f32 %v1078, %v1181
  %1183 = vmatmul.f32.gmra.mxu0 %v1120
  %v1184 = vpop.f32.mrf.mxu0
  %v1185 = vadd.f32 %v1078, %v1184
  %1186 = vmatmul.f32.gmra.mxu0 %v1123
  %v1187 = vpop.f32.mrf.mxu0
  %v1188 = vadd.f32 %v1078, %v1187
  %1189 = vmatmul.f32.gmra.mxu0 %v1126
  %v1190 = vpop.f32.mrf.mxu0
  %v1191 = vadd.f32 %v1078, %v1190
  %1192 = vdwg.mxu0
  %v1193 = vmul.f32 %v1146, 1.442695
  %v1194 = vpow.pop %v1193
  %v1195 = vmul.f32 %v1149, 1.442695
  %v1196 = vpow.pop %v1195
  %v1197 = vmul.f32 %v1152, 1.442695
  %v1198 = vpow.pop %v1197
  %v1199 = vmul.f32 %v1155, 1.442695
  %v1200 = vpow.pop %v1199
  %v1201 = vmul.f32 %v1158, 1.442695
  %v1202 = vpow.pop %v1201
  %v1203 = vmul.f32 %v1161, 1.442695
  %v1204 = vpow.pop %v1203
  %v1205 = vmul.f32 %v1164, 1.442695
  %v1206 = vpow.pop %v1205
  %v1207 = vmul.f32 %v1167, 1.442695
  %v1208 = vpow.pop %v1207
  %v1209 = vmul.f32 %v1170, 1.442695
  %v1210 = vpow.pop %v1209
  %v1211 = vmul.f32 %v1173, 1.442695
  %v1212 = vpow.pop %v1211
  %v1213 = vmul.f32 %v1176, 1.442695
  %v1214 = vpow.pop %v1213
  %v1215 = vmul.f32 %v1179, 1.442695
  %v1216 = vpow.pop %v1215
  %v1217 = vmul.f32 %v1182, 1.442695
  %v1218 = vpow.pop %v1217
  %v1219 = vmul.f32 %v1185, 1.442695
  %v1220 = vpow.pop %v1219
  %v1221 = vmul.f32 %v1188, 1.442695
  %v1222 = vpow.pop %v1221
  %v1223 = vmul.f32 %v1191, 1.442695
  %v1224 = vpow.pop %v1223
  %v1225 = vmul.f32 %v1194, %v661
  %v1226 = vmul.f32 %v1196, %v662
  %v1227 = vmul.f32 %v1198, %v663
  %v1228 = vmul.f32 %v1200, %v664
  %v1229 = vmul.f32 %v1202, %v665
  %v1230 = vmul.f32 %v1204, %v666
  %v1231 = vmul.f32 %v1206, %v667
  %v1232 = vmul.f32 %v1208, %v668
  %v1233 = vmul.f32 %v1210, %v669
  %v1234 = vmul.f32 %v1212, %v670
  %v1235 = vmul.f32 %v1214, %v671
  %v1236 = vmul.f32 %v1216, %v672
  %v1237 = vmul.f32 %v1218, %v673
  %v1238 = vmul.f32 %v1220, %v674
  %v1239 = vmul.f32 %v1222, %v675
  %v1240 = vmul.f32 %v1224, %v676
  %vm1241 = vcmask 7168
  %v1242 = vsel %vm1241, %v1225, 0.0
  %v1243 = vrot.slane %v1242, 4
  %v1244 = vadd.f32 %v1242, %v1243
  %v1245 = vrot.slane %v1244, 2
  %v1246 = vadd.f32 %v1244, %v1245
  %v1247 = vrot.slane %v1246, 1
  %v1248 = vadd.f32 %v1246, %v1247
  %v1249 = vsel %vm1241, %v1226, 0.0
  %v1250 = vrot.slane %v1249, 4
  %v1251 = vadd.f32 %v1249, %v1250
  %v1252 = vrot.slane %v1251, 2
  %v1253 = vadd.f32 %v1251, %v1252
  %v1254 = vrot.slane %v1253, 1
  %v1255 = vadd.f32 %v1253, %v1254
  %v1256 = vsel %vm1241, %v1227, 0.0
  %v1257 = vrot.slane %v1256, 4
  %v1258 = vadd.f32 %v1256, %v1257
  %v1259 = vrot.slane %v1258, 2
  %v1260 = vadd.f32 %v1258, %v1259
  %v1261 = vrot.slane %v1260, 1
  %v1262 = vadd.f32 %v1260, %v1261
  %v1263 = vsel %vm1241, %v1228, 0.0
  %v1264 = vrot.slane %v1263, 4
  %v1265 = vadd.f32 %v1263, %v1264
  %v1266 = vrot.slane %v1265, 2
  %v1267 = vadd.f32 %v1265, %v1266
  %v1268 = vrot.slane %v1267, 1
  %v1269 = vadd.f32 %v1267, %v1268
  %v1270 = vsel %vm1241, %v1229, 0.0
  %v1271 = vrot.slane %v1270, 4
  %v1272 = vadd.f32 %v1270, %v1271
  %v1273 = vrot.slane %v1272, 2
  %v1274 = vadd.f32 %v1272, %v1273
  %v1275 = vrot.slane %v1274, 1
  %v1276 = vadd.f32 %v1274, %v1275
  %v1277 = vsel %vm1241, %v1230, 0.0
  %v1278 = vrot.slane %v1277, 4
  %v1279 = vadd.f32 %v1277, %v1278
  %v1280 = vrot.slane %v1279, 2
  %v1281 = vadd.f32 %v1279, %v1280
  %v1282 = vrot.slane %v1281, 1
  %v1283 = vadd.f32 %v1281, %v1282
  %v1284 = vsel %vm1241, %v1231, 0.0
  %v1285 = vrot.slane %v1284, 4
  %v1286 = vadd.f32 %v1284, %v1285
  %v1287 = vrot.slane %v1286, 2
  %v1288 = vadd.f32 %v1286, %v1287
  %v1289 = vrot.slane %v1288, 1
  %v1290 = vadd.f32 %v1288, %v1289
  %v1291 = vsel %vm1241, %v1232, 0.0
  %v1292 = vrot.slane %v1291, 4
  %v1293 = vadd.f32 %v1291, %v1292
  %v1294 = vrot.slane %v1293, 2
  %v1295 = vadd.f32 %v1293, %v1294
  %v1296 = vrot.slane %v1295, 1
  %v1297 = vadd.f32 %v1295, %v1296
  %v1298 = vsel %vm1241, %v1233, 0.0
  %v1299 = vrot.slane %v1298, 4
  %v1300 = vadd.f32 %v1298, %v1299
  %v1301 = vrot.slane %v1300, 2
  %v1302 = vadd.f32 %v1300, %v1301
  %v1303 = vrot.slane %v1302, 1
  %v1304 = vadd.f32 %v1302, %v1303
  %v1305 = vsel %vm1241, %v1234, 0.0
  %v1306 = vrot.slane %v1305, 4
  %v1307 = vadd.f32 %v1305, %v1306
  %v1308 = vrot.slane %v1307, 2
  %v1309 = vadd.f32 %v1307, %v1308
  %v1310 = vrot.slane %v1309, 1
  %v1311 = vadd.f32 %v1309, %v1310
  %v1312 = vsel %vm1241, %v1235, 0.0
  %v1313 = vrot.slane %v1312, 4
  %v1314 = vadd.f32 %v1312, %v1313
  %v1315 = vrot.slane %v1314, 2
  %v1316 = vadd.f32 %v1314, %v1315
  %v1317 = vrot.slane %v1316, 1
  %v1318 = vadd.f32 %v1316, %v1317
  %v1319 = vsel %vm1241, %v1236, 0.0
  %v1320 = vrot.slane %v1319, 4
  %v1321 = vadd.f32 %v1319, %v1320
  %v1322 = vrot.slane %v1321, 2
  %v1323 = vadd.f32 %v1321, %v1322
  %v1324 = vrot.slane %v1323, 1
  %v1325 = vadd.f32 %v1323, %v1324
  %v1326 = vsel %vm1241, %v1237, 0.0
  %v1327 = vrot.slane %v1326, 4
  %v1328 = vadd.f32 %v1326, %v1327
  %v1329 = vrot.slane %v1328, 2
  %v1330 = vadd.f32 %v1328, %v1329
  %v1331 = vrot.slane %v1330, 1
  %v1332 = vadd.f32 %v1330, %v1331
  %v1333 = vsel %vm1241, %v1238, 0.0
  %v1334 = vrot.slane %v1333, 4
  %v1335 = vadd.f32 %v1333, %v1334
  %v1336 = vrot.slane %v1335, 2
  %v1337 = vadd.f32 %v1335, %v1336
  %v1338 = vrot.slane %v1337, 1
  %v1339 = vadd.f32 %v1337, %v1338
  %v1340 = vsel %vm1241, %v1239, 0.0
  %v1341 = vrot.slane %v1340, 4
  %v1342 = vadd.f32 %v1340, %v1341
  %v1343 = vrot.slane %v1342, 2
  %v1344 = vadd.f32 %v1342, %v1343
  %v1345 = vrot.slane %v1344, 1
  %v1346 = vadd.f32 %v1344, %v1345
  %v1347 = vsel %vm1241, %v1240, 0.0
  %v1348 = vrot.slane %v1347, 4
  %v1349 = vadd.f32 %v1347, %v1348
  %v1350 = vrot.slane %v1349, 2
  %v1351 = vadd.f32 %v1349, %v1350
  %v1352 = vrot.slane %v1351, 1
  %v1353 = vadd.f32 %v1351, %v1352
  %v1354 = vadd.f32 %v1248, 1e-10
  %v1355 = vadd.f32 %v1255, 1e-10
  %v1356 = vadd.f32 %v1262, 1e-10
  %v1357 = vadd.f32 %v1269, 1e-10
  %v1358 = vadd.f32 %v1276, 1e-10
  %v1359 = vadd.f32 %v1283, 1e-10
  %v1360 = vadd.f32 %v1290, 1e-10
  %v1361 = vadd.f32 %v1297, 1e-10
  %v1362 = vadd.f32 %v1304, 1e-10
  %v1363 = vadd.f32 %v1311, 1e-10
  %v1364 = vadd.f32 %v1318, 1e-10
  %v1365 = vadd.f32 %v1325, 1e-10
  %v1366 = vadd.f32 %v1332, 1e-10
  %v1367 = vadd.f32 %v1339, 1e-10
  %v1368 = vadd.f32 %v1346, 1e-10
  %v1369 = vadd.f32 %v1353, 1e-10
  %v1370 = vrcp.pop %v1354
  %v1371 = vmul.f32 %v1354, %v1370
  %v1372 = vsub.f32 1.0, %v1371
  %v1373 = vmul.f32 %v1370, %v1372
  %v1374 = vadd.f32 %v1370, %v1373
  %vm1375 = vweird.f32 %v1354
  %vm1376 = vweird.f32 %v1370
  %vm1377 = vmor %vm1375, %vm1376
  %v1378 = vsel %vm1377, %v1370, %v1374
  %v1379 = vand.u32 2147483647, %v1354
  %vm1380 = vcmp.eq.f32.partialorder %v1379, 8.507059e+37
  %v1381 = vand.u32 %v1354, 2147483648
  %v1382 = vor.u32 1.1754944e-38, %v1381
  %v1383 = vsel %vm1380, %v1382, %v1378
  %v1384 = vmul.f32 %v1225, %v1383
  %v1385 = vrcp.pop %v1355
  %v1386 = vmul.f32 %v1355, %v1385
  %v1387 = vsub.f32 1.0, %v1386
  %v1388 = vmul.f32 %v1385, %v1387
  %v1389 = vadd.f32 %v1385, %v1388
  %vm1390 = vweird.f32 %v1355
  %vm1391 = vweird.f32 %v1385
  %vm1392 = vmor %vm1390, %vm1391
  %v1393 = vsel %vm1392, %v1385, %v1389
  %v1394 = vand.u32 2147483647, %v1355
  %vm1395 = vcmp.eq.f32.partialorder %v1394, 8.507059e+37
  %v1396 = vand.u32 %v1355, 2147483648
  %v1397 = vor.u32 1.1754944e-38, %v1396
  %v1398 = vsel %vm1395, %v1397, %v1393
  %v1399 = vmul.f32 %v1226, %v1398
  %v1400 = vrcp.pop %v1356
  %v1401 = vmul.f32 %v1356, %v1400
  %v1402 = vsub.f32 1.0, %v1401
  %v1403 = vmul.f32 %v1400, %v1402
  %v1404 = vadd.f32 %v1400, %v1403
  %vm1405 = vweird.f32 %v1356
  %vm1406 = vweird.f32 %v1400
  %vm1407 = vmor %vm1405, %vm1406
  %v1408 = vsel %vm1407, %v1400, %v1404
  %v1409 = vand.u32 2147483647, %v1356
  %vm1410 = vcmp.eq.f32.partialorder %v1409, 8.507059e+37
  %v1411 = vand.u32 %v1356, 2147483648
  %v1412 = vor.u32 1.1754944e-38, %v1411
  %v1413 = vsel %vm1410, %v1412, %v1408
  %v1414 = vmul.f32 %v1227, %v1413
  %v1415 = vrcp.pop %v1357
  %v1416 = vmul.f32 %v1357, %v1415
  %v1417 = vsub.f32 1.0, %v1416
  %v1418 = vmul.f32 %v1415, %v1417
  %v1419 = vadd.f32 %v1415, %v1418
  %vm1420 = vweird.f32 %v1357
  %vm1421 = vweird.f32 %v1415
  %vm1422 = vmor %vm1420, %vm1421
  %v1423 = vsel %vm1422, %v1415, %v1419
  %v1424 = vand.u32 2147483647, %v1357
  %vm1425 = vcmp.eq.f32.partialorder %v1424, 8.507059e+37
  %v1426 = vand.u32 %v1357, 2147483648
  %v1427 = vor.u32 1.1754944e-38, %v1426
  %v1428 = vsel %vm1425, %v1427, %v1423
  %v1429 = vmul.f32 %v1228, %v1428
  %v1430 = vrcp.pop %v1358
  %v1431 = vmul.f32 %v1358, %v1430
  %v1432 = vsub.f32 1.0, %v1431
  %v1433 = vmul.f32 %v1430, %v1432
  %v1434 = vadd.f32 %v1430, %v1433
  %vm1435 = vweird.f32 %v1358
  %vm1436 = vweird.f32 %v1430
  %vm1437 = vmor %vm1435, %vm1436
  %v1438 = vsel %vm1437, %v1430, %v1434
  %v1439 = vand.u32 2147483647, %v1358
  %vm1440 = vcmp.eq.f32.partialorder %v1439, 8.507059e+37
  %v1441 = vand.u32 %v1358, 2147483648
  %v1442 = vor.u32 1.1754944e-38, %v1441
  %v1443 = vsel %vm1440, %v1442, %v1438
  %v1444 = vmul.f32 %v1229, %v1443
  %v1445 = vrcp.pop %v1359
  %v1446 = vmul.f32 %v1359, %v1445
  %v1447 = vsub.f32 1.0, %v1446
  %v1448 = vmul.f32 %v1445, %v1447
  %v1449 = vadd.f32 %v1445, %v1448
  %vm1450 = vweird.f32 %v1359
  %vm1451 = vweird.f32 %v1445
  %vm1452 = vmor %vm1450, %vm1451
  %v1453 = vsel %vm1452, %v1445, %v1449
  %v1454 = vand.u32 2147483647, %v1359
  %vm1455 = vcmp.eq.f32.partialorder %v1454, 8.507059e+37
  %v1456 = vand.u32 %v1359, 2147483648
  %v1457 = vor.u32 1.1754944e-38, %v1456
  %v1458 = vsel %vm1455, %v1457, %v1453
  %v1459 = vmul.f32 %v1230, %v1458
  %v1460 = vrcp.pop %v1360
  %v1461 = vmul.f32 %v1360, %v1460
  %v1462 = vsub.f32 1.0, %v1461
  %v1463 = vmul.f32 %v1460, %v1462
  %v1464 = vadd.f32 %v1460, %v1463
  %vm1465 = vweird.f32 %v1360
  %vm1466 = vweird.f32 %v1460
  %vm1467 = vmor %vm1465, %vm1466
  %v1468 = vsel %vm1467, %v1460, %v1464
  %v1469 = vand.u32 2147483647, %v1360
  %vm1470 = vcmp.eq.f32.partialorder %v1469, 8.507059e+37
  %v1471 = vand.u32 %v1360, 2147483648
  %v1472 = vor.u32 1.1754944e-38, %v1471
  %v1473 = vsel %vm1470, %v1472, %v1468
  %v1474 = vmul.f32 %v1231, %v1473
  %v1475 = vrcp.pop %v1361
  %v1476 = vmul.f32 %v1361, %v1475
  %v1477 = vsub.f32 1.0, %v1476
  %v1478 = vmul.f32 %v1475, %v1477
  %v1479 = vadd.f32 %v1475, %v1478
  %vm1480 = vweird.f32 %v1361
  %vm1481 = vweird.f32 %v1475
  %vm1482 = vmor %vm1480, %vm1481
  %v1483 = vsel %vm1482, %v1475, %v1479
  %v1484 = vand.u32 2147483647, %v1361
  %vm1485 = vcmp.eq.f32.partialorder %v1484, 8.507059e+37
  %v1486 = vand.u32 %v1361, 2147483648
  %v1487 = vor.u32 1.1754944e-38, %v1486
  %v1488 = vsel %vm1485, %v1487, %v1483
  %v1489 = vmul.f32 %v1232, %v1488
  %v1490 = vrcp.pop %v1362
  %v1491 = vmul.f32 %v1362, %v1490
  %v1492 = vsub.f32 1.0, %v1491
  %v1493 = vmul.f32 %v1490, %v1492
  %v1494 = vadd.f32 %v1490, %v1493
  %vm1495 = vweird.f32 %v1362
  %vm1496 = vweird.f32 %v1490
  %vm1497 = vmor %vm1495, %vm1496
  %v1498 = vsel %vm1497, %v1490, %v1494
  %v1499 = vand.u32 2147483647, %v1362
  %vm1500 = vcmp.eq.f32.partialorder %v1499, 8.507059e+37
  %v1501 = vand.u32 %v1362, 2147483648
  %v1502 = vor.u32 1.1754944e-38, %v1501
  %v1503 = vsel %vm1500, %v1502, %v1498
  %v1504 = vmul.f32 %v1233, %v1503
  %v1505 = vrcp.pop %v1363
  %v1506 = vmul.f32 %v1363, %v1505
  %v1507 = vsub.f32 1.0, %v1506
  %v1508 = vmul.f32 %v1505, %v1507
  %v1509 = vadd.f32 %v1505, %v1508
  %vm1510 = vweird.f32 %v1363
  %vm1511 = vweird.f32 %v1505
  %vm1512 = vmor %vm1510, %vm1511
  %v1513 = vsel %vm1512, %v1505, %v1509
  %v1514 = vand.u32 2147483647, %v1363
  %vm1515 = vcmp.eq.f32.partialorder %v1514, 8.507059e+37
  %v1516 = vand.u32 %v1363, 2147483648
  %v1517 = vor.u32 1.1754944e-38, %v1516
  %v1518 = vsel %vm1515, %v1517, %v1513
  %v1519 = vmul.f32 %v1234, %v1518
  %v1520 = vrcp.pop %v1364
  %v1521 = vmul.f32 %v1364, %v1520
  %v1522 = vsub.f32 1.0, %v1521
  %v1523 = vmul.f32 %v1520, %v1522
  %v1524 = vadd.f32 %v1520, %v1523
  %vm1525 = vweird.f32 %v1364
  %vm1526 = vweird.f32 %v1520
  %vm1527 = vmor %vm1525, %vm1526
  %v1528 = vsel %vm1527, %v1520, %v1524
  %v1529 = vand.u32 2147483647, %v1364
  %vm1530 = vcmp.eq.f32.partialorder %v1529, 8.507059e+37
  %v1531 = vand.u32 %v1364, 2147483648
  %v1532 = vor.u32 1.1754944e-38, %v1531
  %v1533 = vsel %vm1530, %v1532, %v1528
  %v1534 = vmul.f32 %v1235, %v1533
  %v1535 = vrcp.pop %v1365
  %v1536 = vmul.f32 %v1365, %v1535
  %v1537 = vsub.f32 1.0, %v1536
  %v1538 = vmul.f32 %v1535, %v1537
  %v1539 = vadd.f32 %v1535, %v1538
  %vm1540 = vweird.f32 %v1365
  %vm1541 = vweird.f32 %v1535
  %vm1542 = vmor %vm1540, %vm1541
  %v1543 = vsel %vm1542, %v1535, %v1539
  %v1544 = vand.u32 2147483647, %v1365
  %vm1545 = vcmp.eq.f32.partialorder %v1544, 8.507059e+37
  %v1546 = vand.u32 %v1365, 2147483648
  %v1547 = vor.u32 1.1754944e-38, %v1546
  %v1548 = vsel %vm1545, %v1547, %v1543
  %v1549 = vmul.f32 %v1236, %v1548
  %v1550 = vrcp.pop %v1366
  %v1551 = vmul.f32 %v1366, %v1550
  %v1552 = vsub.f32 1.0, %v1551
  %v1553 = vmul.f32 %v1550, %v1552
  %v1554 = vadd.f32 %v1550, %v1553
  %vm1555 = vweird.f32 %v1366
  %vm1556 = vweird.f32 %v1550
  %vm1557 = vmor %vm1555, %vm1556
  %v1558 = vsel %vm1557, %v1550, %v1554
  %v1559 = vand.u32 2147483647, %v1366
  %vm1560 = vcmp.eq.f32.partialorder %v1559, 8.507059e+37
  %v1561 = vand.u32 %v1366, 2147483648
  %v1562 = vor.u32 1.1754944e-38, %v1561
  %v1563 = vsel %vm1560, %v1562, %v1558
  %v1564 = vmul.f32 %v1237, %v1563
  %v1565 = vrcp.pop %v1367
  %v1566 = vmul.f32 %v1367, %v1565
  %v1567 = vsub.f32 1.0, %v1566
  %v1568 = vmul.f32 %v1565, %v1567
  %v1569 = vadd.f32 %v1565, %v1568
  %vm1570 = vweird.f32 %v1367
  %vm1571 = vweird.f32 %v1565
  %vm1572 = vmor %vm1570, %vm1571
  %v1573 = vsel %vm1572, %v1565, %v1569
  %v1574 = vand.u32 2147483647, %v1367
  %vm1575 = vcmp.eq.f32.partialorder %v1574, 8.507059e+37
  %v1576 = vand.u32 %v1367, 2147483648
  %v1577 = vor.u32 1.1754944e-38, %v1576
  %v1578 = vsel %vm1575, %v1577, %v1573
  %v1579 = vmul.f32 %v1238, %v1578
  %v1580 = vrcp.pop %v1368
  %v1581 = vmul.f32 %v1368, %v1580
  %v1582 = vsub.f32 1.0, %v1581
  %v1583 = vmul.f32 %v1580, %v1582
  %v1584 = vadd.f32 %v1580, %v1583
  %vm1585 = vweird.f32 %v1368
  %vm1586 = vweird.f32 %v1580
  %vm1587 = vmor %vm1585, %vm1586
  %v1588 = vsel %vm1587, %v1580, %v1584
  %v1589 = vand.u32 2147483647, %v1368
  %vm1590 = vcmp.eq.f32.partialorder %v1589, 8.507059e+37
  %v1591 = vand.u32 %v1368, 2147483648
  %v1592 = vor.u32 1.1754944e-38, %v1591
  %v1593 = vsel %vm1590, %v1592, %v1588
  %v1594 = vmul.f32 %v1239, %v1593
  %v1595 = vrcp.pop %v1369
  %v1596 = vmul.f32 %v1369, %v1595
  %v1597 = vsub.f32 1.0, %v1596
  %v1598 = vmul.f32 %v1595, %v1597
  %v1599 = vadd.f32 %v1595, %v1598
  %vm1600 = vweird.f32 %v1369
  %vm1601 = vweird.f32 %v1595
  %vm1602 = vmor %vm1600, %vm1601
  %v1603 = vsel %vm1602, %v1595, %v1599
  %v1604 = vand.u32 2147483647, %v1369
  %vm1605 = vcmp.eq.f32.partialorder %v1604, 8.507059e+37
  %v1606 = vand.u32 %v1369, 2147483648
  %v1607 = vor.u32 1.1754944e-38, %v1606
  %v1608 = vsel %vm1605, %v1607, %v1603
  %v1609 = vmul.f32 %v1240, %v1608
  %1611 = vset.pattern.permute.xlu0 0
  %1612 = vperm.xlu0 %1611, %v1384
  %v1613 = vpop.permute.xlu0 %1612
  %1616 = vset.pattern.permute.xlu0 0
  %1617 = vperm.xlu0 %1616, %v1399
  %v1618 = vpop.permute.xlu0 %1617
  %1621 = vset.pattern.permute.xlu0 0
  %1622 = vperm.xlu0 %1621, %v1414
  %v1623 = vpop.permute.xlu0 %1622
  %1626 = vset.pattern.permute.xlu0 0
  %1627 = vperm.xlu0 %1626, %v1429
  %v1628 = vpop.permute.xlu0 %1627
  %1631 = vset.pattern.permute.xlu0 0
  %1632 = vperm.xlu0 %1631, %v1444
  %v1633 = vpop.permute.xlu0 %1632
  %1636 = vset.pattern.permute.xlu0 0
  %1637 = vperm.xlu0 %1636, %v1459
  %v1638 = vpop.permute.xlu0 %1637
  %1641 = vset.pattern.permute.xlu0 0
  %1642 = vperm.xlu0 %1641, %v1474
  %v1643 = vpop.permute.xlu0 %1642
  %1646 = vset.pattern.permute.xlu0 0
  %1647 = vperm.xlu0 %1646, %v1489
  %v1648 = vpop.permute.xlu0 %1647
  %1651 = vset.pattern.permute.xlu0 0
  %1652 = vperm.xlu0 %1651, %v1504
  %v1653 = vpop.permute.xlu0 %1652
  %1656 = vset.pattern.permute.xlu0 0
  %1657 = vperm.xlu0 %1656, %v1519
  %v1658 = vpop.permute.xlu0 %1657
  %1661 = vset.pattern.permute.xlu0 0
  %1662 = vperm.xlu0 %1661, %v1534
  %v1663 = vpop.permute.xlu0 %1662
  %1666 = vset.pattern.permute.xlu0 0
  %1667 = vperm.xlu0 %1666, %v1549
  %v1668 = vpop.permute.xlu0 %1667
  %1671 = vset.pattern.permute.xlu0 0
  %1672 = vperm.xlu0 %1671, %v1564
  %v1673 = vpop.permute.xlu0 %1672
  %1676 = vset.pattern.permute.xlu0 0
  %1677 = vperm.xlu0 %1676, %v1579
  %v1678 = vpop.permute.xlu0 %1677
  %1681 = vset.pattern.permute.xlu0 0
  %1682 = vperm.xlu0 %1681, %v1594
  %v1683 = vpop.permute.xlu0 %1682
  %1686 = vset.pattern.permute.xlu0 0
  %1687 = vperm.xlu0 %1686, %v1609
  %v1688 = vpop.permute.xlu0 %1687
  %v1690 = vmul.f32 %v1613, %v583
  %v1691 = vmul.f32 %v1618, %v586
  %v1692 = vmul.f32 %v1623, %v589
  %v1693 = vmul.f32 %v1628, %v592
  %v1694 = vmul.f32 %v1633, %v595
  %v1695 = vmul.f32 %v1638, %v598
  %v1696 = vmul.f32 %v1643, %v601
  %v1697 = vmul.f32 %v1648, %v604
  %v1698 = vmul.f32 %v1653, %v607
  %v1699 = vmul.f32 %v1658, %v610
  %v1700 = vmul.f32 %v1663, %v613
  %v1701 = vmul.f32 %v1668, %v616
  %v1702 = vmul.f32 %v1673, %v619
  %v1703 = vmul.f32 %v1678, %v622
  %v1704 = vmul.f32 %v1683, %v625
  %v1705 = vmul.f32 %v1688, %v628
  %v1706 = vsel %vm97, %v1690, 0.0
  %v1707 = vrot.slane %v1706, 4
  %v1708 = vadd.f32 %v1706, %v1707
  %v1709 = vrot.slane %v1708, 2
  %v1710 = vadd.f32 %v1708, %v1709
  %v1711 = vrot.slane %v1710, 1
  %v1712 = vadd.f32 %v1710, %v1711
  %v1713 = vsel %vm97, %v1691, 0.0
  %v1714 = vrot.slane %v1713, 4
  %v1715 = vadd.f32 %v1713, %v1714
  %v1716 = vrot.slane %v1715, 2
  %v1717 = vadd.f32 %v1715, %v1716
  %v1718 = vrot.slane %v1717, 1
  %v1719 = vadd.f32 %v1717, %v1718
  %v1720 = vsel %vm97, %v1692, 0.0
  %v1721 = vrot.slane %v1720, 4
  %v1722 = vadd.f32 %v1720, %v1721
  %v1723 = vrot.slane %v1722, 2
  %v1724 = vadd.f32 %v1722, %v1723
  %v1725 = vrot.slane %v1724, 1
  %v1726 = vadd.f32 %v1724, %v1725
  %v1727 = vsel %vm97, %v1693, 0.0
  %v1728 = vrot.slane %v1727, 4
  %v1729 = vadd.f32 %v1727, %v1728
  %v1730 = vrot.slane %v1729, 2
  %v1731 = vadd.f32 %v1729, %v1730
  %v1732 = vrot.slane %v1731, 1
  %v1733 = vadd.f32 %v1731, %v1732
  %v1734 = vsel %vm97, %v1694, 0.0
  %v1735 = vrot.slane %v1734, 4
  %v1736 = vadd.f32 %v1734, %v1735
  %v1737 = vrot.slane %v1736, 2
  %v1738 = vadd.f32 %v1736, %v1737
  %v1739 = vrot.slane %v1738, 1
  %v1740 = vadd.f32 %v1738, %v1739
  %v1741 = vsel %vm97, %v1695, 0.0
  %v1742 = vrot.slane %v1741, 4
  %v1743 = vadd.f32 %v1741, %v1742
  %v1744 = vrot.slane %v1743, 2
  %v1745 = vadd.f32 %v1743, %v1744
  %v1746 = vrot.slane %v1745, 1
  %v1747 = vadd.f32 %v1745, %v1746
  %v1748 = vsel %vm97, %v1696, 0.0
  %v1749 = vrot.slane %v1748, 4
  %v1750 = vadd.f32 %v1748, %v1749
  %v1751 = vrot.slane %v1750, 2
  %v1752 = vadd.f32 %v1750, %v1751
  %v1753 = vrot.slane %v1752, 1
  %v1754 = vadd.f32 %v1752, %v1753
  %v1755 = vsel %vm97, %v1697, 0.0
  %v1756 = vrot.slane %v1755, 4
  %v1757 = vadd.f32 %v1755, %v1756
  %v1758 = vrot.slane %v1757, 2
  %v1759 = vadd.f32 %v1757, %v1758
  %v1760 = vrot.slane %v1759, 1
  %v1761 = vadd.f32 %v1759, %v1760
  %v1762 = vsel %vm97, %v1698, 0.0
  %v1763 = vrot.slane %v1762, 4
  %v1764 = vadd.f32 %v1762, %v1763
  %v1765 = vrot.slane %v1764, 2
  %v1766 = vadd.f32 %v1764, %v1765
  %v1767 = vrot.slane %v1766, 1
  %v1768 = vadd.f32 %v1766, %v1767
  %v1769 = vsel %vm97, %v1699, 0.0
  %v1770 = vrot.slane %v1769, 4
  %v1771 = vadd.f32 %v1769, %v1770
  %v1772 = vrot.slane %v1771, 2
  %v1773 = vadd.f32 %v1771, %v1772
  %v1774 = vrot.slane %v1773, 1
  %v1775 = vadd.f32 %v1773, %v1774
  %v1776 = vsel %vm97, %v1700, 0.0
  %v1777 = vrot.slane %v1776, 4
  %v1778 = vadd.f32 %v1776, %v1777
  %v1779 = vrot.slane %v1778, 2
  %v1780 = vadd.f32 %v1778, %v1779
  %v1781 = vrot.slane %v1780, 1
  %v1782 = vadd.f32 %v1780, %v1781
  %v1783 = vsel %vm97, %v1701, 0.0
  %v1784 = vrot.slane %v1783, 4
  %v1785 = vadd.f32 %v1783, %v1784
  %v1786 = vrot.slane %v1785, 2
  %v1787 = vadd.f32 %v1785, %v1786
  %v1788 = vrot.slane %v1787, 1
  %v1789 = vadd.f32 %v1787, %v1788
  %v1790 = vsel %vm97, %v1702, 0.0
  %v1791 = vrot.slane %v1790, 4
  %v1792 = vadd.f32 %v1790, %v1791
  %v1793 = vrot.slane %v1792, 2
  %v1794 = vadd.f32 %v1792, %v1793
  %v1795 = vrot.slane %v1794, 1
  %v1796 = vadd.f32 %v1794, %v1795
  %v1797 = vsel %vm97, %v1703, 0.0
  %v1798 = vrot.slane %v1797, 4
  %v1799 = vadd.f32 %v1797, %v1798
  %v1800 = vrot.slane %v1799, 2
  %v1801 = vadd.f32 %v1799, %v1800
  %v1802 = vrot.slane %v1801, 1
  %v1803 = vadd.f32 %v1801, %v1802
  %v1804 = vsel %vm97, %v1704, 0.0
  %v1805 = vrot.slane %v1804, 4
  %v1806 = vadd.f32 %v1804, %v1805
  %v1807 = vrot.slane %v1806, 2
  %v1808 = vadd.f32 %v1806, %v1807
  %v1809 = vrot.slane %v1808, 1
  %v1810 = vadd.f32 %v1808, %v1809
  %v1811 = vsel %vm97, %v1705, 0.0
  %v1812 = vrot.slane %v1811, 4
  %v1813 = vadd.f32 %v1811, %v1812
  %v1814 = vrot.slane %v1813, 2
  %v1815 = vadd.f32 %v1813, %v1814
  %v1816 = vrot.slane %v1815, 1
  %v1817 = vadd.f32 %v1815, %v1816
  %v1819 = vperm.slane %v687, 0
  %vm1837 = vcmask 1041409
  %v1838 = vsel %vm1837, %v1719, %v1712
  %vm1839 = vcmask 1042434
  %v1840 = vsel %vm1839, %v1726, %v1838
  %vm1841 = vcmask 1043459
  %v1842 = vsel %vm1841, %v1733, %v1840
  %vm1843 = vcmask 1044484
  %v1844 = vsel %vm1843, %v1740, %v1842
  %vm1845 = vcmask 1045509
  %v1846 = vsel %vm1845, %v1747, %v1844
  %vm1847 = vcmask 1046534
  %v1848 = vsel %vm1847, %v1754, %v1846
  %vm1849 = vcmask 1047559
  %v1850 = vsel %vm1849, %v1761, %v1848
  %v1851 = vsel %vm1837, %v1775, %v1768
  %v1852 = vsel %vm1839, %v1782, %v1851
  %v1853 = vsel %vm1841, %v1789, %v1852
  %v1854 = vsel %vm1843, %v1796, %v1853
  %v1855 = vsel %vm1845, %v1803, %v1854
  %v1856 = vsel %vm1847, %v1810, %v1855
  %v1857 = vsel %vm1849, %v1817, %v1856
  %v1858 = vsel %vm97, %v1850, 0
  %v1860 = vsel %vm97, %v1857, 0
  %1862 = vmatpush.msra.mxu0 0.0
  %1863 = vmatpush.msra.mxu0 0.0
  %1864 = vmatpush.msra.mxu0 0.0
  %1865 = vmatpush.msra.mxu0 0.0
  %1866 = vmatpush.msra.mxu0 0.0
  %1867 = vmatpush.msra.mxu0 0.0
  %1868 = vmatpush.msra.mxu0 0.0
  %1869 = vmatpush.msra.mxu0 0.0
  %1870 = vmatpush.msra.mxu0 0.0
  %1871 = vmatpush.msra.mxu0 0.0
  %1872 = vmatpush.msra.mxu0 0.0
  %1873 = vmatpush.msra.mxu0 0.0
  %1874 = vmatpush.msra.mxu0 0.0
  %1875 = vmatpush.msra.mxu0 0.0
  %1876 = vmatpush.msra.mxu0 %v686
  %1877 = vmatpush.msra.mxu0 %v685
  %1878 = vmatmul.f32.gmra.mxu0 %v1858
  %v1879 = vpop.f32.mrf.mxu0
  %v1880 = vadd.f32 %v1819, %v1879
  %1881 = vmatmul.f32.gmra.mxu0 %v1860
  %v1882 = vpop.f32.mrf.mxu0
  %v1883 = vadd.f32 %v1819, %v1882
  %1884 = vdwg.mxu0
  %v1885 = vmax.f32 %v1880, 0.0
  %v1886 = vmax.f32 %v1883, 0.0
  %1887 = vst.msk [vmem:[%s18] sm:$0xff] %vm97, %v1885
  %1888 = vst.msk [vmem:[%s18 + $0x8] sm:$0xff] %vm97, %v1886
  // Predicated region
  $region74: #{user_model_forward.9} parent=0 // pred_check
    _
  $region75: #{user_model_forward.9} parent=0 // pred_check_branch
    %1890 = sbr.rel (0) target = $region77
  $region76: #{user_model_forward.9} parent=0 // pred_region
    _
  $region77: #{user_model_forward.9} parent=0 // pred_fallthru
    _
  // Predicated region
  $region78: #{user_model_forward.9} parent=0 // pred_check
    _
  $region79: #{user_model_forward.9} parent=0 // pred_check_branch
    %1892 = sbr.rel (0) target = $region81
  $region80: #{user_model_forward.9} parent=0 // pred_region
    _
  $region81: #{user_model_forward.9} parent=0 // pred_fallthru
    _

// kernel: user_model_forward.8
$region0: #{user_model_forward.8}
  #allocation0 [shape = 'u32[]', space=smem, size = 0x4, offset = 0x4, fixed_abs, tag = 'smem constant byte address 0x4 - core index']
  #allocation1 [shape = 'u32[72,128]{1,0:T(1,128)}', space=vmem, size = 0x9000, scoped, tag = 'internal scratch']
  #allocation2 [shape = 'f32[1,1]{1,0:T(1,128)S(1)}', space=vmem, size = 0x200, scoped, tag = 'scoped memory for user_model_forward.8']
  %s0 = inlined_call_operand.vmem [shape: f32[8,8,16], index: 0, kind: input, shape index: {}]
  %s1 = inlined_call_operand.vmem [shape: f32[8,8,16], index: 1, kind: input, shape index: {}]
  %s2 = inlined_call_operand.vmem [shape: f32[8,16], index: 2, kind: input, shape index: {}]
  %s3 = inlined_call_operand.vmem [shape: f32[8,8,1], index: 3, kind: input, shape index: {}]
  %s4 = inlined_call_operand.vmem [shape: f32[16,16], index: 4, kind: input, shape index: {}]
  %s5 = inlined_call_operand.vmem [shape: f32[16,16], index: 5, kind: input, shape index: {}]
  %s6 = inlined_call_operand.vmem [shape: f32[1,16], index: 6, kind: input, shape index: {}]
  %s7 = inlined_call_operand.vmem [shape: f32[16,16], index: 7, kind: input, shape index: {}]
  %s8 = inlined_call_operand.vmem [shape: f32[1,16], index: 8, kind: input, shape index: {}]
  %s9 = inlined_call_operand.vmem [shape: f32[16,16], index: 9, kind: input, shape index: {}]
  %s10 = inlined_call_operand.vmem [shape: f32[1,16], index: 10, kind: input, shape index: {}]
  %s11 = inlined_call_operand.vmem [shape: f32[16,16], index: 11, kind: input, shape index: {}]
  %s12 = inlined_call_operand.vmem [shape: f32[16,16], index: 12, kind: input, shape index: {}]
  %s13 = inlined_call_operand.vmem [shape: f32[1,16], index: 13, kind: input, shape index: {}]
  %s14 = inlined_call_operand.vmem [shape: f32[16,1], index: 14, kind: input, shape index: {}]
  %s15 = inlined_call_operand.<no memory space> [shape: f32[1,1], index: 15, kind: input, shape index: {}]
  %s16 = inlined_call_operand.vmem [shape: f32[16,16], index: 16, kind: input, shape index: {}]
  %s17 = inlined_call_operand.vmem [shape: f32[1,16], index: 17, kind: input, shape index: {}]
  %s18 = inlined_call_operand.vmem [shape: f32[8,16], index: 18, kind: output, shape index: {}]
  %s19 = sld [smem:[#allocation0]]
  $region82: #{user_model_forward.8} parent=0
    _
  %s21 = ssub.s32 1, %s19
  %s22 = scalar_select 0, %s21, %s19
  %v23 = vstv %s15
  %24 = vst [vmem:[#allocation2] sm:$0x1] %v23
  // Predicated region
  $region2: #{user_model_forward.8} parent=0 // pred_check
    _
  $region3: #{user_model_forward.8} parent=0 // pred_check_branch
    %26 = sbr.rel (0) target = $region5
  $region4: #{user_model_forward.8} parent=0 // pred_region
    _
  $region5: #{user_model_forward.8} parent=0 // pred_fallthru
    _
  // Predicated region
  $region6: #{user_model_forward.8} parent=0 // pred_check
    _
  $region7: #{user_model_forward.8} parent=0 // pred_check_branch
    %28 = sbr.rel (0) target = $region9
  $region8: #{user_model_forward.8} parent=0 // pred_region
    _
  $region9: #{user_model_forward.8} parent=0 // pred_fallthru
    _
  // Predicated region
  $region10: #{user_model_forward.8} parent=0 // pred_check
    _
  $region11: #{user_model_forward.8} parent=0 // pred_check_branch
    %30 = sbr.rel (0) target = $region13
  $region12: #{user_model_forward.8} parent=0 // pred_region
    _
  $region13: #{user_model_forward.8} parent=0 // pred_fallthru
    _
  // Predicated region
  $region14: #{user_model_forward.8} parent=0 // pred_check
    _
  $region15: #{user_model_forward.8} parent=0 // pred_check_branch
    %32 = sbr.rel (0) target = $region17
  $region16: #{user_model_forward.8} parent=0 // pred_region
    _
  $region17: #{user_model_forward.8} parent=0 // pred_fallthru
    _
  // Predicated region
  $region18: #{user_model_forward.8} parent=0 // pred_check
    _
  $region19: #{user_model_forward.8} parent=0 // pred_check_branch
    %34 = sbr.rel (0) target = $region21
  $region20: #{user_model_forward.8} parent=0 // pred_region
    _
  $region21: #{user_model_forward.8} parent=0 // pred_fallthru
    _
  // Predicated region
  $region22: #{user_model_forward.8} parent=0 // pred_check
    _
  $region23: #{user_model_forward.8} parent=0 // pred_check_branch
    %36 = sbr.rel (0) target = $region25
  $region24: #{user_model_forward.8} parent=0 // pred_region
    _
  $region25: #{user_model_forward.8} parent=0 // pred_fallthru
    _
  // Predicated region
  $region26: #{user_model_forward.8} parent=0 // pred_check
    _
  $region27: #{user_model_forward.8} parent=0 // pred_check_branch
    %38 = sbr.rel (0) target = $region29
  $region28: #{user_model_forward.8} parent=0 // pred_region
    _
  $region29: #{user_model_forward.8} parent=0 // pred_fallthru
    _
  // Predicated region
  $region30: #{user_model_forward.8} parent=0 // pred_check
    _
  $region31: #{user_model_forward.8} parent=0 // pred_check_branch
    %40 = sbr.rel (0) target = $region33
  $region32: #{user_model_forward.8} parent=0 // pred_region
    _
  $region33: #{user_model_forward.8} parent=0 // pred_fallthru
    _
  // Predicated region
  $region34: #{user_model_forward.8} parent=0 // pred_check
    _
  $region35: #{user_model_forward.8} parent=0 // pred_check_branch
    %42 = sbr.rel (0) target = $region37
  $region36: #{user_model_forward.8} parent=0 // pred_region
    _
  $region37: #{user_model_forward.8} parent=0 // pred_fallthru
    _
  // Predicated region
  $region38: #{user_model_forward.8} parent=0 // pred_check
    _
  $region39: #{user_model_forward.8} parent=0 // pred_check_branch
    %44 = sbr.rel (0) target = $region41
  $region40: #{user_model_forward.8} parent=0 // pred_region
    _
  $region41: #{user_model_forward.8} parent=0 // pred_fallthru
    _
  // Predicated region
  $region42: #{user_model_forward.8} parent=0 // pred_check
    _
  $region43: #{user_model_forward.8} parent=0 // pred_check_branch
    %46 = sbr.rel (0) target = $region45
  $region44: #{user_model_forward.8} parent=0 // pred_region
    _
  $region45: #{user_model_forward.8} parent=0 // pred_fallthru
    _
  // Predicated region
  $region46: #{user_model_forward.8} parent=0 // pred_check
    _
  $region47: #{user_model_forward.8} parent=0 // pred_check_branch
    %48 = sbr.rel (0) target = $region49
  $region48: #{user_model_forward.8} parent=0 // pred_region
    _
  $region49: #{user_model_forward.8} parent=0 // pred_fallthru
    _
  // Predicated region
  $region50: #{user_model_forward.8} parent=0 // pred_check
    _
  $region51: #{user_model_forward.8} parent=0 // pred_check_branch
    %50 = sbr.rel (0) target = $region53
  $region52: #{user_model_forward.8} parent=0 // pred_region
    _
  $region53: #{user_model_forward.8} parent=0 // pred_fallthru
    _
  // Predicated region
  $region54: #{user_model_forward.8} parent=0 // pred_check
    _
  $region55: #{user_model_forward.8} parent=0 // pred_check_branch
    %52 = sbr.rel (0) target = $region57
  $region56: #{user_model_forward.8} parent=0 // pred_region
    _
  $region57: #{user_model_forward.8} parent=0 // pred_fallthru
    _
  // Predicated region
  $region58: #{user_model_forward.8} parent=0 // pred_check
    _
  $region59: #{user_model_forward.8} parent=0 // pred_check_branch
    %54 = sbr.rel (0) target = $region61
  $region60: #{user_model_forward.8} parent=0 // pred_region
    _
  $region61: #{user_model_forward.8} parent=0 // pred_fallthru
    _
  // Predicated region
  $region62: #{user_model_forward.8} parent=0 // pred_check
    _
  $region63: #{user_model_forward.8} parent=0 // pred_check_branch
    %56 = sbr.rel (0) target = $region65
  $region64: #{user_model_forward.8} parent=0 // pred_region
    _
  $region65: #{user_model_forward.8} parent=0 // pred_fallthru
    _
  // Predicated region
  $region66: #{user_model_forward.8} parent=0 // pred_check
    _
  $region67: #{user_model_forward.8} parent=0 // pred_check_branch
    %58 = sbr.rel (0) target = $region69
  $region68: #{user_model_forward.8} parent=0 // pred_region
    _
  $region69: #{user_model_forward.8} parent=0 // pred_fallthru
    _
  // Predicated region
  $region70: #{user_model_forward.8} parent=0 // pred_check
    _
  $region71: #{user_model_forward.8} parent=0 // pred_check_branch
    %60 = sbr.rel (0) target = $region73
  $region72: #{user_model_forward.8} parent=0 // pred_region
    _
  $region73: #{user_model_forward.8} parent=0 // pred_fallthru
    _
  %v61 = vld [vmem:[%s0] sm:$0xff]
  %v62 = vld [vmem:[%s0 + $0x8] sm:$0xff]
  %v63 = vld [vmem:[%s0 + $0x10] sm:$0xff]
  %v64 = vld [vmem:[%s0 + $0x18] sm:$0xff]
  %v65 = vld [vmem:[%s0 + $0x20] sm:$0xff]
  %v66 = vld [vmem:[%s0 + $0x28] sm:$0xff]
  %v67 = vld [vmem:[%s0 + $0x30] sm:$0xff]
  %v68 = vld [vmem:[%s0 + $0x38] sm:$0xff]
  %v69 = vld [vmem:[%s1] sm:$0xff]
  %v70 = vld [vmem:[%s1 + $0x8] sm:$0xff]
  %v71 = vld [vmem:[%s1 + $0x10] sm:$0xff]
  %v72 = vld [vmem:[%s1 + $0x18] sm:$0xff]
  %v73 = vld [vmem:[%s1 + $0x20] sm:$0xff]
  %v74 = vld [vmem:[%s1 + $0x28] sm:$0xff]
  %v75 = vld [vmem:[%s1 + $0x30] sm:$0xff]
  %v76 = vld [vmem:[%s1 + $0x38] sm:$0xff]
  %v77 = vld [vmem:[%s4] sm:$0xff]
  %v78 = vld [vmem:[%s4 + $0x8] sm:$0xff]
  %v79 = vld [vmem:[%s5] sm:$0xff]
  %v80 = vld [vmem:[%s5 + $0x8] sm:$0xff]
  %vm81 = vcmask 130048
  %v83 = vsel %vm81, %v69, 0
  %v86 = vsel %vm81, %v70, 0
  %v89 = vsel %vm81, %v71, 0
  %v92 = vsel %vm81, %v72, 0
  %v95 = vsel %vm81, %v73, 0
  %v98 = vsel %vm81, %v74, 0
  %v101 = vsel %vm81, %v75, 0
  %v104 = vsel %vm81, %v76, 0
  %106 = vmatpush.msra.mxu0 0.0
  %107 = vmatpush.msra.mxu0 0.0
  %108 = vmatpush.msra.mxu0 0.0
  %109 = vmatpush.msra.mxu0 0.0
  %110 = vmatpush.msra.mxu0 0.0
  %111 = vmatpush.msra.mxu0 0.0
  %112 = vmatpush.msra.mxu0 0.0
  %113 = vmatpush.msra.mxu0 0.0
  %114 = vmatpush.msra.mxu0 0.0
  %115 = vmatpush.msra.mxu0 0.0
  %116 = vmatpush.msra.mxu0 0.0
  %117 = vmatpush.msra.mxu0 0.0
  %118 = vmatpush.msra.mxu0 0.0
  %119 = vmatpush.msra.mxu0 0.0
  %120 = vmatpush.msra.mxu0 %v80
  %121 = vmatpush.msra.mxu0 %v79
  %122 = vmatmul.f32.gmra.mxu0 %v83
  %v123 = vpop.f32.mrf.mxu0
  %v124 = vadd.f32 0.0, %v123
  %125 = vmatmul.f32.gmra.mxu0 %v86
  %v126 = vpop.f32.mrf.mxu0
  %v127 = vadd.f32 0.0, %v126
  %128 = vmatmul.f32.gmra.mxu0 %v89
  %v129 = vpop.f32.mrf.mxu0
  %v130 = vadd.f32 0.0, %v129
  %131 = vmatmul.f32.gmra.mxu0 %v92
  %v132 = vpop.f32.mrf.mxu0
  %v133 = vadd.f32 0.0, %v132
  %134 = vmatmul.f32.gmra.mxu0 %v95
  %v135 = vpop.f32.mrf.mxu0
  %v136 = vadd.f32 0.0, %v135
  %137 = vmatmul.f32.gmra.mxu0 %v98
  %v138 = vpop.f32.mrf.mxu0
  %v139 = vadd.f32 0.0, %v138
  %140 = vmatmul.f32.gmra.mxu0 %v101
  %v141 = vpop.f32.mrf.mxu0
  %v142 = vadd.f32 0.0, %v141
  %143 = vmatmul.f32.gmra.mxu0 %v104
  %v144 = vpop.f32.mrf.mxu0
  %v145 = vadd.f32 0.0, %v144
  %146 = vdwg.mxu0
  %v148 = vsel %vm81, %v61, 0
  %v151 = vsel %vm81, %v62, 0
  %v154 = vsel %vm81, %v63, 0
  %v157 = vsel %vm81, %v64, 0
  %v160 = vsel %vm81, %v65, 0
  %v163 = vsel %vm81, %v66, 0
  %v166 = vsel %vm81, %v67, 0
  %v169 = vsel %vm81, %v68, 0
  %171 = vmatpush.msra.mxu0 0.0
  %172 = vmatpush.msra.mxu0 0.0
  %173 = vmatpush.msra.mxu0 0.0
  %174 = vmatpush.msra.mxu0 0.0
  %175 = vmatpush.msra.mxu0 0.0
  %176 = vmatpush.msra.mxu0 0.0
  %177 = vmatpush.msra.mxu0 0.0
  %178 = vmatpush.msra.mxu0 0.0
  %179 = vmatpush.msra.mxu0 0.0
  %180 = vmatpush.msra.mxu0 0.0
  %181 = vmatpush.msra.mxu0 0.0
  %182 = vmatpush.msra.mxu0 0.0
  %183 = vmatpush.msra.mxu0 0.0
  %184 = vmatpush.msra.mxu0 0.0
  %185 = vmatpush.msra.mxu0 %v78
  %186 = vmatpush.msra.mxu0 %v77
  %187 = vmatmul.f32.gmra.mxu0 %v148
  %v188 = vpop.f32.mrf.mxu0
  %v189 = vadd.f32 %v124, %v188
  %190 = vmatmul.f32.gmra.mxu0 %v151
  %v191 = vpop.f32.mrf.mxu0
  %v192 = vadd.f32 %v127, %v191
  %193 = vmatmul.f32.gmra.mxu0 %v154
  %v194 = vpop.f32.mrf.mxu0
  %v195 = vadd.f32 %v130, %v194
  %196 = vmatmul.f32.gmra.mxu0 %v157
  %v197 = vpop.f32.mrf.mxu0
  %v198 = vadd.f32 %v133, %v197
  %199 = vmatmul.f32.gmra.mxu0 %v160
  %v200 = vpop.f32.mrf.mxu0
  %v201 = vadd.f32 %v136, %v200
  %202 = vmatmul.f32.gmra.mxu0 %v163
  %v203 = vpop.f32.mrf.mxu0
  %v204 = vadd.f32 %v139, %v203
  %205 = vmatmul.f32.gmra.mxu0 %v166
  %v206 = vpop.f32.mrf.mxu0
  %v207 = vadd.f32 %v142, %v206
  %208 = vmatmul.f32.gmra.mxu0 %v169
  %v209 = vpop.f32.mrf.mxu0
  %v210 = vadd.f32 %v145, %v209
  %211 = vdwg.mxu0
  %v212 = vld [vmem:[%s6] sm:$0x1]
  %v214 = vperm.slane %v212, 0
  %v216 = vadd.f32 %v189, %v214
  %v217 = vadd.f32 %v192, %v214
  %v218 = vadd.f32 %v195, %v214
  %v219 = vadd.f32 %v198, %v214
  %v220 = vadd.f32 %v201, %v214
  %v221 = vadd.f32 %v204, %v214
  %v222 = vadd.f32 %v207, %v214
  %v223 = vadd.f32 %v210, %v214
  %vm224 = vcmp.gt.f32.partialorder %v216, 0.0
  %vm225 = vcmp.gt.f32.partialorder %v217, 0.0
  %vm226 = vcmp.gt.f32.partialorder %v218, 0.0
  %vm227 = vcmp.gt.f32.partialorder %v219, 0.0
  %vm228 = vcmp.gt.f32.partialorder %v220, 0.0
  %vm229 = vcmp.gt.f32.partialorder %v221, 0.0
  %vm230 = vcmp.gt.f32.partialorder %v222, 0.0
  %vm231 = vcmp.gt.f32.partialorder %v223, 0.0
  %v232 = vmul.f32 %v216, 0.2
  %v233 = vmul.f32 %v217, 0.2
  %v234 = vmul.f32 %v218, 0.2
  %v235 = vmul.f32 %v219, 0.2
  %v236 = vmul.f32 %v220, 0.2
  %v237 = vmul.f32 %v221, 0.2
  %v238 = vmul.f32 %v222, 0.2
  %v239 = vmul.f32 %v223, 0.2
  %v240 = vsel %vm224, %v216, %v232
  %v241 = vsel %vm225, %v217, %v233
  %v242 = vsel %vm226, %v218, %v234
  %v243 = vsel %vm227, %v219, %v235
  %v244 = vsel %vm228, %v220, %v236
  %v245 = vsel %vm229, %v221, %v237
  %v246 = vsel %vm230, %v222, %v238
  %v247 = vsel %vm231, %v223, %v239
  %v248 = vld [vmem:[%s7] sm:$0xff]
  %v249 = vld [vmem:[%s7 + $0x8] sm:$0xff]
  %v250 = vld [vmem:[%s8] sm:$0x1]
  %v252 = vperm.slane %v250, 0
  %v255 = vsel %vm81, %v240, 0
  %v258 = vsel %vm81, %v241, 0
  %v261 = vsel %vm81, %v242, 0
  %v264 = vsel %vm81, %v243, 0
  %v267 = vsel %vm81, %v244, 0
  %v270 = vsel %vm81, %v245, 0
  %v273 = vsel %vm81, %v246, 0
  %v276 = vsel %vm81, %v247, 0
  %278 = vmatpush.msra.mxu0 0.0
  %279 = vmatpush.msra.mxu0 0.0
  %280 = vmatpush.msra.mxu0 0.0
  %281 = vmatpush.msra.mxu0 0.0
  %282 = vmatpush.msra.mxu0 0.0
  %283 = vmatpush.msra.mxu0 0.0
  %284 = vmatpush.msra.mxu0 0.0
  %285 = vmatpush.msra.mxu0 0.0
  %286 = vmatpush.msra.mxu0 0.0
  %287 = vmatpush.msra.mxu0 0.0
  %288 = vmatpush.msra.mxu0 0.0
  %289 = vmatpush.msra.mxu0 0.0
  %290 = vmatpush.msra.mxu0 0.0
  %291 = vmatpush.msra.mxu0 0.0
  %292 = vmatpush.msra.mxu0 %v249
  %293 = vmatpush.msra.mxu0 %v248
  %294 = vmatmul.f32.gmra.mxu0 %v255
  %v295 = vpop.f32.mrf.mxu0
  %v296 = vadd.f32 %v252, %v295
  %297 = vmatmul.f32.gmra.mxu0 %v258
  %v298 = vpop.f32.mrf.mxu0
  %v299 = vadd.f32 %v252, %v298
  %300 = vmatmul.f32.gmra.mxu0 %v261
  %v301 = vpop.f32.mrf.mxu0
  %v302 = vadd.f32 %v252, %v301
  %303 = vmatmul.f32.gmra.mxu0 %v264
  %v304 = vpop.f32.mrf.mxu0
  %v305 = vadd.f32 %v252, %v304
  %306 = vmatmul.f32.gmra.mxu0 %v267
  %v307 = vpop.f32.mrf.mxu0
  %v308 = vadd.f32 %v252, %v307
  %309 = vmatmul.f32.gmra.mxu0 %v270
  %v310 = vpop.f32.mrf.mxu0
  %v311 = vadd.f32 %v252, %v310
  %312 = vmatmul.f32.gmra.mxu0 %v273
  %v313 = vpop.f32.mrf.mxu0
  %v314 = vadd.f32 %v252, %v313
  %315 = vmatmul.f32.gmra.mxu0 %v276
  %v316 = vpop.f32.mrf.mxu0
  %v317 = vadd.f32 %v252, %v316
  %318 = vdwg.mxu0
  %v319 = vld [vmem:[%s9] sm:$0xff]
  %v320 = vld [vmem:[%s9 + $0x8] sm:$0xff]
  %v321 = vld [vmem:[%s10] sm:$0x1]
  %v323 = vperm.slane %v321, 0
  %v326 = vsel %vm81, %v296, 0
  %v329 = vsel %vm81, %v299, 0
  %v332 = vsel %vm81, %v302, 0
  %v335 = vsel %vm81, %v305, 0
  %v338 = vsel %vm81, %v308, 0
  %v341 = vsel %vm81, %v311, 0
  %v344 = vsel %vm81, %v314, 0
  %v347 = vsel %vm81, %v317, 0
  %349 = vmatpush.msra.mxu0 0.0
  %350 = vmatpush.msra.mxu0 0.0
  %351 = vmatpush.msra.mxu0 0.0
  %352 = vmatpush.msra.mxu0 0.0
  %353 = vmatpush.msra.mxu0 0.0
  %354 = vmatpush.msra.mxu0 0.0
  %355 = vmatpush.msra.mxu0 0.0
  %356 = vmatpush.msra.mxu0 0.0
  %357 = vmatpush.msra.mxu0 0.0
  %358 = vmatpush.msra.mxu0 0.0
  %359 = vmatpush.msra.mxu0 0.0
  %360 = vmatpush.msra.mxu0 0.0
  %361 = vmatpush.msra.mxu0 0.0
  %362 = vmatpush.msra.mxu0 0.0
  %363 = vmatpush.msra.mxu0 %v320
  %364 = vmatpush.msra.mxu0 %v319
  %365 = vmatmul.f32.gmra.mxu0 %v326
  %v366 = vpop.f32.mrf.mxu0
  %v367 = vadd.f32 %v323, %v366
  %368 = vmatmul.f32.gmra.mxu0 %v329
  %v369 = vpop.f32.mrf.mxu0
  %v370 = vadd.f32 %v323, %v369
  %371 = vmatmul.f32.gmra.mxu0 %v332
  %v372 = vpop.f32.mrf.mxu0
  %v373 = vadd.f32 %v323, %v372
  %374 = vmatmul.f32.gmra.mxu0 %v335
  %v375 = vpop.f32.mrf.mxu0
  %v376 = vadd.f32 %v323, %v375
  %377 = vmatmul.f32.gmra.mxu0 %v338
  %v378 = vpop.f32.mrf.mxu0
  %v379 = vadd.f32 %v323, %v378
  %380 = vmatmul.f32.gmra.mxu0 %v341
  %v381 = vpop.f32.mrf.mxu0
  %v382 = vadd.f32 %v323, %v381
  %383 = vmatmul.f32.gmra.mxu0 %v344
  %v384 = vpop.f32.mrf.mxu0
  %v385 = vadd.f32 %v323, %v384
  %386 = vmatmul.f32.gmra.mxu0 %v347
  %v387 = vpop.f32.mrf.mxu0
  %v388 = vadd.f32 %v323, %v387
  %389 = vdwg.mxu0
  %v390 = vld [vmem:[%s2] sm:$0xff]
  %v392 = vsel %vm81, %v390, 0
  %394 = vmatpush.msra.mxu0 0.0
  %395 = vmatpush.msra.mxu0 0.0
  %396 = vmatpush.msra.mxu0 0.0
  %397 = vmatpush.msra.mxu0 0.0
  %398 = vmatpush.msra.mxu0 0.0
  %399 = vmatpush.msra.mxu0 0.0
  %400 = vmatpush.msra.mxu0 0.0
  %401 = vmatpush.msra.mxu0 0.0
  %402 = vmatpush.msra.mxu0 0.0
  %403 = vmatpush.msra.mxu0 0.0
  %404 = vmatpush.msra.mxu0 0.0
  %405 = vmatpush.msra.mxu0 0.0
  %406 = vmatpush.msra.mxu0 0.0
  %407 = vmatpush.msra.mxu0 0.0
  %408 = vmatpush.msra.mxu0 %v320
  %409 = vmatpush.msra.mxu0 %v319
  %410 = vmatmul.f32.gmra.mxu0 %v392
  %v411 = vpop.f32.mrf.mxu0
  %v412 = vadd.f32 0.0, %v411
  %413 = vdwg.mxu0
  %v414 = vld [vmem:[%s3] sm:$0xff]
  %v415 = vld [vmem:[%s3 + $0x8] sm:$0xff]
  %v416 = vld [vmem:[%s3 + $0x10] sm:$0xff]
  %v417 = vld [vmem:[%s3 + $0x18] sm:$0xff]
  %v418 = vld [vmem:[%s3 + $0x20] sm:$0xff]
  %v419 = vld [vmem:[%s3 + $0x28] sm:$0xff]
  %v420 = vld [vmem:[%s3 + $0x30] sm:$0xff]
  %v421 = vld [vmem:[%s3 + $0x38] sm:$0xff]
  %v422 = vld [vmem:[%s11] sm:$0xff]
  %v423 = vld [vmem:[%s11 + $0x8] sm:$0xff]
  %v424 = vld [vmem:[%s12] sm:$0xff]
  %v425 = vld [vmem:[%s12 + $0x8] sm:$0xff]
  %v426 = vld [vmem:[%s13] sm:$0x1]
  %v427 = vld [vmem:[%s14] sm:$0xff]
  %v428 = vld [vmem:[%s14 + $0x8] sm:$0xff]
  %v429 = vld [vmem:[#allocation2] sm:$0x1]
  %v430 = vld [vmem:[%s16] sm:$0xff]
  %v431 = vld [vmem:[%s16 + $0x8] sm:$0xff]
  %v432 = vld [vmem:[%s17] sm:$0x1]
  %v434 = vsel %vm81, %v367, 0
  %v437 = vsel %vm81, %v370, 0
  %v440 = vsel %vm81, %v373, 0
  %v443 = vsel %vm81, %v376, 0
  %v446 = vsel %vm81, %v379, 0
  %v449 = vsel %vm81, %v382, 0
  %v452 = vsel %vm81, %v385, 0
  %v455 = vsel %vm81, %v388, 0
  %457 = vmatpush.msra.mxu0 0.0
  %458 = vmatpush.msra.mxu0 0.0
  %459 = vmatpush.msra.mxu0 0.0
  %460 = vmatpush.msra.mxu0 0.0
  %461 = vmatpush.msra.mxu0 0.0
  %462 = vmatpush.msra.mxu0 0.0
  %463 = vmatpush.msra.mxu0 0.0
  %464 = vmatpush.msra.mxu0 0.0
  %465 = vmatpush.msra.mxu0 0.0
  %466 = vmatpush.msra.mxu0 0.0
  %467 = vmatpush.msra.mxu0 0.0
  %468 = vmatpush.msra.mxu0 0.0
  %469 = vmatpush.msra.mxu0 0.0
  %470 = vmatpush.msra.mxu0 0.0
  %471 = vmatpush.msra.mxu0 %v423
  %472 = vmatpush.msra.mxu0 %v422
  %473 = vmatmul.f32.gmra.mxu0 %v434
  %v474 = vpop.f32.mrf.mxu0
  %v475 = vadd.f32 0.0, %v474
  %476 = vmatmul.f32.gmra.mxu0 %v437
  %v477 = vpop.f32.mrf.mxu0
  %v478 = vadd.f32 0.0, %v477
  %479 = vmatmul.f32.gmra.mxu0 %v440
  %v480 = vpop.f32.mrf.mxu0
  %v481 = vadd.f32 0.0, %v480
  %482 = vmatmul.f32.gmra.mxu0 %v443
  %v483 = vpop.f32.mrf.mxu0
  %v484 = vadd.f32 0.0, %v483
  %485 = vmatmul.f32.gmra.mxu0 %v446
  %v486 = vpop.f32.mrf.mxu0
  %v487 = vadd.f32 0.0, %v486
  %488 = vmatmul.f32.gmra.mxu0 %v449
  %v489 = vpop.f32.mrf.mxu0
  %v490 = vadd.f32 0.0, %v489
  %491 = vmatmul.f32.gmra.mxu0 %v452
  %v492 = vpop.f32.mrf.mxu0
  %v493 = vadd.f32 0.0, %v492
  %494 = vmatmul.f32.gmra.mxu0 %v455
  %v495 = vpop.f32.mrf.mxu0
  %v496 = vadd.f32 0.0, %v495
  %497 = vdwg.mxu0
  %v499 = vsel %vm81, %v412, 0
  %501 = vmatpush.msra.mxu0 0.0
  %502 = vmatpush.msra.mxu0 0.0
  %503 = vmatpush.msra.mxu0 0.0
  %504 = vmatpush.msra.mxu0 0.0
  %505 = vmatpush.msra.mxu0 0.0
  %506 = vmatpush.msra.mxu0 0.0
  %507 = vmatpush.msra.mxu0 0.0
  %508 = vmatpush.msra.mxu0 0.0
  %509 = vmatpush.msra.mxu0 0.0
  %510 = vmatpush.msra.mxu0 0.0
  %511 = vmatpush.msra.mxu0 0.0
  %512 = vmatpush.msra.mxu0 0.0
  %513 = vmatpush.msra.mxu0 0.0
  %514 = vmatpush.msra.mxu0 0.0
  %515 = vmatpush.msra.mxu0 %v425
  %516 = vmatpush.msra.mxu0 %v424
  %517 = vmatmul.f32.gmra.mxu0 %v499
  %v518 = vpop.f32.mrf.mxu0
  %v519 = vadd.f32 0.0, %v518
  %520 = vdwg.mxu0
  %v521 = vsel %vm81, %v321, 0
  %523 = vmatpush.msra.mxu0 0.0
  %524 = vmatpush.msra.mxu0 0.0
  %525 = vmatpush.msra.mxu0 0.0
  %526 = vmatpush.msra.mxu0 0.0
  %527 = vmatpush.msra.mxu0 0.0
  %528 = vmatpush.msra.mxu0 0.0
  %529 = vmatpush.msra.mxu0 0.0
  %530 = vmatpush.msra.mxu0 0.0
  %531 = vmatpush.msra.mxu0 0.0
  %532 = vmatpush.msra.mxu0 0.0
  %533 = vmatpush.msra.mxu0 0.0
  %534 = vmatpush.msra.mxu0 0.0
  %535 = vmatpush.msra.mxu0 0.0
  %536 = vmatpush.msra.mxu0 0.0
  %537 = vmatpush.msra.mxu0 %v425
  %538 = vmatpush.msra.mxu0 %v424
  %539 = vmatmul.f32.gmra.mxu0 %v521
  %v540 = vpop.f32.mrf.mxu0
  %v541 = vadd.f32 %v426, %v540
  %542 = vdwg.mxu0
  %v544 = vrot.slane %v519, 1
  %v545 = vrot.slane %v519, 2
  %v546 = vrot.slane %v519, 3
  %v547 = vrot.slane %v519, 4
  %v548 = vrot.slane %v519, 5
  %v549 = vrot.slane %v519, 6
  %v550 = vrot.slane %v519, 7
  %552 = vset.pattern.permute.xlu0 0
  %553 = vperm.xlu0 %552, %v414
  %v554 = vpop.permute.xlu0 %553
  %557 = vset.pattern.permute.xlu0 0
  %558 = vperm.xlu0 %557, %v415
  %v559 = vpop.permute.xlu0 %558
  %562 = vset.pattern.permute.xlu0 0
  %563 = vperm.xlu0 %562, %v416
  %v564 = vpop.permute.xlu0 %563
  %567 = vset.pattern.permute.xlu0 0
  %568 = vperm.xlu0 %567, %v417
  %v569 = vpop.permute.xlu0 %568
  %572 = vset.pattern.permute.xlu0 0
  %573 = vperm.xlu0 %572, %v418
  %v574 = vpop.permute.xlu0 %573
  %577 = vset.pattern.permute.xlu0 0
  %578 = vperm.xlu0 %577, %v419
  %v579 = vpop.permute.xlu0 %578
  %582 = vset.pattern.permute.xlu0 0
  %583 = vperm.xlu0 %582, %v420
  %v584 = vpop.permute.xlu0 %583
  %587 = vset.pattern.permute.xlu0 0
  %588 = vperm.xlu0 %587, %v421
  %v589 = vpop.permute.xlu0 %588
  %v591 = vperm.slane %v519, 0
  %v592 = vperm.slane %v544, 0
  %v593 = vperm.slane %v545, 0
  %v594 = vperm.slane %v546, 0
  %v595 = vperm.slane %v547, 0
  %v596 = vperm.slane %v548, 0
  %v597 = vperm.slane %v549, 0
  %v598 = vperm.slane %v550, 0
  %v607 = vmul.f32 %v554, %v591
  %v608 = vmul.f32 %v559, %v592
  %v609 = vmul.f32 %v564, %v593
  %v610 = vmul.f32 %v569, %v594
  %v611 = vmul.f32 %v574, %v595
  %v612 = vmul.f32 %v579, %v596
  %v613 = vmul.f32 %v584, %v597
  %v614 = vmul.f32 %v589, %v598
  %v615 = vadd.f32 %v475, %v607
  %v616 = vadd.f32 %v478, %v608
  %v617 = vadd.f32 %v481, %v609
  %v618 = vadd.f32 %v484, %v610
  %v619 = vadd.f32 %v487, %v611
  %v620 = vadd.f32 %v490, %v612
  %v621 = vadd.f32 %v493, %v613
  %v622 = vadd.f32 %v496, %v614
  %v623 = vperm.slane %v541, 0
  %v624 = vadd.f32 %v615, %v623
  %v625 = vadd.f32 %v616, %v623
  %v626 = vadd.f32 %v617, %v623
  %v627 = vadd.f32 %v618, %v623
  %v628 = vadd.f32 %v619, %v623
  %v629 = vadd.f32 %v620, %v623
  %v630 = vadd.f32 %v621, %v623
  %v631 = vadd.f32 %v622, %v623
  %vm632 = vcmp.gt.f32.partialorder %v624, 0.0
  %vm633 = vcmp.gt.f32.partialorder %v625, 0.0
  %vm634 = vcmp.gt.f32.partialorder %v626, 0.0
  %vm635 = vcmp.gt.f32.partialorder %v627, 0.0
  %vm636 = vcmp.gt.f32.partialorder %v628, 0.0
  %vm637 = vcmp.gt.f32.partialorder %v629, 0.0
  %vm638 = vcmp.gt.f32.partialorder %v630, 0.0
  %vm639 = vcmp.gt.f32.partialorder %v631, 0.0
  %v640 = vmul.f32 %v624, 0.2
  %v641 = vmul.f32 %v625, 0.2
  %v642 = vmul.f32 %v626, 0.2
  %v643 = vmul.f32 %v627, 0.2
  %v644 = vmul.f32 %v628, 0.2
  %v645 = vmul.f32 %v629, 0.2
  %v646 = vmul.f32 %v630, 0.2
  %v647 = vmul.f32 %v631, 0.2
  %v648 = vsel %vm632, %v624, %v640
  %v649 = vsel %vm633, %v625, %v641
  %v650 = vsel %vm634, %v626, %v642
  %v651 = vsel %vm635, %v627, %v643
  %v652 = vsel %vm636, %v628, %v644
  %v653 = vsel %vm637, %v629, %v645
  %v654 = vsel %vm638, %v630, %v646
  %v655 = vsel %vm639, %v631, %v647
  %v657 = vperm.slane %v429, 0
  %v660 = vsel %vm81, %v648, 0
  %v663 = vsel %vm81, %v649, 0
  %v666 = vsel %vm81, %v650, 0
  %v669 = vsel %vm81, %v651, 0
  %v672 = vsel %vm81, %v652, 0
  %v675 = vsel %vm81, %v653, 0
  %v678 = vsel %vm81, %v654, 0
  %v681 = vsel %vm81, %v655, 0
  %683 = vmatpush.msra.mxu0 0.0
  %684 = vmatpush.msra.mxu0 0.0
  %685 = vmatpush.msra.mxu0 0.0
  %686 = vmatpush.msra.mxu0 0.0
  %687 = vmatpush.msra.mxu0 0.0
  %688 = vmatpush.msra.mxu0 0.0
  %689 = vmatpush.msra.mxu0 0.0
  %690 = vmatpush.msra.mxu0 0.0
  %691 = vmatpush.msra.mxu0 0.0
  %692 = vmatpush.msra.mxu0 0.0
  %693 = vmatpush.msra.mxu0 0.0
  %694 = vmatpush.msra.mxu0 0.0
  %695 = vmatpush.msra.mxu0 0.0
  %696 = vmatpush.msra.mxu0 0.0
  %697 = vmatpush.msra.mxu0 %v428
  %698 = vmatpush.msra.mxu0 %v427
  %699 = vmatmul.f32.gmra.mxu0 %v660
  %v700 = vpop.f32.mrf.mxu0
  %v701 = vadd.f32 %v657, %v700
  %702 = vmatmul.f32.gmra.mxu0 %v663
  %v703 = vpop.f32.mrf.mxu0
  %v704 = vadd.f32 %v657, %v703
  %705 = vmatmul.f32.gmra.mxu0 %v666
  %v706 = vpop.f32.mrf.mxu0
  %v707 = vadd.f32 %v657, %v706
  %708 = vmatmul.f32.gmra.mxu0 %v669
  %v709 = vpop.f32.mrf.mxu0
  %v710 = vadd.f32 %v657, %v709
  %711 = vmatmul.f32.gmra.mxu0 %v672
  %v712 = vpop.f32.mrf.mxu0
  %v713 = vadd.f32 %v657, %v712
  %714 = vmatmul.f32.gmra.mxu0 %v675
  %v715 = vpop.f32.mrf.mxu0
  %v716 = vadd.f32 %v657, %v715
  %717 = vmatmul.f32.gmra.mxu0 %v678
  %v718 = vpop.f32.mrf.mxu0
  %v719 = vadd.f32 %v657, %v718
  %720 = vmatmul.f32.gmra.mxu0 %v681
  %v721 = vpop.f32.mrf.mxu0
  %v722 = vadd.f32 %v657, %v721
  %723 = vdwg.mxu0
  %v724 = vmul.f32 %v701, 1.442695
  %v725 = vpow.pop %v724
  %v726 = vmul.f32 %v704, 1.442695
  %v727 = vpow.pop %v726
  %v728 = vmul.f32 %v707, 1.442695
  %v729 = vpow.pop %v728
  %v730 = vmul.f32 %v710, 1.442695
  %v731 = vpow.pop %v730
  %v732 = vmul.f32 %v713, 1.442695
  %v733 = vpow.pop %v732
  %v734 = vmul.f32 %v716, 1.442695
  %v735 = vpow.pop %v734
  %v736 = vmul.f32 %v719, 1.442695
  %v737 = vpow.pop %v736
  %v738 = vmul.f32 %v722, 1.442695
  %v739 = vpow.pop %v738
  %v740 = vmul.f32 %v725, %v414
  %v741 = vmul.f32 %v727, %v415
  %v742 = vmul.f32 %v729, %v416
  %v743 = vmul.f32 %v731, %v417
  %v744 = vmul.f32 %v733, %v418
  %v745 = vmul.f32 %v735, %v419
  %v746 = vmul.f32 %v737, %v420
  %v747 = vmul.f32 %v739, %v421
  %vm748 = vcmask 7168
  %v749 = vsel %vm748, %v740, 0.0
  %v750 = vrot.slane %v749, 4
  %v751 = vadd.f32 %v749, %v750
  %v752 = vrot.slane %v751, 2
  %v753 = vadd.f32 %v751, %v752
  %v754 = vrot.slane %v753, 1
  %v755 = vadd.f32 %v753, %v754
  %v756 = vsel %vm748, %v741, 0.0
  %v757 = vrot.slane %v756, 4
  %v758 = vadd.f32 %v756, %v757
  %v759 = vrot.slane %v758, 2
  %v760 = vadd.f32 %v758, %v759
  %v761 = vrot.slane %v760, 1
  %v762 = vadd.f32 %v760, %v761
  %v763 = vsel %vm748, %v742, 0.0
  %v764 = vrot.slane %v763, 4
  %v765 = vadd.f32 %v763, %v764
  %v766 = vrot.slane %v765, 2
  %v767 = vadd.f32 %v765, %v766
  %v768 = vrot.slane %v767, 1
  %v769 = vadd.f32 %v767, %v768
  %v770 = vsel %vm748, %v743, 0.0
  %v771 = vrot.slane %v770, 4
  %v772 = vadd.f32 %v770, %v771
  %v773 = vrot.slane %v772, 2
  %v774 = vadd.f32 %v772, %v773
  %v775 = vrot.slane %v774, 1
  %v776 = vadd.f32 %v774, %v775
  %v777 = vsel %vm748, %v744, 0.0
  %v778 = vrot.slane %v777, 4
  %v779 = vadd.f32 %v777, %v778
  %v780 = vrot.slane %v779, 2
  %v781 = vadd.f32 %v779, %v780
  %v782 = vrot.slane %v781, 1
  %v783 = vadd.f32 %v781, %v782
  %v784 = vsel %vm748, %v745, 0.0
  %v785 = vrot.slane %v784, 4
  %v786 = vadd.f32 %v784, %v785
  %v787 = vrot.slane %v786, 2
  %v788 = vadd.f32 %v786, %v787
  %v789 = vrot.slane %v788, 1
  %v790 = vadd.f32 %v788, %v789
  %v791 = vsel %vm748, %v746, 0.0
  %v792 = vrot.slane %v791, 4
  %v793 = vadd.f32 %v791, %v792
  %v794 = vrot.slane %v793, 2
  %v795 = vadd.f32 %v793, %v794
  %v796 = vrot.slane %v795, 1
  %v797 = vadd.f32 %v795, %v796
  %v798 = vsel %vm748, %v747, 0.0
  %v799 = vrot.slane %v798, 4
  %v800 = vadd.f32 %v798, %v799
  %v801 = vrot.slane %v800, 2
  %v802 = vadd.f32 %v800, %v801
  %v803 = vrot.slane %v802, 1
  %v804 = vadd.f32 %v802, %v803
  %v805 = vadd.f32 %v755, 1e-10
  %v806 = vadd.f32 %v762, 1e-10
  %v807 = vadd.f32 %v769, 1e-10
  %v808 = vadd.f32 %v776, 1e-10
  %v809 = vadd.f32 %v783, 1e-10
  %v810 = vadd.f32 %v790, 1e-10
  %v811 = vadd.f32 %v797, 1e-10
  %v812 = vadd.f32 %v804, 1e-10
  %v813 = vrcp.pop %v805
  %v814 = vmul.f32 %v805, %v813
  %v815 = vsub.f32 1.0, %v814
  %v816 = vmul.f32 %v813, %v815
  %v817 = vadd.f32 %v813, %v816
  %vm818 = vweird.f32 %v805
  %vm819 = vweird.f32 %v813
  %vm820 = vmor %vm818, %vm819
  %v821 = vsel %vm820, %v813, %v817
  %v822 = vand.u32 2147483647, %v805
  %vm823 = vcmp.eq.f32.partialorder %v822, 8.507059e+37
  %v824 = vand.u32 %v805, 2147483648
  %v825 = vor.u32 1.1754944e-38, %v824
  %v826 = vsel %vm823, %v825, %v821
  %v827 = vmul.f32 %v740, %v826
  %v828 = vrcp.pop %v806
  %v829 = vmul.f32 %v806, %v828
  %v830 = vsub.f32 1.0, %v829
  %v831 = vmul.f32 %v828, %v830
  %v832 = vadd.f32 %v828, %v831
  %vm833 = vweird.f32 %v806
  %vm834 = vweird.f32 %v828
  %vm835 = vmor %vm833, %vm834
  %v836 = vsel %vm835, %v828, %v832
  %v837 = vand.u32 2147483647, %v806
  %vm838 = vcmp.eq.f32.partialorder %v837, 8.507059e+37
  %v839 = vand.u32 %v806, 2147483648
  %v840 = vor.u32 1.1754944e-38, %v839
  %v841 = vsel %vm838, %v840, %v836
  %v842 = vmul.f32 %v741, %v841
  %v843 = vrcp.pop %v807
  %v844 = vmul.f32 %v807, %v843
  %v845 = vsub.f32 1.0, %v844
  %v846 = vmul.f32 %v843, %v845
  %v847 = vadd.f32 %v843, %v846
  %vm848 = vweird.f32 %v807
  %vm849 = vweird.f32 %v843
  %vm850 = vmor %vm848, %vm849
  %v851 = vsel %vm850, %v843, %v847
  %v852 = vand.u32 2147483647, %v807
  %vm853 = vcmp.eq.f32.partialorder %v852, 8.507059e+37
  %v854 = vand.u32 %v807, 2147483648
  %v855 = vor.u32 1.1754944e-38, %v854
  %v856 = vsel %vm853, %v855, %v851
  %v857 = vmul.f32 %v742, %v856
  %v858 = vrcp.pop %v808
  %v859 = vmul.f32 %v808, %v858
  %v860 = vsub.f32 1.0, %v859
  %v861 = vmul.f32 %v858, %v860
  %v862 = vadd.f32 %v858, %v861
  %vm863 = vweird.f32 %v808
  %vm864 = vweird.f32 %v858
  %vm865 = vmor %vm863, %vm864
  %v866 = vsel %vm865, %v858, %v862
  %v867 = vand.u32 2147483647, %v808
  %vm868 = vcmp.eq.f32.partialorder %v867, 8.507059e+37
  %v869 = vand.u32 %v808, 2147483648
  %v870 = vor.u32 1.1754944e-38, %v869
  %v871 = vsel %vm868, %v870, %v866
  %v872 = vmul.f32 %v743, %v871
  %v873 = vrcp.pop %v809
  %v874 = vmul.f32 %v809, %v873
  %v875 = vsub.f32 1.0, %v874
  %v876 = vmul.f32 %v873, %v875
  %v877 = vadd.f32 %v873, %v876
  %vm878 = vweird.f32 %v809
  %vm879 = vweird.f32 %v873
  %vm880 = vmor %vm878, %vm879
  %v881 = vsel %vm880, %v873, %v877
  %v882 = vand.u32 2147483647, %v809
  %vm883 = vcmp.eq.f32.partialorder %v882, 8.507059e+37
  %v884 = vand.u32 %v809, 2147483648
  %v885 = vor.u32 1.1754944e-38, %v884
  %v886 = vsel %vm883, %v885, %v881
  %v887 = vmul.f32 %v744, %v886
  %v888 = vrcp.pop %v810
  %v889 = vmul.f32 %v810, %v888
  %v890 = vsub.f32 1.0, %v889
  %v891 = vmul.f32 %v888, %v890
  %v892 = vadd.f32 %v888, %v891
  %vm893 = vweird.f32 %v810
  %vm894 = vweird.f32 %v888
  %vm895 = vmor %vm893, %vm894
  %v896 = vsel %vm895, %v888, %v892
  %v897 = vand.u32 2147483647, %v810
  %vm898 = vcmp.eq.f32.partialorder %v897, 8.507059e+37
  %v899 = vand.u32 %v810, 2147483648
  %v900 = vor.u32 1.1754944e-38, %v899
  %v901 = vsel %vm898, %v900, %v896
  %v902 = vmul.f32 %v745, %v901
  %v903 = vrcp.pop %v811
  %v904 = vmul.f32 %v811, %v903
  %v905 = vsub.f32 1.0, %v904
  %v906 = vmul.f32 %v903, %v905
  %v907 = vadd.f32 %v903, %v906
  %vm908 = vweird.f32 %v811
  %vm909 = vweird.f32 %v903
  %vm910 = vmor %vm908, %vm909
  %v911 = vsel %vm910, %v903, %v907
  %v912 = vand.u32 2147483647, %v811
  %vm913 = vcmp.eq.f32.partialorder %v912, 8.507059e+37
  %v914 = vand.u32 %v811, 2147483648
  %v915 = vor.u32 1.1754944e-38, %v914
  %v916 = vsel %vm913, %v915, %v911
  %v917 = vmul.f32 %v746, %v916
  %v918 = vrcp.pop %v812
  %v919 = vmul.f32 %v812, %v918
  %v920 = vsub.f32 1.0, %v919
  %v921 = vmul.f32 %v918, %v920
  %v922 = vadd.f32 %v918, %v921
  %vm923 = vweird.f32 %v812
  %vm924 = vweird.f32 %v918
  %vm925 = vmor %vm923, %vm924
  %v926 = vsel %vm925, %v918, %v922
  %v927 = vand.u32 2147483647, %v812
  %vm928 = vcmp.eq.f32.partialorder %v927, 8.507059e+37
  %v929 = vand.u32 %v812, 2147483648
  %v930 = vor.u32 1.1754944e-38, %v929
  %v931 = vsel %vm928, %v930, %v926
  %v932 = vmul.f32 %v747, %v931
  %934 = vset.pattern.permute.xlu0 0
  %935 = vperm.xlu0 %934, %v827
  %v936 = vpop.permute.xlu0 %935
  %939 = vset.pattern.permute.xlu0 0
  %940 = vperm.xlu0 %939, %v842
  %v941 = vpop.permute.xlu0 %940
  %944 = vset.pattern.permute.xlu0 0
  %945 = vperm.xlu0 %944, %v857
  %v946 = vpop.permute.xlu0 %945
  %949 = vset.pattern.permute.xlu0 0
  %950 = vperm.xlu0 %949, %v872
  %v951 = vpop.permute.xlu0 %950
  %954 = vset.pattern.permute.xlu0 0
  %955 = vperm.xlu0 %954, %v887
  %v956 = vpop.permute.xlu0 %955
  %959 = vset.pattern.permute.xlu0 0
  %960 = vperm.xlu0 %959, %v902
  %v961 = vpop.permute.xlu0 %960
  %964 = vset.pattern.permute.xlu0 0
  %965 = vperm.xlu0 %964, %v917
  %v966 = vpop.permute.xlu0 %965
  %969 = vset.pattern.permute.xlu0 0
  %970 = vperm.xlu0 %969, %v932
  %v971 = vpop.permute.xlu0 %970
  %v973 = vmul.f32 %v936, %v367
  %v974 = vmul.f32 %v941, %v370
  %v975 = vmul.f32 %v946, %v373
  %v976 = vmul.f32 %v951, %v376
  %v977 = vmul.f32 %v956, %v379
  %v978 = vmul.f32 %v961, %v382
  %v979 = vmul.f32 %v966, %v385
  %v980 = vmul.f32 %v971, %v388
  %v981 = vsel %vm81, %v973, 0.0
  %v982 = vrot.slane %v981, 4
  %v983 = vadd.f32 %v981, %v982
  %v984 = vrot.slane %v983, 2
  %v985 = vadd.f32 %v983, %v984
  %v986 = vrot.slane %v985, 1
  %v987 = vadd.f32 %v985, %v986
  %v988 = vsel %vm81, %v974, 0.0
  %v989 = vrot.slane %v988, 4
  %v990 = vadd.f32 %v988, %v989
  %v991 = vrot.slane %v990, 2
  %v992 = vadd.f32 %v990, %v991
  %v993 = vrot.slane %v992, 1
  %v994 = vadd.f32 %v992, %v993
  %v995 = vsel %vm81, %v975, 0.0
  %v996 = vrot.slane %v995, 4
  %v997 = vadd.f32 %v995, %v996
  %v998 = vrot.slane %v997, 2
  %v999 = vadd.f32 %v997, %v998
  %v1000 = vrot.slane %v999, 1
  %v1001 = vadd.f32 %v999, %v1000
  %v1002 = vsel %vm81, %v976, 0.0
  %v1003 = vrot.slane %v1002, 4
  %v1004 = vadd.f32 %v1002, %v1003
  %v1005 = vrot.slane %v1004, 2
  %v1006 = vadd.f32 %v1004, %v1005
  %v1007 = vrot.slane %v1006, 1
  %v1008 = vadd.f32 %v1006, %v1007
  %v1009 = vsel %vm81, %v977, 0.0
  %v1010 = vrot.slane %v1009, 4
  %v1011 = vadd.f32 %v1009, %v1010
  %v1012 = vrot.slane %v1011, 2
  %v1013 = vadd.f32 %v1011, %v1012
  %v1014 = vrot.slane %v1013, 1
  %v1015 = vadd.f32 %v1013, %v1014
  %v1016 = vsel %vm81, %v978, 0.0
  %v1017 = vrot.slane %v1016, 4
  %v1018 = vadd.f32 %v1016, %v1017
  %v1019 = vrot.slane %v1018, 2
  %v1020 = vadd.f32 %v1018, %v1019
  %v1021 = vrot.slane %v1020, 1
  %v1022 = vadd.f32 %v1020, %v1021
  %v1023 = vsel %vm81, %v979, 0.0
  %v1024 = vrot.slane %v1023, 4
  %v1025 = vadd.f32 %v1023, %v1024
  %v1026 = vrot.slane %v1025, 2
  %v1027 = vadd.f32 %v1025, %v1026
  %v1028 = vrot.slane %v1027, 1
  %v1029 = vadd.f32 %v1027, %v1028
  %v1030 = vsel %vm81, %v980, 0.0
  %v1031 = vrot.slane %v1030, 4
  %v1032 = vadd.f32 %v1030, %v1031
  %v1033 = vrot.slane %v1032, 2
  %v1034 = vadd.f32 %v1032, %v1033
  %v1035 = vrot.slane %v1034, 1
  %v1036 = vadd.f32 %v1034, %v1035
  %v1038 = vperm.slane %v432, 0
  %vm1048 = vcmask 1041409
  %v1049 = vsel %vm1048, %v994, %v987
  %vm1050 = vcmask 1042434
  %v1051 = vsel %vm1050, %v1001, %v1049
  %vm1052 = vcmask 1043459
  %v1053 = vsel %vm1052, %v1008, %v1051
  %vm1054 = vcmask 1044484
  %v1055 = vsel %vm1054, %v1015, %v1053
  %vm1056 = vcmask 1045509
  %v1057 = vsel %vm1056, %v1022, %v1055
  %vm1058 = vcmask 1046534
  %v1059 = vsel %vm1058, %v1029, %v1057
  %vm1060 = vcmask 1047559
  %v1061 = vsel %vm1060, %v1036, %v1059
  %v1062 = vsel %vm81, %v1061, 0
  %1064 = vmatpush.msra.mxu0 0.0
  %1065 = vmatpush.msra.mxu0 0.0
  %1066 = vmatpush.msra.mxu0 0.0
  %1067 = vmatpush.msra.mxu0 0.0
  %1068 = vmatpush.msra.mxu0 0.0
  %1069 = vmatpush.msra.mxu0 0.0
  %1070 = vmatpush.msra.mxu0 0.0
  %1071 = vmatpush.msra.mxu0 0.0
  %1072 = vmatpush.msra.mxu0 0.0
  %1073 = vmatpush.msra.mxu0 0.0
  %1074 = vmatpush.msra.mxu0 0.0
  %1075 = vmatpush.msra.mxu0 0.0
  %1076 = vmatpush.msra.mxu0 0.0
  %1077 = vmatpush.msra.mxu0 0.0
  %1078 = vmatpush.msra.mxu0 %v431
  %1079 = vmatpush.msra.mxu0 %v430
  %1080 = vmatmul.f32.gmra.mxu0 %v1062
  %v1081 = vpop.f32.mrf.mxu0
  %v1082 = vadd.f32 %v1038, %v1081
  %1083 = vdwg.mxu0
  %v1084 = vmax.f32 %v1082, 0.0
  %1085 = vst.msk [vmem:[%s18] sm:$0xff] %vm81, %v1084
  // Predicated region
  $region74: #{user_model_forward.8} parent=0 // pred_check
    _
  $region75: #{user_model_forward.8} parent=0 // pred_check_branch
    %1087 = sbr.rel (0) target = $region77
  $region76: #{user_model_forward.8} parent=0 // pred_region
    _
  $region77: #{user_model_forward.8} parent=0 // pred_fallthru
    _
  // Predicated region
  $region78: #{user_model_forward.8} parent=0 // pred_check
    _
  $region79: #{user_model_forward.8} parent=0 // pred_check_branch
    %1089 = sbr.rel (0) target = $region81
  $region80: #{user_model_forward.8} parent=0 // pred_region
    _
  $region81: #{user_model_forward.8} parent=0 // pred_fallthru
    _

// kernel: user_model_forward.15
$region0: #{user_model_forward.15}
  #allocation0 [shape = 'u32[]', space=smem, size = 0x4, offset = 0x4, fixed_abs, tag = 'smem constant byte address 0x4 - core index']
  #allocation1 [shape = 'u32[72,128]{1,0:T(1,128)}', space=vmem, size = 0x9000, scoped, tag = 'internal scratch']
  %s0 = inlined_call_operand.vmem [shape: f32[8,80], index: 0, kind: input, shape index: {}]
  %s1 = inlined_call_operand.vmem [shape: f32[80,48], index: 1, kind: input, shape index: {}]
  %s2 = inlined_call_operand.vmem [shape: f32[1,48], index: 2, kind: input, shape index: {}]
  %s3 = inlined_call_operand.vmem [shape: f32[48,16], index: 3, kind: input, shape index: {}]
  %s4 = inlined_call_operand.vmem [shape: f32[1,16], index: 4, kind: input, shape index: {}]
  %s5 = inlined_call_operand.vmem [shape: f32[8,16], index: 5, kind: output, shape index: {}]
  %s6 = sld [smem:[#allocation0]]
  $region30: #{user_model_forward.15} parent=0
    _
  %s8 = ssub.s32 1, %s6
  %s9 = scalar_select 0, %s8, %s6
  // Predicated region
  $region2: #{user_model_forward.15} parent=0 // pred_check
    _
  $region3: #{user_model_forward.15} parent=0 // pred_check_branch
    %11 = sbr.rel (0) target = $region5
  $region4: #{user_model_forward.15} parent=0 // pred_region
    _
  $region5: #{user_model_forward.15} parent=0 // pred_fallthru
    _
  // Predicated region
  $region6: #{user_model_forward.15} parent=0 // pred_check
    _
  $region7: #{user_model_forward.15} parent=0 // pred_check_branch
    %13 = sbr.rel (0) target = $region9
  $region8: #{user_model_forward.15} parent=0 // pred_region
    _
  $region9: #{user_model_forward.15} parent=0 // pred_fallthru
    _
  // Predicated region
  $region10: #{user_model_forward.15} parent=0 // pred_check
    _
  $region11: #{user_model_forward.15} parent=0 // pred_check_branch
    %15 = sbr.rel (0) target = $region13
  $region12: #{user_model_forward.15} parent=0 // pred_region
    _
  $region13: #{user_model_forward.15} parent=0 // pred_fallthru
    _
  // Predicated region
  $region14: #{user_model_forward.15} parent=0 // pred_check
    _
  $region15: #{user_model_forward.15} parent=0 // pred_check_branch
    %17 = sbr.rel (0) target = $region17
  $region16: #{user_model_forward.15} parent=0 // pred_region
    _
  $region17: #{user_model_forward.15} parent=0 // pred_fallthru
    _
  // Predicated region
  $region18: #{user_model_forward.15} parent=0 // pred_check
    _
  $region19: #{user_model_forward.15} parent=0 // pred_check_branch
    %19 = sbr.rel (0) target = $region21
  $region20: #{user_model_forward.15} parent=0 // pred_region
    _
  $region21: #{user_model_forward.15} parent=0 // pred_fallthru
    _
  %v20 = vld [vmem:[%s0] sm:$0xff]
  %v21 = vld [vmem:[%s1] sm:$0xff]
  %v22 = vld [vmem:[%s1 + $0x8] sm:$0xff]
  %v23 = vld [vmem:[%s1 + $0x10] sm:$0xff]
  %v24 = vld [vmem:[%s1 + $0x18] sm:$0xff]
  %v25 = vld [vmem:[%s1 + $0x20] sm:$0xff]
  %v26 = vld [vmem:[%s1 + $0x28] sm:$0xff]
  %v27 = vld [vmem:[%s1 + $0x30] sm:$0xff]
  %v28 = vld [vmem:[%s1 + $0x38] sm:$0xff]
  %v29 = vld [vmem:[%s1 + $0x40] sm:$0xff]
  %v30 = vld [vmem:[%s1 + $0x48] sm:$0xff]
  %v31 = vld [vmem:[%s2] sm:$0x1]
  %v33 = vperm.slane %v31, 0
  %vm35 = vcmask 654336
  %v37 = vsel %vm35, %v20, 0
  %39 = vmatpush.msra.mxu0 0.0
  %40 = vmatpush.msra.mxu0 0.0
  %41 = vmatpush.msra.mxu0 0.0
  %42 = vmatpush.msra.mxu0 0.0
  %43 = vmatpush.msra.mxu0 0.0
  %44 = vmatpush.msra.mxu0 0.0
  %45 = vmatpush.msra.mxu0 %v30
  %46 = vmatpush.msra.mxu0 %v29
  %47 = vmatpush.msra.mxu0 %v28
  %48 = vmatpush.msra.mxu0 %v27
  %49 = vmatpush.msra.mxu0 %v26
  %50 = vmatpush.msra.mxu0 %v25
  %51 = vmatpush.msra.mxu0 %v24
  %52 = vmatpush.msra.mxu0 %v23
  %53 = vmatpush.msra.mxu0 %v22
  %54 = vmatpush.msra.mxu0 %v21
  %55 = vmatmul.f32.gmra.mxu0 %v37
  %v56 = vpop.f32.mrf.mxu0
  %v57 = vadd.f32 %v33, %v56
  %58 = vdwg.mxu0
  %v59 = vmax.f32 %v57, 0.0
  %v60 = vld [vmem:[%s3] sm:$0xff]
  %v61 = vld [vmem:[%s3 + $0x8] sm:$0xff]
  %v62 = vld [vmem:[%s3 + $0x10] sm:$0xff]
  %v63 = vld [vmem:[%s3 + $0x18] sm:$0xff]
  %v64 = vld [vmem:[%s3 + $0x20] sm:$0xff]
  %v65 = vld [vmem:[%s3 + $0x28] sm:$0xff]
  %v66 = vld [vmem:[%s4] sm:$0x1]
  %v68 = vperm.slane %v66, 0
  %vm70 = vcmask 392192
  %v72 = vsel %vm70, %v59, 0
  %74 = vmatpush.msra.mxu0 0.0
  %75 = vmatpush.msra.mxu0 0.0
  %76 = vmatpush.msra.mxu0 0.0
  %77 = vmatpush.msra.mxu0 0.0
  %78 = vmatpush.msra.mxu0 0.0
  %79 = vmatpush.msra.mxu0 0.0
  %80 = vmatpush.msra.mxu0 0.0
  %81 = vmatpush.msra.mxu0 0.0
  %82 = vmatpush.msra.mxu0 0.0
  %83 = vmatpush.msra.mxu0 0.0
  %84 = vmatpush.msra.mxu0 %v65
  %85 = vmatpush.msra.mxu0 %v64
  %86 = vmatpush.msra.mxu0 %v63
  %87 = vmatpush.msra.mxu0 %v62
  %88 = vmatpush.msra.mxu0 %v61
  %89 = vmatpush.msra.mxu0 %v60
  %90 = vmatmul.f32.gmra.mxu0 %v72
  %v91 = vpop.f32.mrf.mxu0
  %v92 = vadd.f32 %v68, %v91
  %93 = vdwg.mxu0
  %v94 = vmax.f32 %v92, 0.0
  %vm95 = vcmask 130048
  %96 = vst.msk [vmem:[%s5] sm:$0xff] %vm95, %v94
  // Predicated region
  $region22: #{user_model_forward.15} parent=0 // pred_check
    _
  $region23: #{user_model_forward.15} parent=0 // pred_check_branch
    %98 = sbr.rel (0) target = $region25
  $region24: #{user_model_forward.15} parent=0 // pred_region
    _
  $region25: #{user_model_forward.15} parent=0 // pred_fallthru
    _
  // Predicated region
  $region26: #{user_model_forward.15} parent=0 // pred_check
    _
  $region27: #{user_model_forward.15} parent=0 // pred_check_branch
    %100 = sbr.rel (0) target = $region29
  $region28: #{user_model_forward.15} parent=0 // pred_region
    _
  $region29: #{user_model_forward.15} parent=0 // pred_fallthru
    _

</llo_original>
